<compile_context>
chip_gen: v7x
topology: tpu7x:2x2x1
jax: 0.10.0
libtpu: 0.0.40
codegen_flags: <defaults>
</compile_context>

<pallas_src>
import functools

import jax
import jax.numpy as jnp
from jax import lax
from jax.experimental import pallas as pl
from jax.experimental.pallas import tpu as pltpu

TAPS = 5


# --------------------------------------------------------------------------- #
# Kernel body
# --------------------------------------------------------------------------- #
def _im2col(a, conv_axis, rows):
    """5-tap shifted-window im2col along `conv_axis` of a 3-D (d0, d1, C) block.

    Zero-pads by 2 on each side of `conv_axis` (in registers) and concatenates
    the 5 shifted windows along the channel axis.  Returns (rows, 5*C)."""
    L = a.shape[conv_axis]
    zshape = list(a.shape)
    zshape[conv_axis] = 2
    zz = jnp.zeros(zshape, a.dtype)
    ap = jnp.concatenate([zz, a, zz], axis=conv_axis)
    wins = [lax.slice_in_dim(ap, k, k + L, axis=conv_axis) for k in range(TAPS)]
    return jnp.concatenate(wins, axis=-1).reshape(rows, -1)


def _gru_cell(h, x, wx, whzr, whq, b_all, conv_axis):
    """One SepConvGRU stage on a (d0, d1, C) block; 5-tap conv along conv_axis."""
    Ch = h.shape[-1]
    rows = h.shape[0] * h.shape[1]

    # im2col pieces; the x part is shared by the z|r and q gates.
    x_cols = _im2col(x, conv_axis, rows)                       # (rows, 5*Cx)
    h_cols = _im2col(h, conv_axis, rows)                       # (rows, 5*Ch)

    # x contribution to all three gates (+ all biases) in one matmul.
    xg = jnp.dot(x_cols, wx, preferred_element_type=jnp.float32) + b_all

    # Fused z | r gates.
    zr = jax.nn.sigmoid(
        jnp.dot(h_cols, whzr, preferred_element_type=jnp.float32) + xg[:, :2 * Ch])
    z = zr[:, :Ch].reshape(h.shape)
    r = zr[:, Ch:].reshape(h.shape)

    # q gate: h-part of the im2col is rebuilt from r*h (kept in registers).
    rh_cols = _im2col(r * h, conv_axis, rows)
    q = jnp.tanh(
        jnp.dot(rh_cols, whq, preferred_element_type=jnp.float32) + xg[:, 2 * Ch:])
    q = q.reshape(h.shape)

    return (1.0 - z) * h + z * q


def _make_gru_kernel(conv_axis):
    def kernel(h_ref, x_ref, wx_ref, whzr_ref, whq_ref, b_ref, out_ref):
        out_ref[...] = _gru_cell(h_ref[...], x_ref[...], wx_ref[...],
                                 whzr_ref[...], whq_ref[...], b_ref[...],
                                 conv_axis)
    return kernel


# --------------------------------------------------------------------------- #
# Block-size selection
# --------------------------------------------------------------------------- #
def _divisors(n):
    return [d for d in range(1, n + 1) if n % d == 0]


def _pick_rows_block(n_rows, row_len, max_rows=512):
    """How many length-`row_len` rows per grid step (MXU LHS rows <= max_rows)."""
    feas = [d for d in _divisors(n_rows) if d * row_len <= max_rows]
    return max(feas) if feas else 1


def _pick_cols_block(width, height, max_rows=512):
    """Second-minor block dim: multiple of 8 or the full width."""
    cands = [d for d in _divisors(width) if d == width or d % 8 == 0]
    feas = [d for d in cands if d * height <= max_rows]
    return max(feas) if feas else min(cands)


# --------------------------------------------------------------------------- #
# Stage wrappers (pallas_call)
# --------------------------------------------------------------------------- #
def gru_stage_rows(h_rows, x_rows, wx, whzr, whq, b_all):
    """Stage 1: (1,5) conv along W.  h_rows: (N, W, Ch), x_rows: (N, W, Cx)."""
    N, L, Ch = h_rows.shape
    Cx = x_rows.shape[-1]
    nb = _pick_rows_block(N, L)
    kernel = _make_gru_kernel(conv_axis=1)
    return pl.pallas_call(
        kernel,
        out_shape=jax.ShapeDtypeStruct((N, L, Ch), jnp.float32),
        grid=(N // nb,),
        in_specs=[
            pl.BlockSpec((nb, L, Ch), lambda i: (i, 0, 0)),
            pl.BlockSpec((nb, L, Cx), lambda i: (i, 0, 0)),
            pl.BlockSpec(wx.shape, lambda i: (0, 0)),
            pl.BlockSpec(whzr.shape, lambda i: (0, 0)),
            pl.BlockSpec(whq.shape, lambda i: (0, 0)),
            pl.BlockSpec(b_all.shape, lambda i: (0, 0)),
        ],
        out_specs=pl.BlockSpec((nb, L, Ch), lambda i: (i, 0, 0)),
        compiler_params=pltpu.CompilerParams(dimension_semantics=("parallel",)),
    )(h_rows, x_rows, wx, whzr, whq, b_all)


def gru_stage_cols(h_img, x_img, wx, whzr, whq, b_all):
    """Stage 2: (5,1) conv along H, directly on NHWC blocks (no transposes)."""
    B, H, W, Ch = h_img.shape
    Cx = x_img.shape[-1]
    wb = _pick_cols_block(W, H)
    kernel = _make_gru_kernel(conv_axis=0)
    return pl.pallas_call(
        kernel,
        out_shape=jax.ShapeDtypeStruct((B, H, W, Ch), jnp.float32),
        grid=(B, W // wb),
        in_specs=[
            pl.BlockSpec((None, H, wb, Ch), lambda b, j: (b, 0, j, 0)),
            pl.BlockSpec((None, H, wb, Cx), lambda b, j: (b, 0, j, 0)),
            pl.BlockSpec(wx.shape, lambda b, j: (0, 0)),
            pl.BlockSpec(whzr.shape, lambda b, j: (0, 0)),
            pl.BlockSpec(whq.shape, lambda b, j: (0, 0)),
            pl.BlockSpec(b_all.shape, lambda b, j: (0, 0)),
        ],
        out_specs=pl.BlockSpec((None, H, wb, Ch), lambda b, j: (b, 0, j, 0)),
        compiler_params=pltpu.CompilerParams(
            dimension_semantics=("parallel", "parallel")),
    )(h_img, x_img, wx, whzr, whq, b_all)


# --------------------------------------------------------------------------- #
# Weight packing (torch Conv2d layout -> im2col matmul slabs)
# --------------------------------------------------------------------------- #
def pack_stage(params, hidden_dim, names, horizontal):
    """torch (O, I, kh, kw) conv weights -> matmul slabs for one stage.

    Returns:
      wx_all (5*Cx, 3*Ch): x-part of [z | r | q]
      wh_zr  (5*Ch, 2*Ch): h-part of [z | r]
      wh_q   (5*Ch,   Ch): h-part of q (applied to r*h)
      b_all  (1,    3*Ch): [bz | br | bq]
    Rows are tap-major then channel, matching the in-kernel im2col order."""
    wxs, whs, bs = [], [], []
    for wn, bn in names:                                  # order: z, r, q
        w = params[wn]
        if horizontal:                                    # (1,5): taps along W
            wk = jnp.transpose(w[:, :, 0, :], (2, 1, 0))  # (5, I, O)
        else:                                             # (5,1): taps along H
            wk = jnp.transpose(w[:, :, :, 0], (2, 1, 0))  # (5, I, O)
        out_dim = wk.shape[-1]
        whs.append(wk[:, :hidden_dim, :].reshape(TAPS * hidden_dim, out_dim))
        wxs.append(wk[:, hidden_dim:, :].reshape(-1, out_dim))
        bs.append(params[bn])
    wx_all = jnp.concatenate(wxs, axis=1)                 # (5*Cx, 3*Ch)
    wh_zr = jnp.concatenate(whs[:2], axis=1)              # (5*Ch, 2*Ch)
    wh_q = whs[2]                                         # (5*Ch,   Ch)
    b_all = jnp.concatenate(bs)[None, :]                  # (1,    3*Ch)
    return wx_all, wh_zr, wh_q, b_all


# --------------------------------------------------------------------------- #
# Full forward
# --------------------------------------------------------------------------- #
def sep_conv_gru_pallas(h_nchw, x_nchw, params, *, hidden_dim):
    B, Ch, H, W = h_nchw.shape
    Cx = x_nchw.shape[1]
    h = jnp.transpose(h_nchw, (0, 2, 3, 1))               # NHWC
    x = jnp.transpose(x_nchw, (0, 2, 3, 1))

    wx1, whzr1, whq1, b1 = pack_stage(
        params, hidden_dim, [('wz1', 'bz1'), ('wr1', 'br1'), ('wq1', 'bq1')], True)
    wx2, whzr2, whq2, b2 = pack_stage(
        params, hidden_dim, [('wz2', 'bz2'), ('wr2', 'br2'), ('wq2', 'bq2')], False)

    # Stage 1: (1,5) conv along W.  (B,H,W,C)->(B*H,W,C) is a free reshape.
    h1 = gru_stage_rows(h.reshape(B * H, W, Ch), x.reshape(B * H, W, Cx),
                        wx1, whzr1, whq1, b1)
    h1 = h1.reshape(B, H, W, Ch)

    # Stage 2: (5,1) conv along H, directly on NHWC blocks.
    h2 = gru_stage_cols(h1, x, wx2, whzr2, whq2, b2)

    return jnp.transpose(h2, (0, 3, 1, 2))                # back to NCHW


# --------------------------------------------------------------------------- #
# Parameters + pure-JAX reference
# --------------------------------------------------------------------------- #
def init_params(key, hidden_dim, input_dim):
    """Deterministic synthetic init; torch Conv2d layout (O, I, kh, kw)."""
    cin = hidden_dim + input_dim
    ks = jax.random.split(key, 12)

    def w(k, shape, s=0.05):
        return (s * jax.random.normal(k, shape)).astype(jnp.float32)

    p = {}
    p['wz1'], p['bz1'] = w(ks[0], (hidden_dim, cin, 1, 5)), w(ks[1], (hidden_dim,), 0.1)
    p['wr1'], p['br1'] = w(ks[2], (hidden_dim, cin, 1, 5)), w(ks[3], (hidden_dim,), 0.1)
    p['wq1'], p['bq1'] = w(ks[4], (hidden_dim, cin, 1, 5)), w(ks[5], (hidden_dim,), 0.1)
    p['wz2'], p['bz2'] = w(ks[6], (hidden_dim, cin, 5, 1)), w(ks[7], (hidden_dim,), 0.1)
    p['wr2'], p['br2'] = w(ks[8], (hidden_dim, cin, 5, 1)), w(ks[9], (hidden_dim,), 0.1)
    p['wq2'], p['bq2'] = w(ks[10], (hidden_dim, cin, 5, 1)), w(ks[11], (hidden_dim,), 0.1)
    return p


def sep_conv_gru_ref(h, x, p):
    """Pure-JAX reference matching the torch forward (NCHW)."""
    def conv(inp, w, b, pad):
        out = lax.conv_general_dilated(
            inp, w, (1, 1), pad,
            dimension_numbers=('NCHW', 'OIHW', 'NCHW'),
            precision=lax.Precision.HIGHEST)
        return out + b[None, :, None, None]

    padW = ((0, 0), (2, 2))
    padH = ((2, 2), (0, 0))
    hx = jnp.concatenate([h, x], axis=1)
    z = jax.nn.sigmoid(conv(hx, p['wz1'], p['bz1'], padW))
    r = jax.nn.sigmoid(conv(hx, p['wr1'], p['br1'], padW))
    q = jnp.tanh(conv(jnp.concatenate([r * h, x], axis=1), p['wq1'], p['bq1'], padW))
    h = (1 - z) * h + z * q
    hx = jnp.concatenate([h, x], axis=1)
    z = jax.nn.sigmoid(conv(hx, p['wz2'], p['bz2'], padH))
    r = jax.nn.sigmoid(conv(hx, p['wr2'], p['br2'], padH))
    q = jnp.tanh(conv(jnp.concatenate([r * h, x], axis=1), p['wq2'], p['bq2'], padH))
    h = (1 - z) * h + z * q
    return h


if __name__ == "__main__":
    hidden_dim, input_dim = 32, 64
    B, H, W = 2, 8, 16

    key = jax.random.PRNGKey(0)
    kh, kx, kp = jax.random.split(key, 3)
    h0 = jnp.tanh(jax.random.normal(kh, (B, hidden_dim, H, W), dtype=jnp.float32))
    x0 = jax.random.normal(kx, (B, input_dim, H, W), dtype=jnp.float32)
    params = init_params(kp, hidden_dim, input_dim)

    fwd = jax.jit(functools.partial(sep_conv_gru_pallas, hidden_dim=hidden_dim))
    out = jax.block_until_ready(fwd(h0, x0, params))

    ref = sep_conv_gru_ref(h0, x0, params)
    assert out.shape == ref.shape == (B, hidden_dim, H, W)
    err = float(jnp.max(jnp.abs(out - ref)))
    if err > 2e-3:
        raise AssertionError(f"Pallas output mismatch vs reference, max abs err = {err}")
    print("KERNEL_OK")
</pallas_src>

<mosaic_0001>
module attributes {stable_mosaic.version = 11 : i64} {
  func.func @kernel(%arg0: i32, %arg1: i32, %arg2: memref<1x8x16x32xf32, #tpu.memory_space<vmem>>, %arg3: memref<1x8x16x64xf32, #tpu.memory_space<vmem>>, %arg4: memref<320x96xf32, #tpu.memory_space<vmem>>, %arg5: memref<160x64xf32, #tpu.memory_space<vmem>>, %arg6: memref<160x32xf32, #tpu.memory_space<vmem>>, %arg7: memref<1x96xf32, #tpu.memory_space<vmem>>, %arg8: memref<1x8x16x32xf32, #tpu.memory_space<vmem>>) attributes {dimension_semantics = [#tpu.dimension_semantics<parallel>, #tpu.dimension_semantics<parallel>], iteration_bounds = array<i64: 2, 1>, scalar_prefetch = 0 : i64, scratch_operands = 0 : i64, tpu.core_type = #tpu.core_type<tc>, window_params = [{transform_indices = @transform_0, window_bounds = array<i64: 1, 8, 16, 32>}, {transform_indices = @transform_1, window_bounds = array<i64: 1, 8, 16, 64>}, {pipeline_mode = #tpu.pipeline_mode<synchronous>, transform_indices = @transform_2, window_bounds = array<i64: 320, 96>}, {pipeline_mode = #tpu.pipeline_mode<synchronous>, transform_indices = @transform_3, window_bounds = array<i64: 160, 64>}, {pipeline_mode = #tpu.pipeline_mode<synchronous>, transform_indices = @transform_4, window_bounds = array<i64: 160, 32>}, {pipeline_mode = #tpu.pipeline_mode<synchronous>, transform_indices = @transform_5, window_bounds = array<i64: 1, 96>}, {transform_indices = @transform_6, window_bounds = array<i64: 1, 8, 16, 32>}]} {
    %c0 = arith.constant 0 : index
    %c0_0 = arith.constant 0 : index
    %c0_1 = arith.constant 0 : index
    %c0_2 = arith.constant 0 : index
    %0 = vector.load %arg2[%c0, %c0_0, %c0_1, %c0_2] : memref<1x8x16x32xf32, #tpu.memory_space<vmem>>, vector<1x8x16x32xf32>
    %1 = vector.shape_cast %0 : vector<1x8x16x32xf32> to vector<8x16x32xf32>
    %c0_3 = arith.constant 0 : index
    %c0_4 = arith.constant 0 : index
    %c0_5 = arith.constant 0 : index
    %c0_6 = arith.constant 0 : index
    %2 = vector.load %arg3[%c0_3, %c0_4, %c0_5, %c0_6] : memref<1x8x16x64xf32, #tpu.memory_space<vmem>>, vector<1x8x16x64xf32>
    %3 = vector.shape_cast %2 : vector<1x8x16x64xf32> to vector<8x16x64xf32>
    %c0_7 = arith.constant 0 : index
    %c0_8 = arith.constant 0 : index
    %4 = vector.load %arg4[%c0_7, %c0_8] : memref<320x96xf32, #tpu.memory_space<vmem>>, vector<320x96xf32>
    %c0_9 = arith.constant 0 : index
    %c0_10 = arith.constant 0 : index
    %5 = vector.load %arg5[%c0_9, %c0_10] : memref<160x64xf32, #tpu.memory_space<vmem>>, vector<160x64xf32>
    %c0_11 = arith.constant 0 : index
    %c0_12 = arith.constant 0 : index
    %6 = vector.load %arg6[%c0_11, %c0_12] : memref<160x32xf32, #tpu.memory_space<vmem>>, vector<160x32xf32>
    %c0_13 = arith.constant 0 : index
    %c0_14 = arith.constant 0 : index
    %7 = vector.load %arg7[%c0_13, %c0_14] : memref<1x96xf32, #tpu.memory_space<vmem>>, vector<1x96xf32>
    %cst = arith.constant 0.000000e+00 : f32
    %8 = vector.broadcast %cst : f32 to vector<2x16x64xf32>
    %9 = tpu.concatenate %8, %3, %8 in 0 : vector<2x16x64xf32>, vector<8x16x64xf32>, vector<2x16x64xf32> -> vector<12x16x64xf32>
    %10 = vector.extract_strided_slice %9 {offsets = [0, 0, 0], sizes = [8, 16, 64], strides = [1, 1, 1]} : vector<12x16x64xf32> to vector<8x16x64xf32>
    %11 = vector.extract_strided_slice %9 {offsets = [1, 0, 0], sizes = [8, 16, 64], strides = [1, 1, 1]} : vector<12x16x64xf32> to vector<8x16x64xf32>
    %12 = vector.extract_strided_slice %9 {offsets = [2, 0, 0], sizes = [8, 16, 64], strides = [1, 1, 1]} : vector<12x16x64xf32> to vector<8x16x64xf32>
    %13 = vector.extract_strided_slice %9 {offsets = [3, 0, 0], sizes = [8, 16, 64], strides = [1, 1, 1]} : vector<12x16x64xf32> to vector<8x16x64xf32>
    %14 = vector.extract_strided_slice %9 {offsets = [4, 0, 0], sizes = [8, 16, 64], strides = [1, 1, 1]} : vector<12x16x64xf32> to vector<8x16x64xf32>
    %15 = tpu.concatenate %10, %11, %12, %13, %14 in 2 : vector<8x16x64xf32>, vector<8x16x64xf32>, vector<8x16x64xf32>, vector<8x16x64xf32>, vector<8x16x64xf32> -> vector<8x16x320xf32>
    %16 = vector.shape_cast %15 : vector<8x16x320xf32> to vector<128x320xf32>
    %cst_15 = arith.constant 0.000000e+00 : f32
    %17 = vector.broadcast %cst_15 : f32 to vector<2x16x32xf32>
    %18 = tpu.concatenate %17, %1, %17 in 0 : vector<2x16x32xf32>, vector<8x16x32xf32>, vector<2x16x32xf32> -> vector<12x16x32xf32>
    %19 = vector.extract_strided_slice %18 {offsets = [0, 0, 0], sizes = [8, 16, 32], strides = [1, 1, 1]} : vector<12x16x32xf32> to vector<8x16x32xf32>
    %20 = vector.extract_strided_slice %18 {offsets = [1, 0, 0], sizes = [8, 16, 32], strides = [1, 1, 1]} : vector<12x16x32xf32> to vector<8x16x32xf32>
    %21 = vector.extract_strided_slice %18 {offsets = [2, 0, 0], sizes = [8, 16, 32], strides = [1, 1, 1]} : vector<12x16x32xf32> to vector<8x16x32xf32>
    %22 = vector.extract_strided_slice %18 {offsets = [3, 0, 0], sizes = [8, 16, 32], strides = [1, 1, 1]} : vector<12x16x32xf32> to vector<8x16x32xf32>
    %23 = vector.extract_strided_slice %18 {offsets = [4, 0, 0], sizes = [8, 16, 32], strides = [1, 1, 1]} : vector<12x16x32xf32> to vector<8x16x32xf32>
    %24 = tpu.concatenate %19, %20, %21, %22, %23 in 2 : vector<8x16x32xf32>, vector<8x16x32xf32>, vector<8x16x32xf32>, vector<8x16x32xf32>, vector<8x16x32xf32> -> vector<8x16x160xf32>
    %25 = vector.shape_cast %24 : vector<8x16x160xf32> to vector<128x160xf32>
    %cst_16 = arith.constant dense<0.000000e+00> : vector<128x96xf32>
    %26 = tpu.matmul %16, %4, %cst_16 {dimension_numbers = #tpu.dot_dimension_numbers<[1], [0], [0], [1], [0, 0, 1, 1], [], []>} : vector<128x320xf32>, vector<320x96xf32>, vector<128x96xf32> -> vector<128x96xf32>
    %27 = vector.broadcast %7 : vector<1x96xf32> to vector<128x96xf32>
    %28 = arith.addf %26, %27 : vector<128x96xf32>
    %cst_17 = arith.constant dense<0.000000e+00> : vector<128x64xf32>
    %29 = tpu.matmul %25, %5, %cst_17 {dimension_numbers = #tpu.dot_dimension_numbers<[1], [0], [0], [1], [0, 0, 1, 1], [], []>} : vector<128x160xf32>, vector<160x64xf32>, vector<128x64xf32> -> vector<128x64xf32>
    %30 = vector.extract_strided_slice %28 {offsets = [0, 0], sizes = [128, 64], strides = [1, 1]} : vector<128x96xf32> to vector<128x64xf32>
    %31 = arith.addf %29, %30 : vector<128x64xf32>
    %32 = arith.negf %31 : vector<128x64xf32>
    %33 = math.exp %32 : vector<128x64xf32>
    %cst_18 = arith.constant 1.000000e+00 : f32
    %34 = vector.broadcast %cst_18 : f32 to vector<128x64xf32>
    %35 = arith.addf %34, %33 : vector<128x64xf32>
    %36 = arith.divf %34, %35 : vector<128x64xf32>
    %37 = vector.extract_strided_slice %36 {offsets = [0, 0], sizes = [128, 32], strides = [1, 1]} : vector<128x64xf32> to vector<128x32xf32>
    %38 = vector.shape_cast %37 : vector<128x32xf32> to vector<8x16x32xf32>
    %39 = vector.extract_strided_slice %36 {offsets = [0, 32], sizes = [128, 32], strides = [1, 1]} : vector<128x64xf32> to vector<128x32xf32>
    %40 = vector.shape_cast %39 : vector<128x32xf32> to vector<8x16x32xf32>
    %41 = arith.mulf %40, %1 : vector<8x16x32xf32>
    %cst_19 = arith.constant 0.000000e+00 : f32
    %42 = vector.broadcast %cst_19 : f32 to vector<2x16x32xf32>
    %43 = tpu.concatenate %42, %41, %42 in 0 : vector<2x16x32xf32>, vector<8x16x32xf32>, vector<2x16x32xf32> -> vector<12x16x32xf32>
    %44 = vector.extract_strided_slice %43 {offsets = [0, 0, 0], sizes = [8, 16, 32], strides = [1, 1, 1]} : vector<12x16x32xf32> to vector<8x16x32xf32>
    %45 = vector.extract_strided_slice %43 {offsets = [1, 0, 0], sizes = [8, 16, 32], strides = [1, 1, 1]} : vector<12x16x32xf32> to vector<8x16x32xf32>
    %46 = vector.extract_strided_slice %43 {offsets = [2, 0, 0], sizes = [8, 16, 32], strides = [1, 1, 1]} : vector<12x16x32xf32> to vector<8x16x32xf32>
    %47 = vector.extract_strided_slice %43 {offsets = [3, 0, 0], sizes = [8, 16, 32], strides = [1, 1, 1]} : vector<12x16x32xf32> to vector<8x16x32xf32>
    %48 = vector.extract_strided_slice %43 {offsets = [4, 0, 0], sizes = [8, 16, 32], strides = [1, 1, 1]} : vector<12x16x32xf32> to vector<8x16x32xf32>
    %49 = tpu.concatenate %44, %45, %46, %47, %48 in 2 : vector<8x16x32xf32>, vector<8x16x32xf32>, vector<8x16x32xf32>, vector<8x16x32xf32>, vector<8x16x32xf32> -> vector<8x16x160xf32>
    %50 = vector.shape_cast %49 : vector<8x16x160xf32> to vector<128x160xf32>
    %cst_20 = arith.constant dense<0.000000e+00> : vector<128x32xf32>
    %51 = tpu.matmul %50, %6, %cst_20 {dimension_numbers = #tpu.dot_dimension_numbers<[1], [0], [0], [1], [0, 0, 1, 1], [], []>} : vector<128x160xf32>, vector<160x32xf32>, vector<128x32xf32> -> vector<128x32xf32>
    %52 = vector.extract_strided_slice %28 {offsets = [0, 64], sizes = [128, 32], strides = [1, 1]} : vector<128x96xf32> to vector<128x32xf32>
    %53 = arith.addf %51, %52 : vector<128x32xf32>
    %54 = math.tanh %53 : vector<128x32xf32>
    %55 = vector.shape_cast %54 : vector<128x32xf32> to vector<8x16x32xf32>
    %cst_21 = arith.constant 1.000000e+00 : f32
    %56 = vector.broadcast %cst_21 : f32 to vector<8x16x32xf32>
    %57 = arith.subf %56, %38 : vector<8x16x32xf32>
    %58 = arith.mulf %57, %1 : vector<8x16x32xf32>
    %59 = arith.mulf %38, %55 : vector<8x16x32xf32>
    %60 = arith.addf %58, %59 : vector<8x16x32xf32>
    %c0_22 = arith.constant 0 : index
    %c0_23 = arith.constant 0 : index
    %c0_24 = arith.constant 0 : index
    %c0_25 = arith.constant 0 : index
    %61 = vector.load %arg8[%c0_22, %c0_23, %c0_24, %c0_25] : memref<1x8x16x32xf32, #tpu.memory_space<vmem>>, vector<1x8x16x32xf32>
    %62 = vector.shape_cast %61 : vector<1x8x16x32xf32> to vector<8x16x32xf32>
    %63 = vector.shape_cast %60 : vector<8x16x32xf32> to vector<1x8x16x32xf32>
    tpu.vector_store %arg8[%c0_22, %c0_23, %c0_24, %c0_25], %63 {strides = array<i32>} : memref<1x8x16x32xf32, #tpu.memory_space<vmem>>, vector<1x8x16x32xf32>,
    return
  }
  func.func @transform_0(%arg0: i32, %arg1: i32) -> (i32, i32, i32, i32) {
    %c0_i32 = arith.constant 0 : i32
    %c0_i32_0 = arith.constant 0 : i32
    %c0_i32_1 = arith.constant 0 : i32
    return %arg0, %c0_i32, %arg1, %c0_i32_0 : i32, i32, i32, i32
  }
  func.func @transform_1(%arg0: i32, %arg1: i32) -> (i32, i32, i32, i32) {
    %c0_i32 = arith.constant 0 : i32
    %c0_i32_0 = arith.constant 0 : i32
    %c0_i32_1 = arith.constant 0 : i32
    return %arg0, %c0_i32, %arg1, %c0_i32_0 : i32, i32, i32, i32
  }
  func.func @transform_2(%arg0: i32, %arg1: i32) -> (i32, i32) {
    %c0_i32 = arith.constant 0 : i32
    %c0_i32_0 = arith.constant 0 : i32
    %c0_i32_1 = arith.constant 0 : i32
    return %c0_i32, %c0_i32_0 : i32, i32
  }
  func.func @transform_3(%arg0: i32, %arg1: i32) -> (i32, i32) {
    %c0_i32 = arith.constant 0 : i32
    %c0_i32_0 = arith.constant 0 : i32
    %c0_i32_1 = arith.constant 0 : i32
    return %c0_i32, %c0_i32_0 : i32, i32
  }
  func.func @transform_4(%arg0: i32, %arg1: i32) -> (i32, i32) {
    %c0_i32 = arith.constant 0 : i32
    %c0_i32_0 = arith.constant 0 : i32
    %c0_i32_1 = arith.constant 0 : i32
    return %c0_i32, %c0_i32_0 : i32, i32
  }
  func.func @transform_5(%arg0: i32, %arg1: i32) -> (i32, i32) {
    %c0_i32 = arith.constant 0 : i32
    %c0_i32_0 = arith.constant 0 : i32
    %c0_i32_1 = arith.constant 0 : i32
    return %c0_i32, %c0_i32_0 : i32, i32
  }
  func.func @transform_6(%arg0: i32, %arg1: i32) -> (i32, i32, i32, i32) {
    %c0_i32 = arith.constant 0 : i32
    %c0_i32_0 = arith.constant 0 : i32
    %c0_i32_1 = arith.constant 0 : i32
    return %arg0, %c0_i32, %arg1, %c0_i32_0 : i32, i32, i32, i32
  }
}

module attributes {stable_mosaic.version = 11 : i64} {
  func.func @kernel(%arg0: i32, %arg1: memref<16x16x32xf32, #tpu.memory_space<vmem>>, %arg2: memref<16x16x64xf32, #tpu.memory_space<vmem>>, %arg3: memref<320x96xf32, #tpu.memory_space<vmem>>, %arg4: memref<160x64xf32, #tpu.memory_space<vmem>>, %arg5: memref<160x32xf32, #tpu.memory_space<vmem>>, %arg6: memref<1x96xf32, #tpu.memory_space<vmem>>, %arg7: memref<16x16x32xf32, #tpu.memory_space<vmem>>) attributes {dimension_semantics = [#tpu.dimension_semantics<parallel>], iteration_bounds = array<i64: 1>, scalar_prefetch = 0 : i64, scratch_operands = 0 : i64, tpu.core_type = #tpu.core_type<tc>, window_params = [{transform_indices = @transform_0, window_bounds = array<i64: 16, 16, 32>}, {transform_indices = @transform_1, window_bounds = array<i64: 16, 16, 64>}, {pipeline_mode = #tpu.pipeline_mode<synchronous>, transform_indices = @transform_2, window_bounds = array<i64: 320, 96>}, {pipeline_mode = #tpu.pipeline_mode<synchronous>, transform_indices = @transform_3, window_bounds = array<i64: 160, 64>}, {pipeline_mode = #tpu.pipeline_mode<synchronous>, transform_indices = @transform_4, window_bounds = array<i64: 160, 32>}, {pipeline_mode = #tpu.pipeline_mode<synchronous>, transform_indices = @transform_5, window_bounds = array<i64: 1, 96>}, {transform_indices = @transform_6, window_bounds = array<i64: 16, 16, 32>}]} {
    %c0 = arith.constant 0 : index
    %c0_0 = arith.constant 0 : index
    %c0_1 = arith.constant 0 : index
    %0 = vector.load %arg1[%c0, %c0_0, %c0_1] : memref<16x16x32xf32, #tpu.memory_space<vmem>>, vector<16x16x32xf32>
    %c0_2 = arith.constant 0 : index
    %c0_3 = arith.constant 0 : index
    %c0_4 = arith.constant 0 : index
    %1 = vector.load %arg2[%c0_2, %c0_3, %c0_4] : memref<16x16x64xf32, #tpu.memory_space<vmem>>, vector<16x16x64xf32>
    %c0_5 = arith.constant 0 : index
    %c0_6 = arith.constant 0 : index
    %2 = vector.load %arg3[%c0_5, %c0_6] : memref<320x96xf32, #tpu.memory_space<vmem>>, vector<320x96xf32>
    %c0_7 = arith.constant 0 : index
    %c0_8 = arith.constant 0 : index
    %3 = vector.load %arg4[%c0_7, %c0_8] : memref<160x64xf32, #tpu.memory_space<vmem>>, vector<160x64xf32>
    %c0_9 = arith.constant 0 : index
    %c0_10 = arith.constant 0 : index
    %4 = vector.load %arg5[%c0_9, %c0_10] : memref<160x32xf32, #tpu.memory_space<vmem>>, vector<160x32xf32>
    %c0_11 = arith.constant 0 : index
    %c0_12 = arith.constant 0 : index
    %5 = vector.load %arg6[%c0_11, %c0_12] : memref<1x96xf32, #tpu.memory_space<vmem>>, vector<1x96xf32>
    %cst = arith.constant 0.000000e+00 : f32
    %6 = vector.broadcast %cst : f32 to vector<16x2x64xf32>
    %7 = tpu.concatenate %6, %1, %6 in 1 : vector<16x2x64xf32>, vector<16x16x64xf32>, vector<16x2x64xf32> -> vector<16x20x64xf32>
    %8 = vector.extract_strided_slice %7 {offsets = [0, 0, 0], sizes = [16, 16, 64], strides = [1, 1, 1]} : vector<16x20x64xf32> to vector<16x16x64xf32>
    %9 = vector.extract_strided_slice %7 {offsets = [0, 1, 0], sizes = [16, 16, 64], strides = [1, 1, 1]} : vector<16x20x64xf32> to vector<16x16x64xf32>
    %10 = vector.extract_strided_slice %7 {offsets = [0, 2, 0], sizes = [16, 16, 64], strides = [1, 1, 1]} : vector<16x20x64xf32> to vector<16x16x64xf32>
    %11 = vector.extract_strided_slice %7 {offsets = [0, 3, 0], sizes = [16, 16, 64], strides = [1, 1, 1]} : vector<16x20x64xf32> to vector<16x16x64xf32>
    %12 = vector.extract_strided_slice %7 {offsets = [0, 4, 0], sizes = [16, 16, 64], strides = [1, 1, 1]} : vector<16x20x64xf32> to vector<16x16x64xf32>
    %13 = tpu.concatenate %8, %9, %10, %11, %12 in 2 : vector<16x16x64xf32>, vector<16x16x64xf32>, vector<16x16x64xf32>, vector<16x16x64xf32>, vector<16x16x64xf32> -> vector<16x16x320xf32>
    %14 = vector.shape_cast %13 : vector<16x16x320xf32> to vector<256x320xf32>
    %cst_13 = arith.constant 0.000000e+00 : f32
    %15 = vector.broadcast %cst_13 : f32 to vector<16x2x32xf32>
    %16 = tpu.concatenate %15, %0, %15 in 1 : vector<16x2x32xf32>, vector<16x16x32xf32>, vector<16x2x32xf32> -> vector<16x20x32xf32>
    %17 = vector.extract_strided_slice %16 {offsets = [0, 0, 0], sizes = [16, 16, 32], strides = [1, 1, 1]} : vector<16x20x32xf32> to vector<16x16x32xf32>
    %18 = vector.extract_strided_slice %16 {offsets = [0, 1, 0], sizes = [16, 16, 32], strides = [1, 1, 1]} : vector<16x20x32xf32> to vector<16x16x32xf32>
    %19 = vector.extract_strided_slice %16 {offsets = [0, 2, 0], sizes = [16, 16, 32], strides = [1, 1, 1]} : vector<16x20x32xf32> to vector<16x16x32xf32>
    %20 = vector.extract_strided_slice %16 {offsets = [0, 3, 0], sizes = [16, 16, 32], strides = [1, 1, 1]} : vector<16x20x32xf32> to vector<16x16x32xf32>
    %21 = vector.extract_strided_slice %16 {offsets = [0, 4, 0], sizes = [16, 16, 32], strides = [1, 1, 1]} : vector<16x20x32xf32> to vector<16x16x32xf32>
    %22 = tpu.concatenate %17, %18, %19, %20, %21 in 2 : vector<16x16x32xf32>, vector<16x16x32xf32>, vector<16x16x32xf32>, vector<16x16x32xf32>, vector<16x16x32xf32> -> vector<16x16x160xf32>
    %23 = vector.shape_cast %22 : vector<16x16x160xf32> to vector<256x160xf32>
    %cst_14 = arith.constant dense<0.000000e+00> : vector<256x96xf32>
    %24 = tpu.matmul %14, %2, %cst_14 {dimension_numbers = #tpu.dot_dimension_numbers<[1], [0], [0], [1], [0, 0, 1, 1], [], []>} : vector<256x320xf32>, vector<320x96xf32>, vector<256x96xf32> -> vector<256x96xf32>
    %25 = vector.broadcast %5 : vector<1x96xf32> to vector<256x96xf32>
    %26 = arith.addf %24, %25 : vector<256x96xf32>
    %cst_15 = arith.constant dense<0.000000e+00> : vector<256x64xf32>
    %27 = tpu.matmul %23, %3, %cst_15 {dimension_numbers = #tpu.dot_dimension_numbers<[1], [0], [0], [1], [0, 0, 1, 1], [], []>} : vector<256x160xf32>, vector<160x64xf32>, vector<256x64xf32> -> vector<256x64xf32>
    %28 = vector.extract_strided_slice %26 {offsets = [0, 0], sizes = [256, 64], strides = [1, 1]} : vector<256x96xf32> to vector<256x64xf32>
    %29 = arith.addf %27, %28 : vector<256x64xf32>
    %30 = arith.negf %29 : vector<256x64xf32>
    %31 = math.exp %30 : vector<256x64xf32>
    %cst_16 = arith.constant 1.000000e+00 : f32
    %32 = vector.broadcast %cst_16 : f32 to vector<256x64xf32>
    %33 = arith.addf %32, %31 : vector<256x64xf32>
    %34 = arith.divf %32, %33 : vector<256x64xf32>
    %35 = vector.extract_strided_slice %34 {offsets = [0, 0], sizes = [256, 32], strides = [1, 1]} : vector<256x64xf32> to vector<256x32xf32>
    %36 = vector.shape_cast %35 : vector<256x32xf32> to vector<16x16x32xf32>
    %37 = vector.extract_strided_slice %34 {offsets = [0, 32], sizes = [256, 32], strides = [1, 1]} : vector<256x64xf32> to vector<256x32xf32>
    %38 = vector.shape_cast %37 : vector<256x32xf32> to vector<16x16x32xf32>
    %39 = arith.mulf %38, %0 : vector<16x16x32xf32>
    %cst_17 = arith.constant 0.000000e+00 : f32
    %40 = vector.broadcast %cst_17 : f32 to vector<16x2x32xf32>
    %41 = tpu.concatenate %40, %39, %40 in 1 : vector<16x2x32xf32>, vector<16x16x32xf32>, vector<16x2x32xf32> -> vector<16x20x32xf32>
    %42 = vector.extract_strided_slice %41 {offsets = [0, 0, 0], sizes = [16, 16, 32], strides = [1, 1, 1]} : vector<16x20x32xf32> to vector<16x16x32xf32>
    %43 = vector.extract_strided_slice %41 {offsets = [0, 1, 0], sizes = [16, 16, 32], strides = [1, 1, 1]} : vector<16x20x32xf32> to vector<16x16x32xf32>
    %44 = vector.extract_strided_slice %41 {offsets = [0, 2, 0], sizes = [16, 16, 32], strides = [1, 1, 1]} : vector<16x20x32xf32> to vector<16x16x32xf32>
    %45 = vector.extract_strided_slice %41 {offsets = [0, 3, 0], sizes = [16, 16, 32], strides = [1, 1, 1]} : vector<16x20x32xf32> to vector<16x16x32xf32>
    %46 = vector.extract_strided_slice %41 {offsets = [0, 4, 0], sizes = [16, 16, 32], strides = [1, 1, 1]} : vector<16x20x32xf32> to vector<16x16x32xf32>
    %47 = tpu.concatenate %42, %43, %44, %45, %46 in 2 : vector<16x16x32xf32>, vector<16x16x32xf32>, vector<16x16x32xf32>, vector<16x16x32xf32>, vector<16x16x32xf32> -> vector<16x16x160xf32>
    %48 = vector.shape_cast %47 : vector<16x16x160xf32> to vector<256x160xf32>
    %cst_18 = arith.constant dense<0.000000e+00> : vector<256x32xf32>
    %49 = tpu.matmul %48, %4, %cst_18 {dimension_numbers = #tpu.dot_dimension_numbers<[1], [0], [0], [1], [0, 0, 1, 1], [], []>} : vector<256x160xf32>, vector<160x32xf32>, vector<256x32xf32> -> vector<256x32xf32>
    %50 = vector.extract_strided_slice %26 {offsets = [0, 64], sizes = [256, 32], strides = [1, 1]} : vector<256x96xf32> to vector<256x32xf32>
    %51 = arith.addf %49, %50 : vector<256x32xf32>
    %52 = math.tanh %51 : vector<256x32xf32>
    %53 = vector.shape_cast %52 : vector<256x32xf32> to vector<16x16x32xf32>
    %cst_19 = arith.constant 1.000000e+00 : f32
    %54 = vector.broadcast %cst_19 : f32 to vector<16x16x32xf32>
    %55 = arith.subf %54, %36 : vector<16x16x32xf32>
    %56 = arith.mulf %55, %0 : vector<16x16x32xf32>
    %57 = arith.mulf %36, %53 : vector<16x16x32xf32>
    %58 = arith.addf %56, %57 : vector<16x16x32xf32>
    %c0_20 = arith.constant 0 : index
    %c0_21 = arith.constant 0 : index
    %c0_22 = arith.constant 0 : index
    %59 = vector.load %arg7[%c0_20, %c0_21, %c0_22] : memref<16x16x32xf32, #tpu.memory_space<vmem>>, vector<16x16x32xf32>
    tpu.vector_store %arg7[%c0_20, %c0_21, %c0_22], %58 {strides = array<i32>} : memref<16x16x32xf32, #tpu.memory_space<vmem>>, vector<16x16x32xf32>,
    return
  }
  func.func @transform_0(%arg0: i32) -> (i32, i32, i32) {
    %c0_i32 = arith.constant 0 : i32
    %c0_i32_0 = arith.constant 0 : i32
    %c0_i32_1 = arith.constant 0 : i32
    return %arg0, %c0_i32, %c0_i32_0 : i32, i32, i32
  }
  func.func @transform_1(%arg0: i32) -> (i32, i32, i32) {
    %c0_i32 = arith.constant 0 : i32
    %c0_i32_0 = arith.constant 0 : i32
    %c0_i32_1 = arith.constant 0 : i32
    return %arg0, %c0_i32, %c0_i32_0 : i32, i32, i32
  }
  func.func @transform_2(%arg0: i32) -> (i32, i32) {
    %c0_i32 = arith.constant 0 : i32
    %c0_i32_0 = arith.constant 0 : i32
    %c0_i32_1 = arith.constant 0 : i32
    return %c0_i32, %c0_i32_0 : i32, i32
  }
  func.func @transform_3(%arg0: i32) -> (i32, i32) {
    %c0_i32 = arith.constant 0 : i32
    %c0_i32_0 = arith.constant 0 : i32
    %c0_i32_1 = arith.constant 0 : i32
    return %c0_i32, %c0_i32_0 : i32, i32
  }
  func.func @transform_4(%arg0: i32) -> (i32, i32) {
    %c0_i32 = arith.constant 0 : i32
    %c0_i32_0 = arith.constant 0 : i32
    %c0_i32_1 = arith.constant 0 : i32
    return %c0_i32, %c0_i32_0 : i32, i32
  }
  func.func @transform_5(%arg0: i32) -> (i32, i32) {
    %c0_i32 = arith.constant 0 : i32
    %c0_i32_0 = arith.constant 0 : i32
    %c0_i32_1 = arith.constant 0 : i32
    return %c0_i32, %c0_i32_0 : i32, i32
  }
  func.func @transform_6(%arg0: i32) -> (i32, i32, i32) {
    %c0_i32 = arith.constant 0 : i32
    %c0_i32_0 = arith.constant 0 : i32
    %c0_i32_1 = arith.constant 0 : i32
    return %arg0, %c0_i32, %c0_i32_0 : i32, i32, i32
  }
}

</mosaic_0001>

<llo_original>
// kernel: sep_conv_gru_pallas.3
$region0: #{sep_conv_gru_pallas.3}
  #allocation0 [shape = 'u32[]', space=smem, size = 0x4, offset = 0x4, fixed_abs, tag = 'smem constant byte address 0x4 - core index']
  #allocation1 [shape = 'u32[144,128]{1,0:T(1,128)}', space=vmem, size = 0x12000, scoped, tag = 'internal scratch']
  %s0 = inlined_call_operand.vmem [shape: f32[2,8,16,32], index: 0, kind: input, shape index: {}]
  %s1 = inlined_call_operand.vmem [shape: f32[2,8,16,64], index: 1, kind: input, shape index: {}]
  %s2 = inlined_call_operand.vmem [shape: f32[320,96], index: 2, kind: input, shape index: {}]
  %s3 = inlined_call_operand.vmem [shape: f32[160,64], index: 3, kind: input, shape index: {}]
  %s4 = inlined_call_operand.vmem [shape: f32[160,32], index: 4, kind: input, shape index: {}]
  %s5 = inlined_call_operand.vmem [shape: f32[1,96], index: 5, kind: input, shape index: {}]
  %s6 = inlined_call_operand.hbm [shape: f32[2,8,16,32], index: 6, kind: output, shape index: {}]
  %s7 = sld [smem:[#allocation0]]
  $region57: #{sep_conv_gru_pallas.3} parent=0
    _
  %s9 = ssub.s32 1, %s7
  %s10 = scalar_select 0, %s9, %s7
  $region1: #{sep_conv_gru_pallas.3} parent=0
    #allocation2 [shape = 'u8[131072]{0}', space=vmem, size = 0x20000, scoped, tag = 'output window, operand 0']
    #allocation3 [shape = 's32[2]{0}', space=sflag, size = 0x8, scoped, tag = 'scoped memory for sep_conv_gru_pallas.3']
    %11 = vsyncpa [#allocation3], 0
    %s12 = scalar_lea.sflag [#allocation3], 1
    %13 = vsyncpa %s12, 0
    loop: start=0, step=1, limit=4
    $region2: #{sep_conv_gru_pallas.3} parent=1 // loop_pre_header
      _
    $region3: #{sep_conv_gru_pallas.3} parent=1 // loop_header
      %s15 = sphi 0, %s19
      %p16 = scmp.ge.s32.totalorder %s15, 4
      %s22 = sphi 0, %s34
      %s23 = sphi 0, %s30
      %s24 = sphi 0, %s22
      %s25 = sphi 0, %s23
      %s26 = sphi 0, %s24
      %s27 = sphi 0, %s25
      %s39 = sphi 0, %s41
      %s42 = sphi 0, %s39
      %s43 = sphi 0, %s42
      %s59 = sphi 0, %s43
      %s67 = sphi 0, %s69
      %s70 = sphi 0, %s67
      %s71 = sphi 0, %s70
      %s87 = sphi 0, %s71
      %s91 = sphi 0, %s91
      %s93 = sphi 0, %s91
      %s94 = sphi 0, %s93
      %s108 = sphi 0, %s94
      %s112 = sphi 0, %s112
      %s114 = sphi 0, %s112
      %s115 = sphi 0, %s114
      %s129 = sphi 0, %s115
      %s133 = sphi 0, %s133
      %s135 = sphi 0, %s133
      %s136 = sphi 0, %s135
      %s150 = sphi 0, %s136
      %s154 = sphi 0, %s154
      %s156 = sphi 0, %s154
      %s157 = sphi 0, %s156
      %s171 = sphi 0, %s157
      %s179 = sphi 0, %s181
      %s182 = sphi 0, %s179
      %s183 = sphi 0, %s182
      %s199 = sphi 0, %s183
    $region4: #{sep_conv_gru_pallas.3} parent=1 // loop_header_branch
      %18 = sbr.rel (%p16) target = $region8
    $region5: #{sep_conv_gru_pallas.3} parent=1 // loop_body
      %s20 = ssub.s32 %s15, 1
      %s21 = ssub.s32 %s15, 2
      %s28 = sadd.s32 1, %s23
      %p29 = scmp.ge.s32.totalorder %s28, 1
      %s30 = scalar_select %p29, 0, %s28
      %s31 = sadd.s32 1, %s22
      %s32 = scalar_select %p29, %s31, %s22
      %p33 = scmp.ge.s32.totalorder %s32, 2
      %s34 = scalar_select %p33, 0, %s32
      %s35 = ssub.s32 %s22, %s34
      %s36 = ssub.s32 %s23, %s30
      %s37 = sor.u32 %s35, %s36
      %p38 = scmp.eq.s32.totalorder %s37, 0
      %s40 = sadd.s32 %s39, 1
      %s41 = scalar_select %p38, %s39, %s40
      %p44 = pneg %p38
      %p45 = scmp.eq.s32.totalorder %s15, 1
      %p46 = por %p44, %p45
      %p47 = scmp.ne.s32.totalorder %s39, %s42
      %p48 = scmp.eq.s32.totalorder %s15, 0
      %p49 = por %p47, %p48
      %p50 = scmp.ne.s32.totalorder %s39, %s42
      %p51 = scmp.eq.s32.totalorder %s20, 1
      %p52 = por %p50, %p51
      %p53 = scmp.ne.s32.totalorder %s42, %s43
      %p54 = scmp.eq.s32.totalorder %s20, 0
      %p55 = por %p53, %p54
      %p56 = scmp.ne.s32.totalorder %s42, %s43
      %p57 = scmp.eq.s32.totalorder %s21, 1
      %p58 = por %p56, %p57
      %p60 = scmp.ne.s32.totalorder %s43, %s59
      %p61 = scmp.eq.s32.totalorder %s21, 0
      %p62 = por %p60, %p61
      %s63 = ssub.s32 %s22, %s34
      %s64 = ssub.s32 %s23, %s30
      %s65 = sor.u32 %s63, %s64
      %p66 = scmp.eq.s32.totalorder %s65, 0
      %s68 = sadd.s32 %s67, 1
      %s69 = scalar_select %p66, %s67, %s68
      %p72 = pneg %p66
      %p73 = scmp.eq.s32.totalorder %s15, 1
      %p74 = por %p72, %p73
      %p75 = scmp.ne.s32.totalorder %s67, %s70
      %p76 = scmp.eq.s32.totalorder %s15, 0
      %p77 = por %p75, %p76
      %p78 = scmp.ne.s32.totalorder %s67, %s70
      %p79 = scmp.eq.s32.totalorder %s20, 1
      %p80 = por %p78, %p79
      %p81 = scmp.ne.s32.totalorder %s70, %s71
      %p82 = scmp.eq.s32.totalorder %s20, 0
      %p83 = por %p81, %p82
      %p84 = scmp.ne.s32.totalorder %s70, %s71
      %p85 = scmp.eq.s32.totalorder %s21, 1
      %p86 = por %p84, %p85
      %p88 = scmp.ne.s32.totalorder %s71, %s87
      %p89 = scmp.eq.s32.totalorder %s21, 0
      %p90 = por %p88, %p89
      %s92 = sadd.s32 %s91, 1
      %p95 = scmp.eq.s32.totalorder %s15, 1
      %p96 = scmp.ne.s32.totalorder %s91, %s93
      %p97 = scmp.eq.s32.totalorder %s15, 0
      %p98 = por %p96, %p97
      %p99 = scmp.ne.s32.totalorder %s91, %s93
      %p100 = scmp.eq.s32.totalorder %s20, 1
      %p101 = por %p99, %p100
      %p102 = scmp.ne.s32.totalorder %s93, %s94
      %p103 = scmp.eq.s32.totalorder %s20, 0
      %p104 = por %p102, %p103
      %p105 = scmp.ne.s32.totalorder %s93, %s94
      %p106 = scmp.eq.s32.totalorder %s21, 1
      %p107 = por %p105, %p106
      %p109 = scmp.ne.s32.totalorder %s94, %s108
      %p110 = scmp.eq.s32.totalorder %s21, 0
      %p111 = por %p109, %p110
      %s113 = sadd.s32 %s112, 1
      %p116 = scmp.eq.s32.totalorder %s15, 1
      %p117 = scmp.ne.s32.totalorder %s112, %s114
      %p118 = scmp.eq.s32.totalorder %s15, 0
      %p119 = por %p117, %p118
      %p120 = scmp.ne.s32.totalorder %s112, %s114
      %p121 = scmp.eq.s32.totalorder %s20, 1
      %p122 = por %p120, %p121
      %p123 = scmp.ne.s32.totalorder %s114, %s115
      %p124 = scmp.eq.s32.totalorder %s20, 0
      %p125 = por %p123, %p124
      %p126 = scmp.ne.s32.totalorder %s114, %s115
      %p127 = scmp.eq.s32.totalorder %s21, 1
      %p128 = por %p126, %p127
      %p130 = scmp.ne.s32.totalorder %s115, %s129
      %p131 = scmp.eq.s32.totalorder %s21, 0
      %p132 = por %p130, %p131
      %s134 = sadd.s32 %s133, 1
      %p137 = scmp.eq.s32.totalorder %s15, 1
      %p138 = scmp.ne.s32.totalorder %s133, %s135
      %p139 = scmp.eq.s32.totalorder %s15, 0
      %p140 = por %p138, %p139
      %p141 = scmp.ne.s32.totalorder %s133, %s135
      %p142 = scmp.eq.s32.totalorder %s20, 1
      %p143 = por %p141, %p142
      %p144 = scmp.ne.s32.totalorder %s135, %s136
      %p145 = scmp.eq.s32.totalorder %s20, 0
      %p146 = por %p144, %p145
      %p147 = scmp.ne.s32.totalorder %s135, %s136
      %p148 = scmp.eq.s32.totalorder %s21, 1
      %p149 = por %p147, %p148
      %p151 = scmp.ne.s32.totalorder %s136, %s150
      %p152 = scmp.eq.s32.totalorder %s21, 0
      %p153 = por %p151, %p152
      %s155 = sadd.s32 %s154, 1
      %p158 = scmp.eq.s32.totalorder %s15, 1
      %p159 = scmp.ne.s32.totalorder %s154, %s156
      %p160 = scmp.eq.s32.totalorder %s15, 0
      %p161 = por %p159, %p160
      %p162 = scmp.ne.s32.totalorder %s154, %s156
      %p163 = scmp.eq.s32.totalorder %s20, 1
      %p164 = por %p162, %p163
      %p165 = scmp.ne.s32.totalorder %s156, %s157
      %p166 = scmp.eq.s32.totalorder %s20, 0
      %p167 = por %p165, %p166
      %p168 = scmp.ne.s32.totalorder %s156, %s157
      %p169 = scmp.eq.s32.totalorder %s21, 1
      %p170 = por %p168, %p169
      %p172 = scmp.ne.s32.totalorder %s157, %s171
      %p173 = scmp.eq.s32.totalorder %s21, 0
      %p174 = por %p172, %p173
      %s175 = ssub.s32 %s22, %s34
      %s176 = ssub.s32 %s23, %s30
      %s177 = sor.u32 %s175, %s176
      %p178 = scmp.eq.s32.totalorder %s177, 0
      %s180 = sadd.s32 %s179, 1
      %s181 = scalar_select %p178, %s179, %s180
      %p184 = pneg %p178
      %p185 = scmp.eq.s32.totalorder %s15, 1
      %p186 = por %p184, %p185
      %p187 = scmp.ne.s32.totalorder %s179, %s182
      %p188 = scmp.eq.s32.totalorder %s15, 0
      %p189 = por %p187, %p188
      %p190 = scmp.ne.s32.totalorder %s179, %s182
      %p191 = scmp.eq.s32.totalorder %s20, 1
      %p192 = por %p190, %p191
      %p193 = scmp.ne.s32.totalorder %s182, %s183
      %p194 = scmp.eq.s32.totalorder %s20, 0
      %p195 = por %p193, %p194
      %p196 = scmp.ne.s32.totalorder %s182, %s183
      %p197 = scmp.eq.s32.totalorder %s21, 1
      %p198 = por %p196, %p197
      %p200 = scmp.ne.s32.totalorder %s183, %s199
      %p201 = scmp.eq.s32.totalorder %s21, 0
      %p202 = por %p200, %p201
      %p203 = scmp.le.s32.totalorder 1, %s15
      %p204 = scmp.lt.s32.totalorder %s15, 3
      %p205 = pnand %p203, %p204
      %p206 = pneg %p205
      // Predicated region
      $region9: #{sep_conv_gru_pallas.3} parent=5 // pred_check
        _
      $region10: #{sep_conv_gru_pallas.3} parent=5 // pred_check_branch
        %208 = sbr.rel (%p205) target = $region12
      $region11: #{sep_conv_gru_pallas.3} parent=5 // pred_region
        %s209 = ssub.s32 %s15, 1
        // Predicated region
        $region13: #{sep_conv_gru_pallas.3} parent=11 // pred_check
          %p210 = pneg %p104
        $region14: #{sep_conv_gru_pallas.3} parent=11 // pred_check_branch
          %212 = sbr.rel (%p210) target = $region16
        $region15: #{sep_conv_gru_pallas.3} parent=11 // pred_region
          _
        $region16: #{sep_conv_gru_pallas.3} parent=11 // pred_fallthru
          _
        // Predicated region
        $region17: #{sep_conv_gru_pallas.3} parent=11 // pred_check
          %p213 = pneg %p125
        $region18: #{sep_conv_gru_pallas.3} parent=11 // pred_check_branch
          %215 = sbr.rel (%p213) target = $region20
        $region19: #{sep_conv_gru_pallas.3} parent=11 // pred_region
          _
        $region20: #{sep_conv_gru_pallas.3} parent=11 // pred_fallthru
          _
        // Predicated region
        $region21: #{sep_conv_gru_pallas.3} parent=11 // pred_check
          %p216 = pneg %p146
        $region22: #{sep_conv_gru_pallas.3} parent=11 // pred_check_branch
          %218 = sbr.rel (%p216) target = $region24
        $region23: #{sep_conv_gru_pallas.3} parent=11 // pred_region
          _
        $region24: #{sep_conv_gru_pallas.3} parent=11 // pred_fallthru
          _
        // Predicated region
        $region25: #{sep_conv_gru_pallas.3} parent=11 // pred_check
          %p219 = pneg %p167
        $region26: #{sep_conv_gru_pallas.3} parent=11 // pred_check_branch
          %221 = sbr.rel (%p219) target = $region28
        $region27: #{sep_conv_gru_pallas.3} parent=11 // pred_region
          _
        $region28: #{sep_conv_gru_pallas.3} parent=11 // pred_fallthru
          _
      $region12: #{sep_conv_gru_pallas.3} parent=5 // pred_fallthru
        _
      %p222 = scmp.lt.s32.totalorder %s15, 2
      // Predicated region
      $region29: #{sep_conv_gru_pallas.3} parent=5 // pred_check
        %p223 = pneg %p222
      $region30: #{sep_conv_gru_pallas.3} parent=5 // pred_check_branch
        %225 = sbr.rel (%p223) target = $region32
      $region31: #{sep_conv_gru_pallas.3} parent=5 // pred_region
        // Predicated region
        $region33: #{sep_conv_gru_pallas.3} parent=31 // pred_check
          %p226 = pneg %p49
        $region34: #{sep_conv_gru_pallas.3} parent=31 // pred_check_branch
          %228 = sbr.rel (%p226) target = $region36
        $region35: #{sep_conv_gru_pallas.3} parent=31 // pred_region
          %s229 = smul.u32 2, %s23
          %p230 = scmp.lt.s32.totalorder %s22, 1
          %s231 = scalar_select %p230, %s22, 1
          %p232 = scmp.lt.s32.totalorder %s229, 1
          %s233 = scalar_select %p232, %s229, 1
          %s234 = smul.addr %s231, 16
          %s235 = sadd.s32 %s233, %s234
          %s236 = smul.addr %s235, 8
          %s237 = scalar_lea.vmem %s0, %s236
          %s238 = smul.u32 2, %s23
        $region36: #{sep_conv_gru_pallas.3} parent=31 // pred_fallthru
          _
        // Predicated region
        $region37: #{sep_conv_gru_pallas.3} parent=31 // pred_check
          %p239 = pneg %p77
        $region38: #{sep_conv_gru_pallas.3} parent=31 // pred_check_branch
          %241 = sbr.rel (%p239) target = $region40
        $region39: #{sep_conv_gru_pallas.3} parent=31 // pred_region
          %s242 = smul.u32 2, %s23
          %p243 = scmp.lt.s32.totalorder %s22, 1
          %s244 = scalar_select %p243, %s22, 1
          %p245 = scmp.lt.s32.totalorder %s242, 1
          %s246 = scalar_select %p245, %s242, 1
          %s247 = smul.addr %s244, 16
          %s248 = sadd.s32 %s246, %s247
          %s249 = smul.addr %s248, 8
          %s250 = scalar_lea.vmem %s1, %s249
          %s251 = smul.u32 2, %s23
        $region40: #{sep_conv_gru_pallas.3} parent=31 // pred_fallthru
          _
      $region32: #{sep_conv_gru_pallas.3} parent=5 // pred_fallthru
        _
      %p252 = scmp.le.s32.totalorder 1, %s15
      %p253 = scmp.lt.s32.totalorder %s15, 3
      %p254 = pnand %p252, %p253
      %p255 = pneg %p254
      // Predicated region
      $region41: #{sep_conv_gru_pallas.3} parent=5 // pred_check
        _
      $region42: #{sep_conv_gru_pallas.3} parent=5 // pred_check_branch
        %257 = sbr.rel (%p254) target = $region44
      $region43: #{sep_conv_gru_pallas.3} parent=5 // pred_region
        %s258 = ssub.s32 %s15, 1
        %s259 = smul.u32 2, %s25
        %p260 = scmp.lt.s32.totalorder %s24, 1
        %s261 = scalar_select %p260, %s24, 1
        %p262 = scmp.lt.s32.totalorder %s259, 1
        %s263 = scalar_select %p262, %s259, 1
        %s264 = smul.addr %s261, 16
        %s265 = sadd.s32 %s263, %s264
        %s266 = smul.addr %s265, 8
        %s267 = scalar_lea.vmem %s0, %s266
        %p268 = pneg %p55
        %p269 = pneg %p52
        %s270 = smul.u32 2, %s25
        %p271 = scmp.lt.s32.totalorder %s24, 1
        %s272 = scalar_select %p271, %s24, 1
        %p273 = scmp.lt.s32.totalorder %s270, 1
        %s274 = scalar_select %p273, %s270, 1
        %s275 = smul.addr %s272, 16
        %s276 = sadd.s32 %s274, %s275
        %s277 = smul.addr %s276, 8
        %s278 = scalar_lea.vmem %s1, %s277
        %p279 = pneg %p83
        %p280 = pneg %p80
        %p281 = pneg %p104
        %p282 = pneg %p101
        %p283 = pneg %p125
        %p284 = pneg %p122
        %p285 = pneg %p146
        %p286 = pneg %p143
        %p287 = pneg %p167
        %p288 = pneg %p164
        %p289 = pneg %p195
        %p290 = pneg %p192
        %s291 = sand.u32 %s182, 1
        %s292 = scalar_lea.sflag [#allocation3], %s291
        %s293 = sand.u32 %s182, 1
        %s294 = smul.addr %s293, 128
        %s295 = scalar_lea.vmem [#allocation2], %s294
        %s296 = smul.u32 2, %s25
        %p297 = scmp.lt.s32.totalorder %s24, 1
        %s298 = scalar_select %p297, %s24, 1
        %p299 = scmp.lt.s32.totalorder %s296, 1
        %s300 = scalar_select %p299, %s296, 1
        %s301 = smul.addr %s298, 16
        %s302 = sadd.s32 %s300, %s301
        %s303 = smul.addr %s302, 8
        %s304 = scalar_lea.vmem %s0, %s303
        %s305 = smul.u32 2, %s25
        %s306 = smul.u32 2, %s25
        %p307 = scmp.lt.s32.totalorder %s24, 1
        %s308 = scalar_select %p307, %s24, 1
        %p309 = scmp.lt.s32.totalorder %s306, 1
        %s310 = scalar_select %p309, %s306, 1
        %s311 = smul.addr %s308, 16
        %s312 = sadd.s32 %s310, %s311
        %s313 = smul.addr %s312, 8
        %s314 = scalar_lea.vmem %s1, %s313
        %s315 = smul.u32 2, %s25
        %s316 = smul.u32 2, %s25
        %v317 = vld [vmem:[%s304] sm:$0xff]
        %v318 = vld [vmem:[%s304 + $0x8] sm:$0xff]
        %v319 = vld [vmem:[%s304 + $0x10] sm:$0xff]
        %v320 = vld [vmem:[%s304 + $0x18] sm:$0xff]
        %v321 = vld [vmem:[%s304 + $0x20] sm:$0xff]
        %v322 = vld [vmem:[%s304 + $0x28] sm:$0xff]
        %v323 = vld [vmem:[%s304 + $0x30] sm:$0xff]
        %v324 = vld [vmem:[%s304 + $0x38] sm:$0xff]
        %v325 = vld [vmem:[%s304 + $0x40] sm:$0xff]
        %v326 = vld [vmem:[%s304 + $0x48] sm:$0xff]
        %v327 = vld [vmem:[%s304 + $0x50] sm:$0xff]
        %v328 = vld [vmem:[%s304 + $0x58] sm:$0xff]
        %v329 = vld [vmem:[%s304 + $0x60] sm:$0xff]
        %v330 = vld [vmem:[%s304 + $0x68] sm:$0xff]
        %v331 = vld [vmem:[%s304 + $0x70] sm:$0xff]
        %v332 = vld [vmem:[%s304 + $0x78] sm:$0xff]
        %v333 = vld [vmem:[%s314] sm:$0xff]
        %v334 = vld [vmem:[%s314 + $0x8] sm:$0xff]
        %v335 = vld [vmem:[%s314 + $0x10] sm:$0xff]
        %v336 = vld [vmem:[%s314 + $0x18] sm:$0xff]
        %v337 = vld [vmem:[%s314 + $0x20] sm:$0xff]
        %v338 = vld [vmem:[%s314 + $0x28] sm:$0xff]
        %v339 = vld [vmem:[%s314 + $0x30] sm:$0xff]
        %v340 = vld [vmem:[%s314 + $0x38] sm:$0xff]
        %v341 = vld [vmem:[%s314 + $0x40] sm:$0xff]
        %v342 = vld [vmem:[%s314 + $0x48] sm:$0xff]
        %v343 = vld [vmem:[%s314 + $0x50] sm:$0xff]
        %v344 = vld [vmem:[%s314 + $0x58] sm:$0xff]
        %v345 = vld [vmem:[%s314 + $0x60] sm:$0xff]
        %v346 = vld [vmem:[%s314 + $0x68] sm:$0xff]
        %v347 = vld [vmem:[%s314 + $0x70] sm:$0xff]
        %v348 = vld [vmem:[%s314 + $0x78] sm:$0xff]
        %v349 = vld [vmem:[%s2] sm:$0xff]
        %v350 = vld [vmem:[%s2 + $0x8] sm:$0xff]
        %v351 = vld [vmem:[%s2 + $0x10] sm:$0xff]
        %v352 = vld [vmem:[%s2 + $0x18] sm:$0xff]
        %v353 = vld [vmem:[%s2 + $0x20] sm:$0xff]
        %v354 = vld [vmem:[%s2 + $0x28] sm:$0xff]
        %v355 = vld [vmem:[%s2 + $0x30] sm:$0xff]
        %v356 = vld [vmem:[%s2 + $0x38] sm:$0xff]
        %v357 = vld [vmem:[%s2 + $0x40] sm:$0xff]
        %v358 = vld [vmem:[%s2 + $0x48] sm:$0xff]
        %v359 = vld [vmem:[%s2 + $0x50] sm:$0xff]
        %v360 = vld [vmem:[%s2 + $0x58] sm:$0xff]
        %v361 = vld [vmem:[%s2 + $0x60] sm:$0xff]
        %v362 = vld [vmem:[%s2 + $0x68] sm:$0xff]
        %v363 = vld [vmem:[%s2 + $0x70] sm:$0xff]
        %v364 = vld [vmem:[%s2 + $0x78] sm:$0xff]
        %v365 = vld [vmem:[%s2 + $0x80] sm:$0xff]
        %v366 = vld [vmem:[%s2 + $0x88] sm:$0xff]
        %v367 = vld [vmem:[%s2 + $0x90] sm:$0xff]
        %v368 = vld [vmem:[%s2 + $0x98] sm:$0xff]
        %v369 = vld [vmem:[%s2 + $0xa0] sm:$0xff]
        %v370 = vld [vmem:[%s2 + $0xa8] sm:$0xff]
        %v371 = vld [vmem:[%s2 + $0xb0] sm:$0xff]
        %v372 = vld [vmem:[%s2 + $0xb8] sm:$0xff]
        %v373 = vld [vmem:[%s2 + $0xc0] sm:$0xff]
        %v374 = vld [vmem:[%s2 + $0xc8] sm:$0xff]
        %v375 = vld [vmem:[%s2 + $0xd0] sm:$0xff]
        %v376 = vld [vmem:[%s2 + $0xd8] sm:$0xff]
        %v377 = vld [vmem:[%s2 + $0xe0] sm:$0xff]
        %v378 = vld [vmem:[%s2 + $0xe8] sm:$0xff]
        %v379 = vld [vmem:[%s2 + $0xf0] sm:$0xff]
        %v380 = vld [vmem:[%s2 + $0xf8] sm:$0xff]
        %v381 = vld [vmem:[%s2 + $0x100] sm:$0xff]
        %v382 = vld [vmem:[%s2 + $0x108] sm:$0xff]
        %v383 = vld [vmem:[%s2 + $0x110] sm:$0xff]
        %v384 = vld [vmem:[%s2 + $0x118] sm:$0xff]
        %v385 = vld [vmem:[%s2 + $0x120] sm:$0xff]
        %v386 = vld [vmem:[%s2 + $0x128] sm:$0xff]
        %v387 = vld [vmem:[%s2 + $0x130] sm:$0xff]
        %v388 = vld [vmem:[%s2 + $0x138] sm:$0xff]
        %v389 = vld [vmem:[%s3] sm:$0xff]
        %v390 = vld [vmem:[%s3 + $0x8] sm:$0xff]
        %v391 = vld [vmem:[%s3 + $0x10] sm:$0xff]
        %v392 = vld [vmem:[%s3 + $0x18] sm:$0xff]
        %v393 = vld [vmem:[%s3 + $0x20] sm:$0xff]
        %v394 = vld [vmem:[%s3 + $0x28] sm:$0xff]
        %v395 = vld [vmem:[%s3 + $0x30] sm:$0xff]
        %v396 = vld [vmem:[%s3 + $0x38] sm:$0xff]
        %v397 = vld [vmem:[%s3 + $0x40] sm:$0xff]
        %v398 = vld [vmem:[%s3 + $0x48] sm:$0xff]
        %v399 = vld [vmem:[%s3 + $0x50] sm:$0xff]
        %v400 = vld [vmem:[%s3 + $0x58] sm:$0xff]
        %v401 = vld [vmem:[%s3 + $0x60] sm:$0xff]
        %v402 = vld [vmem:[%s3 + $0x68] sm:$0xff]
        %v403 = vld [vmem:[%s3 + $0x70] sm:$0xff]
        %v404 = vld [vmem:[%s3 + $0x78] sm:$0xff]
        %v405 = vld [vmem:[%s3 + $0x80] sm:$0xff]
        %v406 = vld [vmem:[%s3 + $0x88] sm:$0xff]
        %v407 = vld [vmem:[%s3 + $0x90] sm:$0xff]
        %v408 = vld [vmem:[%s3 + $0x98] sm:$0xff]
        %v409 = vld [vmem:[%s4] sm:$0xff]
        %v410 = vld [vmem:[%s4 + $0x8] sm:$0xff]
        %v411 = vld [vmem:[%s4 + $0x10] sm:$0xff]
        %v412 = vld [vmem:[%s4 + $0x18] sm:$0xff]
        %v413 = vld [vmem:[%s4 + $0x20] sm:$0xff]
        %v414 = vld [vmem:[%s4 + $0x28] sm:$0xff]
        %v415 = vld [vmem:[%s4 + $0x30] sm:$0xff]
        %v416 = vld [vmem:[%s4 + $0x38] sm:$0xff]
        %v417 = vld [vmem:[%s4 + $0x40] sm:$0xff]
        %v418 = vld [vmem:[%s4 + $0x48] sm:$0xff]
        %v419 = vld [vmem:[%s4 + $0x50] sm:$0xff]
        %v420 = vld [vmem:[%s4 + $0x58] sm:$0xff]
        %v421 = vld [vmem:[%s4 + $0x60] sm:$0xff]
        %v422 = vld [vmem:[%s4 + $0x68] sm:$0xff]
        %v423 = vld [vmem:[%s4 + $0x70] sm:$0xff]
        %v424 = vld [vmem:[%s4 + $0x78] sm:$0xff]
        %v425 = vld [vmem:[%s4 + $0x80] sm:$0xff]
        %v426 = vld [vmem:[%s4 + $0x88] sm:$0xff]
        %v427 = vld [vmem:[%s4 + $0x90] sm:$0xff]
        %v428 = vld [vmem:[%s4 + $0x98] sm:$0xff]
        %v429 = vld [vmem:[%s5] sm:$0x1]
        %445 = vrot.lane.b32.xlu0 0.0, 64
        %v446 = vpop.permute.xlu0 %445
        %447 = vrot.lane.b32.xlu0 %v333, 64
        %v448 = vpop.permute.xlu0 %447
        %449 = vrot.lane.b32.xlu0 %v334, 64
        %v450 = vpop.permute.xlu0 %449
        %451 = vrot.lane.b32.xlu0 %v335, 64
        %v452 = vpop.permute.xlu0 %451
        %453 = vrot.lane.b32.xlu0 %v336, 64
        %v454 = vpop.permute.xlu0 %453
        %455 = vrot.lane.b32.xlu0 %v337, 64
        %v456 = vpop.permute.xlu0 %455
        %457 = vrot.lane.b32.xlu0 %v338, 64
        %v458 = vpop.permute.xlu0 %457
        %459 = vrot.lane.b32.xlu0 %v339, 64
        %v460 = vpop.permute.xlu0 %459
        %461 = vrot.lane.b32.xlu0 %v340, 64
        %v462 = vpop.permute.xlu0 %461
        %463 = vrot.lane.b32.xlu0 %v341, 64
        %v464 = vpop.permute.xlu0 %463
        %465 = vrot.lane.b32.xlu0 %v342, 64
        %v466 = vpop.permute.xlu0 %465
        %467 = vrot.lane.b32.xlu0 %v343, 64
        %v468 = vpop.permute.xlu0 %467
        %469 = vrot.lane.b32.xlu0 %v344, 64
        %v470 = vpop.permute.xlu0 %469
        %471 = vrot.lane.b32.xlu0 %v345, 64
        %v472 = vpop.permute.xlu0 %471
        %473 = vrot.lane.b32.xlu0 %v346, 64
        %v474 = vpop.permute.xlu0 %473
        %492 = vrot.lane.b32.xlu0 %v347, 64
        %v493 = vpop.permute.xlu0 %492
        %494 = vrot.lane.b32.xlu0 %v348, 64
        %v495 = vpop.permute.xlu0 %494
        %vm498 = vcmask 523264
        %v499 = vsel %vm498, 0.0, %v446
        %v500 = vsel %vm498, 0.0, %v448
        %v501 = vsel %vm498, 0.0, %v450
        %v502 = vsel %vm498, %v333, %v452
        %v503 = vsel %vm498, %v334, %v454
        %v504 = vsel %vm498, %v335, %v456
        %v505 = vsel %vm498, %v336, %v458
        %v506 = vsel %vm498, %v337, %v460
        %v507 = vsel %vm498, %v338, %v462
        %v508 = vsel %vm498, %v339, %v464
        %v509 = vsel %vm498, %v340, %v466
        %v510 = vsel %vm498, %v341, %v468
        %v511 = vsel %vm498, %v342, %v470
        %v512 = vsel %vm498, %v343, %v472
        %v513 = vsel %vm498, %v344, %v474
        %v514 = vsel %vm498, %v345, %v493
        %v515 = vsel %vm498, %v346, %v495
        %v516 = vsel %vm498, %v347, %v446
        %v517 = vsel %vm498, %v348, %v446
        %532 = vrot.lane.b32.xlu0 0.0, 32
        %v533 = vpop.permute.xlu0 %532
        %534 = vrot.lane.b32.xlu0 %v317, 32
        %v535 = vpop.permute.xlu0 %534
        %536 = vrot.lane.b32.xlu0 %v318, 32
        %v537 = vpop.permute.xlu0 %536
        %538 = vrot.lane.b32.xlu0 %v319, 32
        %v539 = vpop.permute.xlu0 %538
        %540 = vrot.lane.b32.xlu0 %v320, 32
        %v541 = vpop.permute.xlu0 %540
        %542 = vrot.lane.b32.xlu0 %v321, 32
        %v543 = vpop.permute.xlu0 %542
        %544 = vrot.lane.b32.xlu0 %v322, 32
        %v545 = vpop.permute.xlu0 %544
        %546 = vrot.lane.b32.xlu0 %v323, 32
        %v547 = vpop.permute.xlu0 %546
        %548 = vrot.lane.b32.xlu0 %v324, 32
        %v549 = vpop.permute.xlu0 %548
        %550 = vrot.lane.b32.xlu0 %v325, 32
        %v551 = vpop.permute.xlu0 %550
        %552 = vrot.lane.b32.xlu0 %v326, 32
        %v553 = vpop.permute.xlu0 %552
        %554 = vrot.lane.b32.xlu0 %v327, 32
        %v555 = vpop.permute.xlu0 %554
        %556 = vrot.lane.b32.xlu0 %v328, 32
        %v557 = vpop.permute.xlu0 %556
        %558 = vrot.lane.b32.xlu0 %v329, 32
        %v559 = vpop.permute.xlu0 %558
        %560 = vrot.lane.b32.xlu0 %v330, 32
        %v561 = vpop.permute.xlu0 %560
        %579 = vrot.lane.b32.xlu0 %v317, 64
        %v580 = vpop.permute.xlu0 %579
        %581 = vrot.lane.b32.xlu0 %v318, 64
        %v582 = vpop.permute.xlu0 %581
        %583 = vrot.lane.b32.xlu0 %v319, 64
        %v584 = vpop.permute.xlu0 %583
        %585 = vrot.lane.b32.xlu0 %v320, 64
        %v586 = vpop.permute.xlu0 %585
        %587 = vrot.lane.b32.xlu0 %v321, 64
        %v588 = vpop.permute.xlu0 %587
        %589 = vrot.lane.b32.xlu0 %v322, 64
        %v590 = vpop.permute.xlu0 %589
        %591 = vrot.lane.b32.xlu0 %v323, 64
        %v592 = vpop.permute.xlu0 %591
        %593 = vrot.lane.b32.xlu0 %v324, 64
        %v594 = vpop.permute.xlu0 %593
        %595 = vrot.lane.b32.xlu0 %v325, 64
        %v596 = vpop.permute.xlu0 %595
        %597 = vrot.lane.b32.xlu0 %v326, 64
        %v598 = vpop.permute.xlu0 %597
        %599 = vrot.lane.b32.xlu0 %v327, 64
        %v600 = vpop.permute.xlu0 %599
        %601 = vrot.lane.b32.xlu0 %v328, 64
        %v602 = vpop.permute.xlu0 %601
        %603 = vrot.lane.b32.xlu0 %v329, 64
        %v604 = vpop.permute.xlu0 %603
        %605 = vrot.lane.b32.xlu0 %v330, 64
        %v606 = vpop.permute.xlu0 %605
        %607 = vrot.lane.b32.xlu0 %v331, 64
        %v608 = vpop.permute.xlu0 %607
        %609 = vrot.lane.b32.xlu0 %v332, 64
        %v610 = vpop.permute.xlu0 %609
        %627 = vrot.lane.b32.xlu0 %v319, 96
        %v628 = vpop.permute.xlu0 %627
        %629 = vrot.lane.b32.xlu0 %v320, 96
        %v630 = vpop.permute.xlu0 %629
        %631 = vrot.lane.b32.xlu0 %v321, 96
        %v632 = vpop.permute.xlu0 %631
        %633 = vrot.lane.b32.xlu0 %v322, 96
        %v634 = vpop.permute.xlu0 %633
        %635 = vrot.lane.b32.xlu0 %v323, 96
        %v636 = vpop.permute.xlu0 %635
        %637 = vrot.lane.b32.xlu0 %v324, 96
        %v638 = vpop.permute.xlu0 %637
        %639 = vrot.lane.b32.xlu0 %v325, 96
        %v640 = vpop.permute.xlu0 %639
        %641 = vrot.lane.b32.xlu0 %v326, 96
        %v642 = vpop.permute.xlu0 %641
        %643 = vrot.lane.b32.xlu0 %v327, 96
        %v644 = vpop.permute.xlu0 %643
        %645 = vrot.lane.b32.xlu0 %v328, 96
        %v646 = vpop.permute.xlu0 %645
        %647 = vrot.lane.b32.xlu0 %v329, 96
        %v648 = vpop.permute.xlu0 %647
        %649 = vrot.lane.b32.xlu0 %v330, 96
        %v650 = vpop.permute.xlu0 %649
        %651 = vrot.lane.b32.xlu0 %v331, 96
        %v652 = vpop.permute.xlu0 %651
        %653 = vrot.lane.b32.xlu0 %v332, 96
        %v654 = vpop.permute.xlu0 %653
        %655 = vrot.lane.b32.xlu0 0.0, 96
        %v656 = vpop.permute.xlu0 %655
        %vm672 = vcmask 261120
        %v673 = vsel %vm672, 0.0, %v533
        %v674 = vsel %vm672, 0.0, %v535
        %v675 = vsel %vm672, 0.0, %v537
        %v676 = vsel %vm672, %v317, %v539
        %v677 = vsel %vm672, %v318, %v541
        %v678 = vsel %vm672, %v319, %v543
        %v679 = vsel %vm672, %v320, %v545
        %v680 = vsel %vm672, %v321, %v547
        %v681 = vsel %vm672, %v322, %v549
        %v682 = vsel %vm672, %v323, %v551
        %v683 = vsel %vm672, %v324, %v553
        %v684 = vsel %vm672, %v325, %v555
        %v685 = vsel %vm672, %v326, %v557
        %v686 = vsel %vm672, %v327, %v559
        %v687 = vsel %vm672, %v328, %v561
        %v688 = vsel %vm498, %v673, %v580
        %v689 = vsel %vm498, %v673, %v582
        %v690 = vsel %vm498, %v674, %v584
        %v691 = vsel %vm498, %v675, %v586
        %v692 = vsel %vm498, %v676, %v588
        %v693 = vsel %vm498, %v677, %v590
        %v694 = vsel %vm498, %v678, %v592
        %v695 = vsel %vm498, %v679, %v594
        %v696 = vsel %vm498, %v680, %v596
        %v697 = vsel %vm498, %v681, %v598
        %v698 = vsel %vm498, %v682, %v600
        %v699 = vsel %vm498, %v683, %v602
        %v700 = vsel %vm498, %v684, %v604
        %v701 = vsel %vm498, %v685, %v606
        %v702 = vsel %vm498, %v686, %v608
        %v703 = vsel %vm498, %v687, %v610
        %vm704 = vcmask 785408
        %v705 = vsel %vm704, %v688, %v628
        %v706 = vsel %vm704, %v689, %v630
        %v707 = vsel %vm704, %v690, %v632
        %v708 = vsel %vm704, %v691, %v634
        %v709 = vsel %vm704, %v692, %v636
        %v710 = vsel %vm704, %v693, %v638
        %v711 = vsel %vm704, %v694, %v640
        %v712 = vsel %vm704, %v695, %v642
        %v713 = vsel %vm704, %v696, %v644
        %v714 = vsel %vm704, %v697, %v646
        %v715 = vsel %vm704, %v698, %v648
        %v716 = vsel %vm704, %v699, %v650
        %v717 = vsel %vm704, %v700, %v652
        %v718 = vsel %vm704, %v701, %v654
        %v719 = vsel %vm704, %v702, %v656
        %v720 = vsel %vm704, %v703, %v656
        %v722 = vlaneseq
        %v723 = vshrl.u32 %v722, 7
        %v724 = vsub.s32 0, %v723
        %v725 = vrot.slane %v429, %v724
        %v727 = vsel %vm498, %v337, 0
        %v729 = vsel %vm498, %v338, 0
        %v731 = vsel %vm498, %v339, 0
        %v733 = vsel %vm498, %v340, 0
        %v735 = vsel %vm498, %v341, 0
        %v737 = vsel %vm498, %v342, 0
        %v739 = vsel %vm498, %v343, 0
        %v741 = vsel %vm498, %v344, 0
        %v743 = vsel %vm498, %v345, 0
        %v745 = vsel %vm498, %v346, 0
        %v747 = vsel %vm498, %v347, 0
        %v749 = vsel %vm498, %v348, 0
        %v751 = vsel %vm498, 0.0, 0
        %753 = vmatprep.subr.mxu0 0.0
        %754 = vmatpush1.msra.mxu0 %v349
        %755 = vmatprep.subr.mxu0 0.0
        %756 = vmatpush1.msra.mxu0 %v350
        %757 = vmatprep.subr.mxu0 0.0
        %758 = vmatpush1.msra.mxu0 %v351
        %759 = vmatprep.subr.mxu0 0.0
        %760 = vmatpush1.msra.mxu0 %v352
        %761 = vmatprep.subr.mxu0 0.0
        %762 = vmatpush1.msra.mxu0 %v353
        %763 = vmatprep.subr.mxu0 0.0
        %764 = vmatpush1.msra.mxu0 %v354
        %765 = vmatprep.subr.mxu0 0.0
        %766 = vmatpush1.msra.mxu0 %v355
        %767 = vmatprep.subr.mxu0 0.0
        %768 = vmatpush1.msra.mxu0 %v356
        %769 = vmatprep.subr.mxu0 0.0
        %770 = vmatpush1.msra.mxu0 %v357
        %771 = vmatprep.subr.mxu0 0.0
        %772 = vmatpush1.msra.mxu0 %v358
        %773 = vmatprep.subr.mxu0 0.0
        %774 = vmatpush1.msra.mxu0 %v359
        %775 = vmatprep.subr.mxu0 0.0
        %776 = vmatpush1.msra.mxu0 %v360
        %777 = vmatprep.subr.mxu0 0.0
        %778 = vmatpush1.msra.mxu0 %v361
        %779 = vmatprep.subr.mxu0 0.0
        %780 = vmatpush1.msra.mxu0 %v362
        %781 = vmatprep.subr.mxu0 0.0
        %782 = vmatpush1.msra.mxu0 %v363
        %783 = vmatprep.subr.mxu0 0.0
        %784 = vmatpush1.msra.mxu0 %v364
        %785 = vmatprep.subr.mxu0 0.0
        %786 = vmatpush1.msra.mxu0 %v365
        %787 = vmatprep.subr.mxu0 0.0
        %788 = vmatpush1.msra.mxu0 %v366
        %789 = vmatprep.subr.mxu0 0.0
        %790 = vmatpush1.msra.mxu0 %v367
        %791 = vmatprep.subr.mxu0 0.0
        %792 = vmatpush1.msra.mxu0 %v368
        %793 = vmatprep.subr.mxu0 0.0
        %794 = vmatpush1.msra.mxu0 %v369
        %795 = vmatprep.subr.mxu0 0.0
        %796 = vmatpush1.msra.mxu0 %v370
        %797 = vmatprep.subr.mxu0 0.0
        %798 = vmatpush1.msra.mxu0 %v371
        %799 = vmatprep.subr.mxu0 0.0
        %800 = vmatpush1.msra.mxu0 %v372
        %801 = vmatprep.subr.mxu0 0.0
        %802 = vmatpush1.msra.mxu0 %v373
        %803 = vmatprep.subr.mxu0 0.0
        %804 = vmatpush1.msra.mxu0 %v374
        %805 = vmatprep.subr.mxu0 0.0
        %806 = vmatpush1.msra.mxu0 %v375
        %807 = vmatprep.subr.mxu0 0.0
        %808 = vmatpush1.msra.mxu0 %v376
        %809 = vmatprep.subr.mxu0 0.0
        %810 = vmatpush1.msra.mxu0 %v377
        %811 = vmatprep.subr.mxu0 0.0
        %812 = vmatpush1.msra.mxu0 %v378
        %813 = vmatprep.subr.mxu0 0.0
        %814 = vmatpush1.msra.mxu0 %v379
        %815 = vmatprep.subr.mxu0 0.0
        %816 = vmatpush1.msra.mxu0 %v380
        %817 = vmatprep.mubr.f32.mxu0 %v502
        %818 = vmatmul.mubr.f32.gmra.mrb[0].mxu0 %v499
        %v819 = vpop.f32.mrb[0].mxu0
        %v820 = vadd.f32 %v725, %v819
        %v821 = vpop.f32.mrb[0].mxu0
        %822 = vmatprep.mubr.f32.mxu0 %v503
        %823 = vmatmul.mubr.f32.gmra.mrb[0].mxu0 %v499
        %v824 = vpop.f32.mrb[0].mxu0
        %v825 = vadd.f32 %v725, %v824
        %v826 = vpop.f32.mrb[0].mxu0
        %827 = vmatprep.mubr.f32.mxu0 %v504
        %828 = vmatmul.mubr.f32.gmra.mrb[0].mxu0 %v500
        %v829 = vpop.f32.mrb[0].mxu0
        %v830 = vadd.f32 %v725, %v829
        %v831 = vpop.f32.mrb[0].mxu0
        %832 = vmatprep.mubr.f32.mxu0 %v505
        %833 = vmatmul.mubr.f32.gmra.mrb[0].mxu0 %v501
        %v834 = vpop.f32.mrb[0].mxu0
        %v835 = vadd.f32 %v725, %v834
        %v836 = vpop.f32.mrb[0].mxu0
        %837 = vmatprep.mubr.f32.mxu0 %v506
        %838 = vmatmul.mubr.f32.gmra.mrb[0].mxu0 %v502
        %v839 = vpop.f32.mrb[0].mxu0
        %v840 = vadd.f32 %v725, %v839
        %v841 = vpop.f32.mrb[0].mxu0
        %842 = vmatprep.mubr.f32.mxu0 %v507
        %843 = vmatmul.mubr.f32.gmra.mrb[0].mxu0 %v503
        %v844 = vpop.f32.mrb[0].mxu0
        %v845 = vadd.f32 %v725, %v844
        %v846 = vpop.f32.mrb[0].mxu0
        %847 = vmatprep.mubr.f32.mxu0 %v508
        %848 = vmatmul.mubr.f32.gmra.mrb[0].mxu0 %v504
        %v849 = vpop.f32.mrb[0].mxu0
        %v850 = vadd.f32 %v725, %v849
        %v851 = vpop.f32.mrb[0].mxu0
        %852 = vmatprep.mubr.f32.mxu0 %v509
        %853 = vmatmul.mubr.f32.gmra.mrb[0].mxu0 %v505
        %v854 = vpop.f32.mrb[0].mxu0
        %v855 = vadd.f32 %v725, %v854
        %v856 = vpop.f32.mrb[0].mxu0
        %857 = vmatprep.mubr.f32.mxu0 %v510
        %858 = vmatmul.mubr.f32.gmra.mrb[0].mxu0 %v506
        %v859 = vpop.f32.mrb[0].mxu0
        %v860 = vadd.f32 %v725, %v859
        %v861 = vpop.f32.mrb[0].mxu0
        %862 = vmatprep.mubr.f32.mxu0 %v511
        %863 = vmatmul.mubr.f32.gmra.mrb[0].mxu0 %v507
        %v864 = vpop.f32.mrb[0].mxu0
        %v865 = vadd.f32 %v725, %v864
        %v866 = vpop.f32.mrb[0].mxu0
        %867 = vmatprep.mubr.f32.mxu0 %v512
        %868 = vmatmul.mubr.f32.gmra.mrb[0].mxu0 %v508
        %v869 = vpop.f32.mrb[0].mxu0
        %v870 = vadd.f32 %v725, %v869
        %v871 = vpop.f32.mrb[0].mxu0
        %872 = vmatprep.mubr.f32.mxu0 %v513
        %873 = vmatmul.mubr.f32.gmra.mrb[0].mxu0 %v509
        %v874 = vpop.f32.mrb[0].mxu0
        %v875 = vadd.f32 %v725, %v874
        %v876 = vpop.f32.mrb[0].mxu0
        %877 = vmatprep.mubr.f32.mxu0 %v514
        %878 = vmatmul.mubr.f32.gmra.mrb[0].mxu0 %v510
        %v879 = vpop.f32.mrb[0].mxu0
        %v880 = vadd.f32 %v725, %v879
        %v881 = vpop.f32.mrb[0].mxu0
        %882 = vmatprep.mubr.f32.mxu0 %v515
        %883 = vmatmul.mubr.f32.gmra.mrb[0].mxu0 %v511
        %v884 = vpop.f32.mrb[0].mxu0
        %v885 = vadd.f32 %v725, %v884
        %v886 = vpop.f32.mrb[0].mxu0
        %887 = vmatprep.mubr.f32.mxu0 %v516
        %888 = vmatmul.mubr.f32.gmra.mrb[0].mxu0 %v512
        %v889 = vpop.f32.mrb[0].mxu0
        %v890 = vadd.f32 %v725, %v889
        %v891 = vpop.f32.mrb[0].mxu0
        %892 = vmatprep.mubr.f32.mxu0 %v517
        %893 = vmatmul.mubr.f32.gmra.mrb[0].mxu0 %v513
        %v894 = vpop.f32.mrb[0].mxu0
        %v895 = vadd.f32 %v725, %v894
        %v896 = vpop.f32.mrb[0].mxu0
        %897 = vdwg.mxu0
        %898 = vmatprep.subr.mxu0 0.0
        %899 = vmatpush1.msra.mxu0 %v381
        %900 = vmatprep.subr.mxu0 0.0
        %901 = vmatpush1.msra.mxu0 %v382
        %902 = vmatprep.subr.mxu0 0.0
        %903 = vmatpush1.msra.mxu0 %v383
        %904 = vmatprep.subr.mxu0 0.0
        %905 = vmatpush1.msra.mxu0 %v384
        %906 = vmatprep.subr.mxu0 0.0
        %907 = vmatpush1.msra.mxu0 %v385
        %908 = vmatprep.subr.mxu0 0.0
        %909 = vmatpush1.msra.mxu0 %v386
        %910 = vmatprep.subr.mxu0 0.0
        %911 = vmatpush1.msra.mxu0 %v387
        %912 = vmatprep.subr.mxu0 0.0
        %913 = vmatpush1.msra.mxu0 %v388
        %914 = vmatprep.subr.mxu0 0.0
        %915 = vmatpush1.msra.mxu0 0.0
        %916 = vmatprep.subr.mxu0 0.0
        %917 = vmatpush1.msra.mxu0 0.0
        %918 = vmatprep.subr.mxu0 0.0
        %919 = vmatpush1.msra.mxu0 0.0
        %920 = vmatprep.subr.mxu0 0.0
        %921 = vmatpush1.msra.mxu0 0.0
        %922 = vmatprep.subr.mxu0 0.0
        %923 = vmatpush1.msra.mxu0 0.0
        %924 = vmatprep.subr.mxu0 0.0
        %925 = vmatpush1.msra.mxu0 0.0
        %926 = vmatprep.subr.mxu0 0.0
        %927 = vmatpush1.msra.mxu0 0.0
        %928 = vmatprep.subr.mxu0 0.0
        %929 = vmatpush1.msra.mxu0 0.0
        %930 = vmatprep.subr.mxu0 0.0
        %931 = vmatpush1.msra.mxu0 0.0
        %932 = vmatprep.subr.mxu0 0.0
        %933 = vmatpush1.msra.mxu0 0.0
        %934 = vmatprep.subr.mxu0 0.0
        %935 = vmatpush1.msra.mxu0 0.0
        %936 = vmatprep.subr.mxu0 0.0
        %937 = vmatpush1.msra.mxu0 0.0
        %938 = vmatprep.subr.mxu0 0.0
        %939 = vmatpush1.msra.mxu0 0.0
        %940 = vmatprep.subr.mxu0 0.0
        %941 = vmatpush1.msra.mxu0 0.0
        %942 = vmatprep.subr.mxu0 0.0
        %943 = vmatpush1.msra.mxu0 0.0
        %944 = vmatprep.subr.mxu0 0.0
        %945 = vmatpush1.msra.mxu0 0.0
        %946 = vmatprep.subr.mxu0 0.0
        %947 = vmatpush1.msra.mxu0 0.0
        %948 = vmatprep.subr.mxu0 0.0
        %949 = vmatpush1.msra.mxu0 0.0
        %950 = vmatprep.subr.mxu0 0.0
        %951 = vmatpush1.msra.mxu0 0.0
        %952 = vmatprep.subr.mxu0 0.0
        %953 = vmatpush1.msra.mxu0 0.0
        %954 = vmatprep.subr.mxu0 0.0
        %955 = vmatpush1.msra.mxu0 0.0
        %956 = vmatprep.subr.mxu0 0.0
        %957 = vmatpush1.msra.mxu0 0.0
        %958 = vmatprep.subr.mxu0 0.0
        %959 = vmatpush1.msra.mxu0 0.0
        %960 = vmatprep.subr.mxu0 0.0
        %961 = vmatpush1.msra.mxu0 0.0
        %962 = vmatprep.mubr.f32.mxu0 0.0
        %963 = vmatmul.mubr.f32.gmra.mrb[0].mxu0 %v727
        %v964 = vpop.f32.mrb[0].mxu0
        %v965 = vadd.f32 %v820, %v964
        %v966 = vpop.f32.mrb[0].mxu0
        %967 = vmatprep.mubr.f32.mxu0 0.0
        %968 = vmatmul.mubr.f32.gmra.mrb[0].mxu0 %v729
        %v969 = vpop.f32.mrb[0].mxu0
        %v970 = vadd.f32 %v825, %v969
        %v971 = vpop.f32.mrb[0].mxu0
        %972 = vmatprep.mubr.f32.mxu0 0.0
        %973 = vmatmul.mubr.f32.gmra.mrb[0].mxu0 %v731
        %v974 = vpop.f32.mrb[0].mxu0
        %v975 = vadd.f32 %v830, %v974
        %v976 = vpop.f32.mrb[0].mxu0
        %977 = vmatprep.mubr.f32.mxu0 0.0
        %978 = vmatmul.mubr.f32.gmra.mrb[0].mxu0 %v733
        %v979 = vpop.f32.mrb[0].mxu0
        %v980 = vadd.f32 %v835, %v979
        %v981 = vpop.f32.mrb[0].mxu0
        %982 = vmatprep.mubr.f32.mxu0 0.0
        %983 = vmatmul.mubr.f32.gmra.mrb[0].mxu0 %v735
        %v984 = vpop.f32.mrb[0].mxu0
        %v985 = vadd.f32 %v840, %v984
        %v986 = vpop.f32.mrb[0].mxu0
        %987 = vmatprep.mubr.f32.mxu0 0.0
        %988 = vmatmul.mubr.f32.gmra.mrb[0].mxu0 %v737
        %v989 = vpop.f32.mrb[0].mxu0
        %v990 = vadd.f32 %v845, %v989
        %v991 = vpop.f32.mrb[0].mxu0
        %992 = vmatprep.mubr.f32.mxu0 0.0
        %993 = vmatmul.mubr.f32.gmra.mrb[0].mxu0 %v739
        %v994 = vpop.f32.mrb[0].mxu0
        %v995 = vadd.f32 %v850, %v994
        %v996 = vpop.f32.mrb[0].mxu0
        %997 = vmatprep.mubr.f32.mxu0 0.0
        %998 = vmatmul.mubr.f32.gmra.mrb[0].mxu0 %v741
        %v999 = vpop.f32.mrb[0].mxu0
        %v1000 = vadd.f32 %v855, %v999
        %v1001 = vpop.f32.mrb[0].mxu0
        %1002 = vmatprep.mubr.f32.mxu0 0.0
        %1003 = vmatmul.mubr.f32.gmra.mrb[0].mxu0 %v743
        %v1004 = vpop.f32.mrb[0].mxu0
        %v1005 = vadd.f32 %v860, %v1004
        %v1006 = vpop.f32.mrb[0].mxu0
        %1007 = vmatprep.mubr.f32.mxu0 0.0
        %1008 = vmatmul.mubr.f32.gmra.mrb[0].mxu0 %v745
        %v1009 = vpop.f32.mrb[0].mxu0
        %v1010 = vadd.f32 %v865, %v1009
        %v1011 = vpop.f32.mrb[0].mxu0
        %1012 = vmatprep.mubr.f32.mxu0 0.0
        %1013 = vmatmul.mubr.f32.gmra.mrb[0].mxu0 %v747
        %v1014 = vpop.f32.mrb[0].mxu0
        %v1015 = vadd.f32 %v870, %v1014
        %v1016 = vpop.f32.mrb[0].mxu0
        %1017 = vmatprep.mubr.f32.mxu0 0.0
        %1018 = vmatmul.mubr.f32.gmra.mrb[0].mxu0 %v749
        %v1019 = vpop.f32.mrb[0].mxu0
        %v1020 = vadd.f32 %v875, %v1019
        %v1021 = vpop.f32.mrb[0].mxu0
        %1022 = vmatprep.mubr.f32.mxu0 0.0
        %1023 = vmatmul.mubr.f32.gmra.mrb[0].mxu0 %v751
        %v1024 = vpop.f32.mrb[0].mxu0
        %v1025 = vadd.f32 %v880, %v1024
        %v1026 = vpop.f32.mrb[0].mxu0
        %1027 = vmatprep.mubr.f32.mxu0 0.0
        %1028 = vmatmul.mubr.f32.gmra.mrb[0].mxu0 %v751
        %v1029 = vpop.f32.mrb[0].mxu0
        %v1030 = vadd.f32 %v885, %v1029
        %v1031 = vpop.f32.mrb[0].mxu0
        %1032 = vmatprep.mubr.f32.mxu0 0.0
        %1033 = vmatmul.mubr.f32.gmra.mrb[0].mxu0 %v751
        %v1034 = vpop.f32.mrb[0].mxu0
        %v1035 = vadd.f32 %v890, %v1034
        %v1036 = vpop.f32.mrb[0].mxu0
        %1037 = vmatprep.mubr.f32.mxu0 0.0
        %1038 = vmatmul.mubr.f32.gmra.mrb[0].mxu0 %v751
        %v1039 = vpop.f32.mrb[0].mxu0
        %v1040 = vadd.f32 %v895, %v1039
        %v1041 = vpop.f32.mrb[0].mxu0
        %1042 = vdwg.mxu0
        %v1043 = vsel %vm672, %v321, 0
        %v1045 = vsel %vm672, %v322, 0
        %v1047 = vsel %vm672, %v323, 0
        %v1049 = vsel %vm672, %v324, 0
        %v1051 = vsel %vm672, %v325, 0
        %v1053 = vsel %vm672, %v326, 0
        %v1055 = vsel %vm672, %v327, 0
        %v1057 = vsel %vm672, %v328, 0
        %v1059 = vsel %vm672, %v329, 0
        %v1061 = vsel %vm672, %v330, 0
        %v1063 = vsel %vm672, %v331, 0
        %v1065 = vsel %vm672, %v332, 0
        %v1067 = vsel %vm672, 0.0, 0
        %1069 = vmatprep.subr.mxu0 0.0
        %1070 = vmatpush1.msra.mxu0 %v389
        %1071 = vmatprep.subr.mxu0 0.0
        %1072 = vmatpush1.msra.mxu0 %v390
        %1073 = vmatprep.subr.mxu0 0.0
        %1074 = vmatpush1.msra.mxu0 %v391
        %1075 = vmatprep.subr.mxu0 0.0
        %1076 = vmatpush1.msra.mxu0 %v392
        %1077 = vmatprep.subr.mxu0 0.0
        %1078 = vmatpush1.msra.mxu0 %v393
        %1079 = vmatprep.subr.mxu0 0.0
        %1080 = vmatpush1.msra.mxu0 %v394
        %1081 = vmatprep.subr.mxu0 0.0
        %1082 = vmatpush1.msra.mxu0 %v395
        %1083 = vmatprep.subr.mxu0 0.0
        %1084 = vmatpush1.msra.mxu0 %v396
        %1085 = vmatprep.subr.mxu0 0.0
        %1086 = vmatpush1.msra.mxu0 %v397
        %1087 = vmatprep.subr.mxu0 0.0
        %1088 = vmatpush1.msra.mxu0 %v398
        %1089 = vmatprep.subr.mxu0 0.0
        %1090 = vmatpush1.msra.mxu0 %v399
        %1091 = vmatprep.subr.mxu0 0.0
        %1092 = vmatpush1.msra.mxu0 %v400
        %1093 = vmatprep.subr.mxu0 0.0
        %1094 = vmatpush1.msra.mxu0 %v401
        %1095 = vmatprep.subr.mxu0 0.0
        %1096 = vmatpush1.msra.mxu0 %v402
        %1097 = vmatprep.subr.mxu0 0.0
        %1098 = vmatpush1.msra.mxu0 %v403
        %1099 = vmatprep.subr.mxu0 0.0
        %1100 = vmatpush1.msra.mxu0 %v404
        %1101 = vmatprep.subr.mxu0 0.0
        %1102 = vmatpush1.msra.mxu0 %v405
        %1103 = vmatprep.subr.mxu0 0.0
        %1104 = vmatpush1.msra.mxu0 %v406
        %1105 = vmatprep.subr.mxu0 0.0
        %1106 = vmatpush1.msra.mxu0 %v407
        %1107 = vmatprep.subr.mxu0 0.0
        %1108 = vmatpush1.msra.mxu0 %v408
        %1109 = vmatprep.subr.mxu0 0.0
        %1110 = vmatpush1.msra.mxu0 0.0
        %1111 = vmatprep.subr.mxu0 0.0
        %1112 = vmatpush1.msra.mxu0 0.0
        %1113 = vmatprep.subr.mxu0 0.0
        %1114 = vmatpush1.msra.mxu0 0.0
        %1115 = vmatprep.subr.mxu0 0.0
        %1116 = vmatpush1.msra.mxu0 0.0
        %1117 = vmatprep.subr.mxu0 0.0
        %1118 = vmatpush1.msra.mxu0 0.0
        %1119 = vmatprep.subr.mxu0 0.0
        %1120 = vmatpush1.msra.mxu0 0.0
        %1121 = vmatprep.subr.mxu0 0.0
        %1122 = vmatpush1.msra.mxu0 0.0
        %1123 = vmatprep.subr.mxu0 0.0
        %1124 = vmatpush1.msra.mxu0 0.0
        %1125 = vmatprep.subr.mxu0 0.0
        %1126 = vmatpush1.msra.mxu0 0.0
        %1127 = vmatprep.subr.mxu0 0.0
        %1128 = vmatpush1.msra.mxu0 0.0
        %1129 = vmatprep.subr.mxu0 0.0
        %1130 = vmatpush1.msra.mxu0 0.0
        %1131 = vmatprep.subr.mxu0 0.0
        %1132 = vmatpush1.msra.mxu0 0.0
        %1133 = vmatprep.mubr.f32.mxu0 %v1043
        %1134 = vmatmul.mubr.f32.gmra.mrb[0].mxu0 %v705
        %v1135 = vpop.f32.mrb[0].mxu0
        %v1136 = vadd.f32 %v965, %v1135
        %v1137 = vpop.f32.mrb[0].mxu0
        %1138 = vmatprep.mubr.f32.mxu0 %v1045
        %1139 = vmatmul.mubr.f32.gmra.mrb[0].mxu0 %v706
        %v1140 = vpop.f32.mrb[0].mxu0
        %v1141 = vadd.f32 %v970, %v1140
        %v1142 = vpop.f32.mrb[0].mxu0
        %1143 = vmatprep.mubr.f32.mxu0 %v1047
        %1144 = vmatmul.mubr.f32.gmra.mrb[0].mxu0 %v707
        %v1145 = vpop.f32.mrb[0].mxu0
        %v1146 = vadd.f32 %v975, %v1145
        %v1147 = vpop.f32.mrb[0].mxu0
        %1148 = vmatprep.mubr.f32.mxu0 %v1049
        %1149 = vmatmul.mubr.f32.gmra.mrb[0].mxu0 %v708
        %v1150 = vpop.f32.mrb[0].mxu0
        %v1151 = vadd.f32 %v980, %v1150
        %v1152 = vpop.f32.mrb[0].mxu0
        %1153 = vmatprep.mubr.f32.mxu0 %v1051
        %1154 = vmatmul.mubr.f32.gmra.mrb[0].mxu0 %v709
        %v1155 = vpop.f32.mrb[0].mxu0
        %v1156 = vadd.f32 %v985, %v1155
        %v1157 = vpop.f32.mrb[0].mxu0
        %1158 = vmatprep.mubr.f32.mxu0 %v1053
        %1159 = vmatmul.mubr.f32.gmra.mrb[0].mxu0 %v710
        %v1160 = vpop.f32.mrb[0].mxu0
        %v1161 = vadd.f32 %v990, %v1160
        %v1162 = vpop.f32.mrb[0].mxu0
        %1163 = vmatprep.mubr.f32.mxu0 %v1055
        %1164 = vmatmul.mubr.f32.gmra.mrb[0].mxu0 %v711
        %v1165 = vpop.f32.mrb[0].mxu0
        %v1166 = vadd.f32 %v995, %v1165
        %v1167 = vpop.f32.mrb[0].mxu0
        %1168 = vmatprep.mubr.f32.mxu0 %v1057
        %1169 = vmatmul.mubr.f32.gmra.mrb[0].mxu0 %v712
        %v1170 = vpop.f32.mrb[0].mxu0
        %v1171 = vadd.f32 %v1000, %v1170
        %v1172 = vpop.f32.mrb[0].mxu0
        %1173 = vmatprep.mubr.f32.mxu0 %v1059
        %1174 = vmatmul.mubr.f32.gmra.mrb[0].mxu0 %v713
        %v1175 = vpop.f32.mrb[0].mxu0
        %v1176 = vadd.f32 %v1005, %v1175
        %v1177 = vpop.f32.mrb[0].mxu0
        %1178 = vmatprep.mubr.f32.mxu0 %v1061
        %1179 = vmatmul.mubr.f32.gmra.mrb[0].mxu0 %v714
        %v1180 = vpop.f32.mrb[0].mxu0
        %v1181 = vadd.f32 %v1010, %v1180
        %v1182 = vpop.f32.mrb[0].mxu0
        %1183 = vmatprep.mubr.f32.mxu0 %v1063
        %1184 = vmatmul.mubr.f32.gmra.mrb[0].mxu0 %v715
        %v1185 = vpop.f32.mrb[0].mxu0
        %v1186 = vadd.f32 %v1015, %v1185
        %v1187 = vpop.f32.mrb[0].mxu0
        %1188 = vmatprep.mubr.f32.mxu0 %v1065
        %1189 = vmatmul.mubr.f32.gmra.mrb[0].mxu0 %v716
        %v1190 = vpop.f32.mrb[0].mxu0
        %v1191 = vadd.f32 %v1020, %v1190
        %v1192 = vpop.f32.mrb[0].mxu0
        %1193 = vmatprep.mubr.f32.mxu0 %v1067
        %1194 = vmatmul.mubr.f32.gmra.mrb[0].mxu0 %v717
        %v1195 = vpop.f32.mrb[0].mxu0
        %v1196 = vadd.f32 %v1025, %v1195
        %v1197 = vpop.f32.mrb[0].mxu0
        %1198 = vmatprep.mubr.f32.mxu0 %v1067
        %1199 = vmatmul.mubr.f32.gmra.mrb[0].mxu0 %v718
        %v1200 = vpop.f32.mrb[0].mxu0
        %v1201 = vadd.f32 %v1030, %v1200
        %v1202 = vpop.f32.mrb[0].mxu0
        %1203 = vmatprep.mubr.f32.mxu0 %v1067
        %1204 = vmatmul.mubr.f32.gmra.mrb[0].mxu0 %v719
        %v1205 = vpop.f32.mrb[0].mxu0
        %v1206 = vadd.f32 %v1035, %v1205
        %v1207 = vpop.f32.mrb[0].mxu0
        %1208 = vmatprep.mubr.f32.mxu0 %v1067
        %1209 = vmatmul.mubr.f32.gmra.mrb[0].mxu0 %v720
        %v1210 = vpop.f32.mrb[0].mxu0
        %v1211 = vadd.f32 %v1040, %v1210
        %v1212 = vpop.f32.mrb[0].mxu0
        %1213 = vdwg.mxu0
        %v1214 = vxor.u32 %v1136, 2147483648
        %v1215 = vxor.u32 %v1141, 2147483648
        %v1216 = vxor.u32 %v1146, 2147483648
        %v1217 = vxor.u32 %v1151, 2147483648
        %v1218 = vxor.u32 %v1156, 2147483648
        %v1219 = vxor.u32 %v1161, 2147483648
        %v1220 = vxor.u32 %v1166, 2147483648
        %v1221 = vxor.u32 %v1171, 2147483648
        %v1222 = vxor.u32 %v1176, 2147483648
        %v1223 = vxor.u32 %v1181, 2147483648
        %v1224 = vxor.u32 %v1186, 2147483648
        %v1225 = vxor.u32 %v1191, 2147483648
        %v1226 = vxor.u32 %v1196, 2147483648
        %v1227 = vxor.u32 %v1201, 2147483648
        %v1228 = vxor.u32 %v1206, 2147483648
        %v1229 = vxor.u32 %v1211, 2147483648
        %v1230 = vmul.f32 %v1214, 1.442695
        %v1231 = vpow.pop %v1230
        %v1232 = vmul.f32 %v1215, 1.442695
        %v1233 = vpow.pop %v1232
        %v1234 = vmul.f32 %v1216, 1.442695
        %v1235 = vpow.pop %v1234
        %v1236 = vmul.f32 %v1217, 1.442695
        %v1237 = vpow.pop %v1236
        %v1238 = vmul.f32 %v1218, 1.442695
        %v1239 = vpow.pop %v1238
        %v1240 = vmul.f32 %v1219, 1.442695
        %v1241 = vpow.pop %v1240
        %v1242 = vmul.f32 %v1220, 1.442695
        %v1243 = vpow.pop %v1242
        %v1244 = vmul.f32 %v1221, 1.442695
        %v1245 = vpow.pop %v1244
        %v1246 = vmul.f32 %v1222, 1.442695
        %v1247 = vpow.pop %v1246
        %v1248 = vmul.f32 %v1223, 1.442695
        %v1249 = vpow.pop %v1248
        %v1250 = vmul.f32 %v1224, 1.442695
        %v1251 = vpow.pop %v1250
        %v1252 = vmul.f32 %v1225, 1.442695
        %v1253 = vpow.pop %v1252
        %v1254 = vmul.f32 %v1226, 1.442695
        %v1255 = vpow.pop %v1254
        %v1256 = vmul.f32 %v1227, 1.442695
        %v1257 = vpow.pop %v1256
        %v1258 = vmul.f32 %v1228, 1.442695
        %v1259 = vpow.pop %v1258
        %v1260 = vmul.f32 %v1229, 1.442695
        %v1261 = vpow.pop %v1260
        %v1262 = vadd.f32 %v1231, 1.0
        %v1263 = vadd.f32 %v1233, 1.0
        %v1264 = vadd.f32 %v1235, 1.0
        %v1265 = vadd.f32 %v1237, 1.0
        %v1266 = vadd.f32 %v1239, 1.0
        %v1267 = vadd.f32 %v1241, 1.0
        %v1268 = vadd.f32 %v1243, 1.0
        %v1269 = vadd.f32 %v1245, 1.0
        %v1270 = vadd.f32 %v1247, 1.0
        %v1271 = vadd.f32 %v1249, 1.0
        %v1272 = vadd.f32 %v1251, 1.0
        %v1273 = vadd.f32 %v1253, 1.0
        %v1274 = vadd.f32 %v1255, 1.0
        %v1275 = vadd.f32 %v1257, 1.0
        %v1276 = vadd.f32 %v1259, 1.0
        %v1277 = vadd.f32 %v1261, 1.0
        %v1278 = vrcp.pop %v1262
        %v1279 = vmul.f32 1.0, %v1278
        %v1280 = vrcp.pop %v1263
        %v1281 = vmul.f32 1.0, %v1280
        %v1282 = vrcp.pop %v1264
        %v1283 = vmul.f32 1.0, %v1282
        %v1284 = vrcp.pop %v1265
        %v1285 = vmul.f32 1.0, %v1284
        %v1286 = vrcp.pop %v1266
        %v1287 = vmul.f32 1.0, %v1286
        %v1288 = vrcp.pop %v1267
        %v1289 = vmul.f32 1.0, %v1288
        %v1290 = vrcp.pop %v1268
        %v1291 = vmul.f32 1.0, %v1290
        %v1292 = vrcp.pop %v1269
        %v1293 = vmul.f32 1.0, %v1292
        %v1294 = vrcp.pop %v1270
        %v1295 = vmul.f32 1.0, %v1294
        %v1296 = vrcp.pop %v1271
        %v1297 = vmul.f32 1.0, %v1296
        %v1298 = vrcp.pop %v1272
        %v1299 = vmul.f32 1.0, %v1298
        %v1300 = vrcp.pop %v1273
        %v1301 = vmul.f32 1.0, %v1300
        %v1302 = vrcp.pop %v1274
        %v1303 = vmul.f32 1.0, %v1302
        %v1304 = vrcp.pop %v1275
        %v1305 = vmul.f32 1.0, %v1304
        %v1306 = vrcp.pop %v1276
        %v1307 = vmul.f32 1.0, %v1306
        %v1308 = vrcp.pop %v1277
        %v1309 = vmul.f32 1.0, %v1308
        %1310 = vrot.lane.b32.xlu0 %v331, 32
        %v1311 = vpop.permute.xlu0 %1310
        %1312 = vrot.lane.b32.xlu0 %v332, 32
        %v1313 = vpop.permute.xlu0 %1312
        %v1316 = vmul.f32 %v1279, %v535
        %v1317 = vmul.f32 %v1281, %v537
        %v1318 = vmul.f32 %v1283, %v539
        %v1319 = vmul.f32 %v1285, %v541
        %v1320 = vmul.f32 %v1287, %v543
        %v1321 = vmul.f32 %v1289, %v545
        %v1322 = vmul.f32 %v1291, %v547
        %v1323 = vmul.f32 %v1293, %v549
        %v1324 = vmul.f32 %v1295, %v551
        %v1325 = vmul.f32 %v1297, %v553
        %v1326 = vmul.f32 %v1299, %v555
        %v1327 = vmul.f32 %v1301, %v557
        %v1328 = vmul.f32 %v1303, %v559
        %v1329 = vmul.f32 %v1305, %v561
        %v1330 = vmul.f32 %v1307, %v1311
        %v1331 = vmul.f32 %v1309, %v1313
        %1348 = vrot.lane.b32.xlu0 %v1316, 96
        %v1349 = vpop.permute.xlu0 %1348
        %1350 = vrot.lane.b32.xlu0 %v1317, 96
        %v1351 = vpop.permute.xlu0 %1350
        %1352 = vrot.lane.b32.xlu0 %v1318, 96
        %v1353 = vpop.permute.xlu0 %1352
        %1354 = vrot.lane.b32.xlu0 %v1319, 96
        %v1355 = vpop.permute.xlu0 %1354
        %1356 = vrot.lane.b32.xlu0 %v1320, 96
        %v1357 = vpop.permute.xlu0 %1356
        %1358 = vrot.lane.b32.xlu0 %v1321, 96
        %v1359 = vpop.permute.xlu0 %1358
        %1360 = vrot.lane.b32.xlu0 %v1322, 96
        %v1361 = vpop.permute.xlu0 %1360
        %1362 = vrot.lane.b32.xlu0 %v1323, 96
        %v1363 = vpop.permute.xlu0 %1362
        %1364 = vrot.lane.b32.xlu0 %v1324, 96
        %v1365 = vpop.permute.xlu0 %1364
        %1366 = vrot.lane.b32.xlu0 %v1325, 96
        %v1367 = vpop.permute.xlu0 %1366
        %1368 = vrot.lane.b32.xlu0 %v1326, 96
        %v1369 = vpop.permute.xlu0 %1368
        %1370 = vrot.lane.b32.xlu0 %v1327, 96
        %v1371 = vpop.permute.xlu0 %1370
        %1372 = vrot.lane.b32.xlu0 %v1328, 96
        %v1373 = vpop.permute.xlu0 %1372
        %1374 = vrot.lane.b32.xlu0 %v1329, 96
        %v1375 = vpop.permute.xlu0 %1374
        %1376 = vrot.lane.b32.xlu0 %v1330, 96
        %v1377 = vpop.permute.xlu0 %1376
        %1378 = vrot.lane.b32.xlu0 %v1331, 96
        %v1379 = vpop.permute.xlu0 %1378
        %1392 = vrot.lane.b32.xlu0 %v1349, 32
        %v1393 = vpop.permute.xlu0 %1392
        %1394 = vrot.lane.b32.xlu0 %v1351, 32
        %v1395 = vpop.permute.xlu0 %1394
        %1396 = vrot.lane.b32.xlu0 %v1353, 32
        %v1397 = vpop.permute.xlu0 %1396
        %1398 = vrot.lane.b32.xlu0 %v1355, 32
        %v1399 = vpop.permute.xlu0 %1398
        %1400 = vrot.lane.b32.xlu0 %v1357, 32
        %v1401 = vpop.permute.xlu0 %1400
        %1402 = vrot.lane.b32.xlu0 %v1359, 32
        %v1403 = vpop.permute.xlu0 %1402
        %1404 = vrot.lane.b32.xlu0 %v1361, 32
        %v1405 = vpop.permute.xlu0 %1404
        %1406 = vrot.lane.b32.xlu0 %v1363, 32
        %v1407 = vpop.permute.xlu0 %1406
        %1408 = vrot.lane.b32.xlu0 %v1365, 32
        %v1409 = vpop.permute.xlu0 %1408
        %1410 = vrot.lane.b32.xlu0 %v1367, 32
        %v1411 = vpop.permute.xlu0 %1410
        %1412 = vrot.lane.b32.xlu0 %v1369, 32
        %v1413 = vpop.permute.xlu0 %1412
        %1414 = vrot.lane.b32.xlu0 %v1371, 32
        %v1415 = vpop.permute.xlu0 %1414
        %1416 = vrot.lane.b32.xlu0 %v1373, 32
        %v1417 = vpop.permute.xlu0 %1416
        %1418 = vrot.lane.b32.xlu0 %v1375, 32
        %v1419 = vpop.permute.xlu0 %1418
        %1434 = vrot.lane.b32.xlu0 %v1349, 64
        %v1435 = vpop.permute.xlu0 %1434
        %1436 = vrot.lane.b32.xlu0 %v1351, 64
        %v1437 = vpop.permute.xlu0 %1436
        %1438 = vrot.lane.b32.xlu0 %v1353, 64
        %v1439 = vpop.permute.xlu0 %1438
        %1440 = vrot.lane.b32.xlu0 %v1355, 64
        %v1441 = vpop.permute.xlu0 %1440
        %1442 = vrot.lane.b32.xlu0 %v1357, 64
        %v1443 = vpop.permute.xlu0 %1442
        %1444 = vrot.lane.b32.xlu0 %v1359, 64
        %v1445 = vpop.permute.xlu0 %1444
        %1446 = vrot.lane.b32.xlu0 %v1361, 64
        %v1447 = vpop.permute.xlu0 %1446
        %1448 = vrot.lane.b32.xlu0 %v1363, 64
        %v1449 = vpop.permute.xlu0 %1448
        %1450 = vrot.lane.b32.xlu0 %v1365, 64
        %v1451 = vpop.permute.xlu0 %1450
        %1452 = vrot.lane.b32.xlu0 %v1367, 64
        %v1453 = vpop.permute.xlu0 %1452
        %1454 = vrot.lane.b32.xlu0 %v1369, 64
        %v1455 = vpop.permute.xlu0 %1454
        %1456 = vrot.lane.b32.xlu0 %v1371, 64
        %v1457 = vpop.permute.xlu0 %1456
        %1458 = vrot.lane.b32.xlu0 %v1373, 64
        %v1459 = vpop.permute.xlu0 %1458
        %1460 = vrot.lane.b32.xlu0 %v1375, 64
        %v1461 = vpop.permute.xlu0 %1460
        %1462 = vrot.lane.b32.xlu0 %v1377, 64
        %v1463 = vpop.permute.xlu0 %1462
        %1464 = vrot.lane.b32.xlu0 %v1379, 64
        %v1465 = vpop.permute.xlu0 %1464
        %1482 = vrot.lane.b32.xlu0 %v1353, 96
        %v1483 = vpop.permute.xlu0 %1482
        %1484 = vrot.lane.b32.xlu0 %v1355, 96
        %v1485 = vpop.permute.xlu0 %1484
        %1486 = vrot.lane.b32.xlu0 %v1357, 96
        %v1487 = vpop.permute.xlu0 %1486
        %1488 = vrot.lane.b32.xlu0 %v1359, 96
        %v1489 = vpop.permute.xlu0 %1488
        %1490 = vrot.lane.b32.xlu0 %v1361, 96
        %v1491 = vpop.permute.xlu0 %1490
        %1492 = vrot.lane.b32.xlu0 %v1363, 96
        %v1493 = vpop.permute.xlu0 %1492
        %1494 = vrot.lane.b32.xlu0 %v1365, 96
        %v1495 = vpop.permute.xlu0 %1494
        %1496 = vrot.lane.b32.xlu0 %v1367, 96
        %v1497 = vpop.permute.xlu0 %1496
        %1498 = vrot.lane.b32.xlu0 %v1369, 96
        %v1499 = vpop.permute.xlu0 %1498
        %1500 = vrot.lane.b32.xlu0 %v1371, 96
        %v1501 = vpop.permute.xlu0 %1500
        %1502 = vrot.lane.b32.xlu0 %v1373, 96
        %v1503 = vpop.permute.xlu0 %1502
        %1504 = vrot.lane.b32.xlu0 %v1375, 96
        %v1505 = vpop.permute.xlu0 %1504
        %1506 = vrot.lane.b32.xlu0 %v1377, 96
        %v1507 = vpop.permute.xlu0 %1506
        %1508 = vrot.lane.b32.xlu0 %v1379, 96
        %v1509 = vpop.permute.xlu0 %1508
        %v1524 = vsel %vm672, 0.0, %v1393
        %v1525 = vsel %vm672, 0.0, %v1395
        %v1526 = vsel %vm672, %v1349, %v1397
        %v1527 = vsel %vm672, %v1351, %v1399
        %v1528 = vsel %vm672, %v1353, %v1401
        %v1529 = vsel %vm672, %v1355, %v1403
        %v1530 = vsel %vm672, %v1357, %v1405
        %v1531 = vsel %vm672, %v1359, %v1407
        %v1532 = vsel %vm672, %v1361, %v1409
        %v1533 = vsel %vm672, %v1363, %v1411
        %v1534 = vsel %vm672, %v1365, %v1413
        %v1535 = vsel %vm672, %v1367, %v1415
        %v1536 = vsel %vm672, %v1369, %v1417
        %v1537 = vsel %vm672, %v1371, %v1419
        %v1538 = vsel %vm498, %v673, %v1435
        %v1539 = vsel %vm498, %v673, %v1437
        %v1540 = vsel %vm498, %v1524, %v1439
        %v1541 = vsel %vm498, %v1525, %v1441
        %v1542 = vsel %vm498, %v1526, %v1443
        %v1543 = vsel %vm498, %v1527, %v1445
        %v1544 = vsel %vm498, %v1528, %v1447
        %v1545 = vsel %vm498, %v1529, %v1449
        %v1546 = vsel %vm498, %v1530, %v1451
        %v1547 = vsel %vm498, %v1531, %v1453
        %v1548 = vsel %vm498, %v1532, %v1455
        %v1549 = vsel %vm498, %v1533, %v1457
        %v1550 = vsel %vm498, %v1534, %v1459
        %v1551 = vsel %vm498, %v1535, %v1461
        %v1552 = vsel %vm498, %v1536, %v1463
        %v1553 = vsel %vm498, %v1537, %v1465
        %v1554 = vsel %vm704, %v1538, %v1483
        %v1555 = vsel %vm704, %v1539, %v1485
        %v1556 = vsel %vm704, %v1540, %v1487
        %v1557 = vsel %vm704, %v1541, %v1489
        %v1558 = vsel %vm704, %v1542, %v1491
        %v1559 = vsel %vm704, %v1543, %v1493
        %v1560 = vsel %vm704, %v1544, %v1495
        %v1561 = vsel %vm704, %v1545, %v1497
        %v1562 = vsel %vm704, %v1546, %v1499
        %v1563 = vsel %vm704, %v1547, %v1501
        %v1564 = vsel %vm704, %v1548, %v1503
        %v1565 = vsel %vm704, %v1549, %v1505
        %v1566 = vsel %vm704, %v1550, %v1507
        %v1567 = vsel %vm704, %v1551, %v1509
        %v1568 = vsel %vm704, %v1552, %v656
        %v1569 = vsel %vm704, %v1553, %v656
        %1586 = vrot.lane.b32.xlu0 %v965, 64
        %v1587 = vpop.permute.xlu0 %1586
        %1588 = vrot.lane.b32.xlu0 %v970, 64
        %v1589 = vpop.permute.xlu0 %1588
        %1590 = vrot.lane.b32.xlu0 %v975, 64
        %v1591 = vpop.permute.xlu0 %1590
        %1592 = vrot.lane.b32.xlu0 %v980, 64
        %v1593 = vpop.permute.xlu0 %1592
        %1594 = vrot.lane.b32.xlu0 %v985, 64
        %v1595 = vpop.permute.xlu0 %1594
        %1596 = vrot.lane.b32.xlu0 %v990, 64
        %v1597 = vpop.permute.xlu0 %1596
        %1598 = vrot.lane.b32.xlu0 %v995, 64
        %v1599 = vpop.permute.xlu0 %1598
        %1600 = vrot.lane.b32.xlu0 %v1000, 64
        %v1601 = vpop.permute.xlu0 %1600
        %1602 = vrot.lane.b32.xlu0 %v1005, 64
        %v1603 = vpop.permute.xlu0 %1602
        %1604 = vrot.lane.b32.xlu0 %v1010, 64
        %v1605 = vpop.permute.xlu0 %1604
        %1606 = vrot.lane.b32.xlu0 %v1015, 64
        %v1607 = vpop.permute.xlu0 %1606
        %1608 = vrot.lane.b32.xlu0 %v1020, 64
        %v1609 = vpop.permute.xlu0 %1608
        %1610 = vrot.lane.b32.xlu0 %v1025, 64
        %v1611 = vpop.permute.xlu0 %1610
        %1612 = vrot.lane.b32.xlu0 %v1030, 64
        %v1613 = vpop.permute.xlu0 %1612
        %1614 = vrot.lane.b32.xlu0 %v1035, 64
        %v1615 = vpop.permute.xlu0 %1614
        %1616 = vrot.lane.b32.xlu0 %v1040, 64
        %v1617 = vpop.permute.xlu0 %1616
        %v1634 = vsel %vm672, %v1357, 0
        %v1636 = vsel %vm672, %v1359, 0
        %v1638 = vsel %vm672, %v1361, 0
        %v1640 = vsel %vm672, %v1363, 0
        %v1642 = vsel %vm672, %v1365, 0
        %v1644 = vsel %vm672, %v1367, 0
        %v1646 = vsel %vm672, %v1369, 0
        %v1648 = vsel %vm672, %v1371, 0
        %v1650 = vsel %vm672, %v1373, 0
        %v1652 = vsel %vm672, %v1375, 0
        %v1654 = vsel %vm672, %v1377, 0
        %v1656 = vsel %vm672, %v1379, 0
        %1658 = vmatprep.subr.mxu0 0.0
        %1659 = vmatpush1.msra.mxu0 %v409
        %1660 = vmatprep.subr.mxu0 0.0
        %1661 = vmatpush1.msra.mxu0 %v410
        %1662 = vmatprep.subr.mxu0 0.0
        %1663 = vmatpush1.msra.mxu0 %v411
        %1664 = vmatprep.subr.mxu0 0.0
        %1665 = vmatpush1.msra.mxu0 %v412
        %1666 = vmatprep.subr.mxu0 0.0
        %1667 = vmatpush1.msra.mxu0 %v413
        %1668 = vmatprep.subr.mxu0 0.0
        %1669 = vmatpush1.msra.mxu0 %v414
        %1670 = vmatprep.subr.mxu0 0.0
        %1671 = vmatpush1.msra.mxu0 %v415
        %1672 = vmatprep.subr.mxu0 0.0
        %1673 = vmatpush1.msra.mxu0 %v416
        %1674 = vmatprep.subr.mxu0 0.0
        %1675 = vmatpush1.msra.mxu0 %v417
        %1676 = vmatprep.subr.mxu0 0.0
        %1677 = vmatpush1.msra.mxu0 %v418
        %1678 = vmatprep.subr.mxu0 0.0
        %1679 = vmatpush1.msra.mxu0 %v419
        %1680 = vmatprep.subr.mxu0 0.0
        %1681 = vmatpush1.msra.mxu0 %v420
        %1682 = vmatprep.subr.mxu0 0.0
        %1683 = vmatpush1.msra.mxu0 %v421
        %1684 = vmatprep.subr.mxu0 0.0
        %1685 = vmatpush1.msra.mxu0 %v422
        %1686 = vmatprep.subr.mxu0 0.0
        %1687 = vmatpush1.msra.mxu0 %v423
        %1688 = vmatprep.subr.mxu0 0.0
        %1689 = vmatpush1.msra.mxu0 %v424
        %1690 = vmatprep.subr.mxu0 0.0
        %1691 = vmatpush1.msra.mxu0 %v425
        %1692 = vmatprep.subr.mxu0 0.0
        %1693 = vmatpush1.msra.mxu0 %v426
        %1694 = vmatprep.subr.mxu0 0.0
        %1695 = vmatpush1.msra.mxu0 %v427
        %1696 = vmatprep.subr.mxu0 0.0
        %1697 = vmatpush1.msra.mxu0 %v428
        %1698 = vmatprep.subr.mxu0 0.0
        %1699 = vmatpush1.msra.mxu0 0.0
        %1700 = vmatprep.subr.mxu0 0.0
        %1701 = vmatpush1.msra.mxu0 0.0
        %1702 = vmatprep.subr.mxu0 0.0
        %1703 = vmatpush1.msra.mxu0 0.0
        %1704 = vmatprep.subr.mxu0 0.0
        %1705 = vmatpush1.msra.mxu0 0.0
        %1706 = vmatprep.subr.mxu0 0.0
        %1707 = vmatpush1.msra.mxu0 0.0
        %1708 = vmatprep.subr.mxu0 0.0
        %1709 = vmatpush1.msra.mxu0 0.0
        %1710 = vmatprep.subr.mxu0 0.0
        %1711 = vmatpush1.msra.mxu0 0.0
        %1712 = vmatprep.subr.mxu0 0.0
        %1713 = vmatpush1.msra.mxu0 0.0
        %1714 = vmatprep.subr.mxu0 0.0
        %1715 = vmatpush1.msra.mxu0 0.0
        %1716 = vmatprep.subr.mxu0 0.0
        %1717 = vmatpush1.msra.mxu0 0.0
        %1718 = vmatprep.subr.mxu0 0.0
        %1719 = vmatpush1.msra.mxu0 0.0
        %1720 = vmatprep.subr.mxu0 0.0
        %1721 = vmatpush1.msra.mxu0 0.0
        %1722 = vmatprep.mubr.f32.mxu0 %v1634
        %1723 = vmatmul.mubr.f32.gmra.mrb[0].mxu0 %v1554
        %v1724 = vpop.f32.mrb[0].mxu0
        %v1725 = vadd.f32 %v1587, %v1724
        %v1726 = vpop.f32.mrb[0].mxu0
        %1727 = vmatprep.mubr.f32.mxu0 %v1636
        %1728 = vmatmul.mubr.f32.gmra.mrb[0].mxu0 %v1555
        %v1729 = vpop.f32.mrb[0].mxu0
        %v1730 = vadd.f32 %v1589, %v1729
        %v1731 = vpop.f32.mrb[0].mxu0
        %1732 = vmatprep.mubr.f32.mxu0 %v1638
        %1733 = vmatmul.mubr.f32.gmra.mrb[0].mxu0 %v1556
        %v1734 = vpop.f32.mrb[0].mxu0
        %v1735 = vadd.f32 %v1591, %v1734
        %v1736 = vpop.f32.mrb[0].mxu0
        %1737 = vmatprep.mubr.f32.mxu0 %v1640
        %1738 = vmatmul.mubr.f32.gmra.mrb[0].mxu0 %v1557
        %v1739 = vpop.f32.mrb[0].mxu0
        %v1740 = vadd.f32 %v1593, %v1739
        %v1741 = vpop.f32.mrb[0].mxu0
        %1742 = vmatprep.mubr.f32.mxu0 %v1642
        %1743 = vmatmul.mubr.f32.gmra.mrb[0].mxu0 %v1558
        %v1744 = vpop.f32.mrb[0].mxu0
        %v1745 = vadd.f32 %v1595, %v1744
        %v1746 = vpop.f32.mrb[0].mxu0
        %1747 = vmatprep.mubr.f32.mxu0 %v1644
        %1748 = vmatmul.mubr.f32.gmra.mrb[0].mxu0 %v1559
        %v1749 = vpop.f32.mrb[0].mxu0
        %v1750 = vadd.f32 %v1597, %v1749
        %v1751 = vpop.f32.mrb[0].mxu0
        %1752 = vmatprep.mubr.f32.mxu0 %v1646
        %1753 = vmatmul.mubr.f32.gmra.mrb[0].mxu0 %v1560
        %v1754 = vpop.f32.mrb[0].mxu0
        %v1755 = vadd.f32 %v1599, %v1754
        %v1756 = vpop.f32.mrb[0].mxu0
        %1757 = vmatprep.mubr.f32.mxu0 %v1648
        %1758 = vmatmul.mubr.f32.gmra.mrb[0].mxu0 %v1561
        %v1759 = vpop.f32.mrb[0].mxu0
        %v1760 = vadd.f32 %v1601, %v1759
        %v1761 = vpop.f32.mrb[0].mxu0
        %1762 = vmatprep.mubr.f32.mxu0 %v1650
        %1763 = vmatmul.mubr.f32.gmra.mrb[0].mxu0 %v1562
        %v1764 = vpop.f32.mrb[0].mxu0
        %v1765 = vadd.f32 %v1603, %v1764
        %v1766 = vpop.f32.mrb[0].mxu0
        %1767 = vmatprep.mubr.f32.mxu0 %v1652
        %1768 = vmatmul.mubr.f32.gmra.mrb[0].mxu0 %v1563
        %v1769 = vpop.f32.mrb[0].mxu0
        %v1770 = vadd.f32 %v1605, %v1769
        %v1771 = vpop.f32.mrb[0].mxu0
        %1772 = vmatprep.mubr.f32.mxu0 %v1654
        %1773 = vmatmul.mubr.f32.gmra.mrb[0].mxu0 %v1564
        %v1774 = vpop.f32.mrb[0].mxu0
        %v1775 = vadd.f32 %v1607, %v1774
        %v1776 = vpop.f32.mrb[0].mxu0
        %1777 = vmatprep.mubr.f32.mxu0 %v1656
        %1778 = vmatmul.mubr.f32.gmra.mrb[0].mxu0 %v1565
        %v1779 = vpop.f32.mrb[0].mxu0
        %v1780 = vadd.f32 %v1609, %v1779
        %v1781 = vpop.f32.mrb[0].mxu0
        %1782 = vmatprep.mubr.f32.mxu0 %v1067
        %1783 = vmatmul.mubr.f32.gmra.mrb[0].mxu0 %v1566
        %v1784 = vpop.f32.mrb[0].mxu0
        %v1785 = vadd.f32 %v1611, %v1784
        %v1786 = vpop.f32.mrb[0].mxu0
        %1787 = vmatprep.mubr.f32.mxu0 %v1067
        %1788 = vmatmul.mubr.f32.gmra.mrb[0].mxu0 %v1567
        %v1789 = vpop.f32.mrb[0].mxu0
        %v1790 = vadd.f32 %v1613, %v1789
        %v1791 = vpop.f32.mrb[0].mxu0
        %1792 = vmatprep.mubr.f32.mxu0 %v1067
        %1793 = vmatmul.mubr.f32.gmra.mrb[0].mxu0 %v1568
        %v1794 = vpop.f32.mrb[0].mxu0
        %v1795 = vadd.f32 %v1615, %v1794
        %v1796 = vpop.f32.mrb[0].mxu0
        %1797 = vmatprep.mubr.f32.mxu0 %v1067
        %1798 = vmatmul.mubr.f32.gmra.mrb[0].mxu0 %v1569
        %v1799 = vpop.f32.mrb[0].mxu0
        %v1800 = vadd.f32 %v1617, %v1799
        %v1801 = vpop.f32.mrb[0].mxu0
        %1802 = vdwg.mxu0
        %v1803 = vtanh.pop %v1725
        %v1804 = vtanh.pop %v1730
        %v1805 = vtanh.pop %v1735
        %v1806 = vtanh.pop %v1740
        %v1807 = vtanh.pop %v1745
        %v1808 = vtanh.pop %v1750
        %v1809 = vtanh.pop %v1755
        %v1810 = vtanh.pop %v1760
        %v1811 = vtanh.pop %v1765
        %v1812 = vtanh.pop %v1770
        %v1813 = vtanh.pop %v1775
        %v1814 = vtanh.pop %v1780
        %v1815 = vtanh.pop %v1785
        %v1816 = vtanh.pop %v1790
        %v1817 = vtanh.pop %v1795
        %v1818 = vtanh.pop %v1800
        %v1819 = vsub.f32 1.0, %v1279
        %v1820 = vsub.f32 1.0, %v1281
        %v1821 = vsub.f32 1.0, %v1283
        %v1822 = vsub.f32 1.0, %v1285
        %v1823 = vsub.f32 1.0, %v1287
        %v1824 = vsub.f32 1.0, %v1289
        %v1825 = vsub.f32 1.0, %v1291
        %v1826 = vsub.f32 1.0, %v1293
        %v1827 = vsub.f32 1.0, %v1295
        %v1828 = vsub.f32 1.0, %v1297
        %v1829 = vsub.f32 1.0, %v1299
        %v1830 = vsub.f32 1.0, %v1301
        %v1831 = vsub.f32 1.0, %v1303
        %v1832 = vsub.f32 1.0, %v1305
        %v1833 = vsub.f32 1.0, %v1307
        %v1834 = vsub.f32 1.0, %v1309
        %v1835 = vmul.f32 %v1819, %v317
        %v1836 = vmul.f32 %v1820, %v318
        %v1837 = vmul.f32 %v1821, %v319
        %v1838 = vmul.f32 %v1822, %v320
        %v1839 = vmul.f32 %v1823, %v321
        %v1840 = vmul.f32 %v1824, %v322
        %v1841 = vmul.f32 %v1825, %v323
        %v1842 = vmul.f32 %v1826, %v324
        %v1843 = vmul.f32 %v1827, %v325
        %v1844 = vmul.f32 %v1828, %v326
        %v1845 = vmul.f32 %v1829, %v327
        %v1846 = vmul.f32 %v1830, %v328
        %v1847 = vmul.f32 %v1831, %v329
        %v1848 = vmul.f32 %v1832, %v330
        %v1849 = vmul.f32 %v1833, %v331
        %v1850 = vmul.f32 %v1834, %v332
        %v1851 = vmul.f32 %v1279, %v1803
        %v1852 = vmul.f32 %v1281, %v1804
        %v1853 = vmul.f32 %v1283, %v1805
        %v1854 = vmul.f32 %v1285, %v1806
        %v1855 = vmul.f32 %v1287, %v1807
        %v1856 = vmul.f32 %v1289, %v1808
        %v1857 = vmul.f32 %v1291, %v1809
        %v1858 = vmul.f32 %v1293, %v1810
        %v1859 = vmul.f32 %v1295, %v1811
        %v1860 = vmul.f32 %v1297, %v1812
        %v1861 = vmul.f32 %v1299, %v1813
        %v1862 = vmul.f32 %v1301, %v1814
        %v1863 = vmul.f32 %v1303, %v1815
        %v1864 = vmul.f32 %v1305, %v1816
        %v1865 = vmul.f32 %v1307, %v1817
        %v1866 = vmul.f32 %v1309, %v1818
        %v1867 = vadd.f32 %v1835, %v1851
        %v1868 = vadd.f32 %v1836, %v1852
        %v1869 = vadd.f32 %v1837, %v1853
        %v1870 = vadd.f32 %v1838, %v1854
        %v1871 = vadd.f32 %v1839, %v1855
        %v1872 = vadd.f32 %v1840, %v1856
        %v1873 = vadd.f32 %v1841, %v1857
        %v1874 = vadd.f32 %v1842, %v1858
        %v1875 = vadd.f32 %v1843, %v1859
        %v1876 = vadd.f32 %v1844, %v1860
        %v1877 = vadd.f32 %v1845, %v1861
        %v1878 = vadd.f32 %v1846, %v1862
        %v1879 = vadd.f32 %v1847, %v1863
        %v1880 = vadd.f32 %v1848, %v1864
        %v1881 = vadd.f32 %v1849, %v1865
        %v1882 = vadd.f32 %v1850, %v1866
        %1883 = vst.msk [vmem:[%s295] sm:$0xff] %vm672, %v1867
        %1884 = vst.msk [vmem:[%s295 + $0x8] sm:$0xff] %vm672, %v1868
        %1885 = vst.msk [vmem:[%s295 + $0x10] sm:$0xff] %vm672, %v1869
        %1886 = vst.msk [vmem:[%s295 + $0x18] sm:$0xff] %vm672, %v1870
        %1887 = vst.msk [vmem:[%s295 + $0x20] sm:$0xff] %vm672, %v1871
        %1888 = vst.msk [vmem:[%s295 + $0x28] sm:$0xff] %vm672, %v1872
        %1889 = vst.msk [vmem:[%s295 + $0x30] sm:$0xff] %vm672, %v1873
        %1890 = vst.msk [vmem:[%s295 + $0x38] sm:$0xff] %vm672, %v1874
        %1891 = vst.msk [vmem:[%s295 + $0x40] sm:$0xff] %vm672, %v1875
        %1892 = vst.msk [vmem:[%s295 + $0x48] sm:$0xff] %vm672, %v1876
        %1893 = vst.msk [vmem:[%s295 + $0x50] sm:$0xff] %vm672, %v1877
        %1894 = vst.msk [vmem:[%s295 + $0x58] sm:$0xff] %vm672, %v1878
        %1895 = vst.msk [vmem:[%s295 + $0x60] sm:$0xff] %vm672, %v1879
        %1896 = vst.msk [vmem:[%s295 + $0x68] sm:$0xff] %vm672, %v1880
        %1897 = vst.msk [vmem:[%s295 + $0x70] sm:$0xff] %vm672, %v1881
        %1898 = vst.msk [vmem:[%s295 + $0x78] sm:$0xff] %vm672, %v1882
        %s1899 = sand.u32 %s182, 1
        %s1900 = scalar_lea.sflag [#allocation3], %s1899
        %s1901 = sand.u32 %s182, 1
        %s1902 = smul.addr %s1901, 128
        %s1903 = scalar_lea.vmem [#allocation2], %s1902
        // Predicated region
        $region45: #{sep_conv_gru_pallas.3} parent=43 // pred_check
          %p1904 = pneg %p192
        $region46: #{sep_conv_gru_pallas.3} parent=43 // pred_check_branch
          %1906 = sbr.rel (%p1904) target = $region48
        $region47: #{sep_conv_gru_pallas.3} parent=43 // pred_region
          %s1907 = smul.u32 2, %s25
          %s1909 = ssub.s32 2048, 2048
          %1910 = vsyncadd %s1900, %s1909
          %s1911 = smul.addr %s24, 16
          %s1912 = sadd.s32 %s1907, %s1911
          %s1913 = smul.addr %s1912, 128
          %s1914 = scalar_lea.hbm %s6, %s1913
          %s1915 = sshll.u32 %s1903, 4
          %s1916 = int_to_ptr.vmem [resolvable:$true] %s1915
          %1921 = dma.vmem_to_hbm [thread:$0]  %s1916, 2048, %s1914, %s1900, 128, 128, 8
        $region48: #{sep_conv_gru_pallas.3} parent=43 // pred_fallthru
          _
      $region44: #{sep_conv_gru_pallas.3} parent=5 // pred_fallthru
        _
      %p1922 = scmp.le.s32.totalorder 2, %s15
      // Predicated region
      $region49: #{sep_conv_gru_pallas.3} parent=5 // pred_check
        %p1923 = pneg %p1922
      $region50: #{sep_conv_gru_pallas.3} parent=5 // pred_check_branch
        %1925 = sbr.rel (%p1923) target = $region52
      $region51: #{sep_conv_gru_pallas.3} parent=5 // pred_region
        %s1926 = ssub.s32 %s15, 2
        // Predicated region
        $region53: #{sep_conv_gru_pallas.3} parent=51 // pred_check
          %p1927 = pneg %p198
        $region54: #{sep_conv_gru_pallas.3} parent=51 // pred_check_branch
          %1929 = sbr.rel (%p1927) target = $region56
        $region55: #{sep_conv_gru_pallas.3} parent=51 // pred_region
          %s1930 = sand.u32 %s183, 1
          %s1931 = scalar_lea.sflag [#allocation3], %s1930
          %s1932 = sand.u32 %s183, 1
          %s1933 = smul.addr %s1932, 128
          %s1934 = scalar_lea.vmem [#allocation2], %s1933
          %1935 = dma.done %s1931, 2048
        $region56: #{sep_conv_gru_pallas.3} parent=51 // pred_fallthru
          _
      $region52: #{sep_conv_gru_pallas.3} parent=5 // pred_fallthru
        _
    $region6: #{sep_conv_gru_pallas.3} parent=1 // loop_footer
      %s19 = sadd.s32 1, %s15
    $region7: #{sep_conv_gru_pallas.3} parent=1 // loop_footer_branch
      %14 = sbr.rel target = $region3
    $region8: #{sep_conv_gru_pallas.3} parent=1 // loop_exit
      _
    %1936 = vsyncpa [#allocation3], 1
    %s1937 = scalar_lea.sflag [#allocation3], 1
    %1938 = vsyncpa %s1937, 1

// kernel: sep_conv_gru_pallas.2
$region0: #{sep_conv_gru_pallas.2}
  #allocation0 [shape = 'u32[]', space=smem, size = 0x4, offset = 0x4, fixed_abs, tag = 'smem constant byte address 0x4 - core index']
  #allocation1 [shape = 'u32[144,128]{1,0:T(1,128)}', space=vmem, size = 0x12000, scoped, tag = 'internal scratch']
  %s0 = inlined_call_operand.vmem [shape: f32[16,16,32], index: 0, kind: input, shape index: {}]
  %s1 = inlined_call_operand.vmem [shape: f32[16,16,64], index: 1, kind: input, shape index: {}]
  %s2 = inlined_call_operand.vmem [shape: f32[320,96], index: 2, kind: input, shape index: {}]
  %s3 = inlined_call_operand.vmem [shape: f32[160,64], index: 3, kind: input, shape index: {}]
  %s4 = inlined_call_operand.vmem [shape: f32[160,32], index: 4, kind: input, shape index: {}]
  %s5 = inlined_call_operand.vmem [shape: f32[1,96], index: 5, kind: input, shape index: {}]
  %s6 = inlined_call_operand.vmem [shape: f32[16,16,32], index: 6, kind: output, shape index: {}]
  %s7 = sld [smem:[#allocation0]]
  $region34: #{sep_conv_gru_pallas.2} parent=0
    _
  %s9 = ssub.s32 1, %s7
  %s10 = scalar_select 0, %s9, %s7
  // Predicated region
  $region2: #{sep_conv_gru_pallas.2} parent=0 // pred_check
    _
  $region3: #{sep_conv_gru_pallas.2} parent=0 // pred_check_branch
    %12 = sbr.rel (0) target = $region5
  $region4: #{sep_conv_gru_pallas.2} parent=0 // pred_region
    _
  $region5: #{sep_conv_gru_pallas.2} parent=0 // pred_fallthru
    _
  // Predicated region
  $region6: #{sep_conv_gru_pallas.2} parent=0 // pred_check
    _
  $region7: #{sep_conv_gru_pallas.2} parent=0 // pred_check_branch
    %14 = sbr.rel (0) target = $region9
  $region8: #{sep_conv_gru_pallas.2} parent=0 // pred_region
    _
  $region9: #{sep_conv_gru_pallas.2} parent=0 // pred_fallthru
    _
  // Predicated region
  $region10: #{sep_conv_gru_pallas.2} parent=0 // pred_check
    _
  $region11: #{sep_conv_gru_pallas.2} parent=0 // pred_check_branch
    %16 = sbr.rel (0) target = $region13
  $region12: #{sep_conv_gru_pallas.2} parent=0 // pred_region
    _
  $region13: #{sep_conv_gru_pallas.2} parent=0 // pred_fallthru
    _
  // Predicated region
  $region14: #{sep_conv_gru_pallas.2} parent=0 // pred_check
    _
  $region15: #{sep_conv_gru_pallas.2} parent=0 // pred_check_branch
    %18 = sbr.rel (0) target = $region17
  $region16: #{sep_conv_gru_pallas.2} parent=0 // pred_region
    _
  $region17: #{sep_conv_gru_pallas.2} parent=0 // pred_fallthru
    _
  // Predicated region
  $region18: #{sep_conv_gru_pallas.2} parent=0 // pred_check
    _
  $region19: #{sep_conv_gru_pallas.2} parent=0 // pred_check_branch
    %20 = sbr.rel (0) target = $region21
  $region20: #{sep_conv_gru_pallas.2} parent=0 // pred_region
    _
  $region21: #{sep_conv_gru_pallas.2} parent=0 // pred_fallthru
    _
  // Predicated region
  $region22: #{sep_conv_gru_pallas.2} parent=0 // pred_check
    _
  $region23: #{sep_conv_gru_pallas.2} parent=0 // pred_check_branch
    %22 = sbr.rel (0) target = $region25
  $region24: #{sep_conv_gru_pallas.2} parent=0 // pred_region
    _
  $region25: #{sep_conv_gru_pallas.2} parent=0 // pred_fallthru
    _
  %v23 = vld [vmem:[%s0] sm:$0xff]
  %v24 = vld [vmem:[%s0 + $0x8] sm:$0xff]
  %v25 = vld [vmem:[%s0 + $0x10] sm:$0xff]
  %v26 = vld [vmem:[%s0 + $0x18] sm:$0xff]
  %v27 = vld [vmem:[%s0 + $0x20] sm:$0xff]
  %v28 = vld [vmem:[%s0 + $0x28] sm:$0xff]
  %v29 = vld [vmem:[%s0 + $0x30] sm:$0xff]
  %v30 = vld [vmem:[%s0 + $0x38] sm:$0xff]
  %v31 = vld [vmem:[%s0 + $0x40] sm:$0xff]
  %v32 = vld [vmem:[%s0 + $0x48] sm:$0xff]
  %v33 = vld [vmem:[%s0 + $0x50] sm:$0xff]
  %v34 = vld [vmem:[%s0 + $0x58] sm:$0xff]
  %v35 = vld [vmem:[%s0 + $0x60] sm:$0xff]
  %v36 = vld [vmem:[%s0 + $0x68] sm:$0xff]
  %v37 = vld [vmem:[%s0 + $0x70] sm:$0xff]
  %v38 = vld [vmem:[%s0 + $0x78] sm:$0xff]
  %v39 = vld [vmem:[%s0 + $0x80] sm:$0xff]
  %v40 = vld [vmem:[%s0 + $0x88] sm:$0xff]
  %v41 = vld [vmem:[%s0 + $0x90] sm:$0xff]
  %v42 = vld [vmem:[%s0 + $0x98] sm:$0xff]
  %v43 = vld [vmem:[%s0 + $0xa0] sm:$0xff]
  %v44 = vld [vmem:[%s0 + $0xa8] sm:$0xff]
  %v45 = vld [vmem:[%s0 + $0xb0] sm:$0xff]
  %v46 = vld [vmem:[%s0 + $0xb8] sm:$0xff]
  %v47 = vld [vmem:[%s0 + $0xc0] sm:$0xff]
  %v48 = vld [vmem:[%s0 + $0xc8] sm:$0xff]
  %v49 = vld [vmem:[%s0 + $0xd0] sm:$0xff]
  %v50 = vld [vmem:[%s0 + $0xd8] sm:$0xff]
  %v51 = vld [vmem:[%s0 + $0xe0] sm:$0xff]
  %v52 = vld [vmem:[%s0 + $0xe8] sm:$0xff]
  %v53 = vld [vmem:[%s0 + $0xf0] sm:$0xff]
  %v54 = vld [vmem:[%s0 + $0xf8] sm:$0xff]
  %v55 = vld [vmem:[%s1] sm:$0xff]
  %v56 = vld [vmem:[%s1 + $0x8] sm:$0xff]
  %v57 = vld [vmem:[%s1 + $0x10] sm:$0xff]
  %v58 = vld [vmem:[%s1 + $0x18] sm:$0xff]
  %v59 = vld [vmem:[%s1 + $0x20] sm:$0xff]
  %v60 = vld [vmem:[%s1 + $0x28] sm:$0xff]
  %v61 = vld [vmem:[%s1 + $0x30] sm:$0xff]
  %v62 = vld [vmem:[%s1 + $0x38] sm:$0xff]
  %v63 = vld [vmem:[%s1 + $0x40] sm:$0xff]
  %v64 = vld [vmem:[%s1 + $0x48] sm:$0xff]
  %v65 = vld [vmem:[%s1 + $0x50] sm:$0xff]
  %v66 = vld [vmem:[%s1 + $0x58] sm:$0xff]
  %v67 = vld [vmem:[%s1 + $0x60] sm:$0xff]
  %v68 = vld [vmem:[%s1 + $0x68] sm:$0xff]
  %v69 = vld [vmem:[%s1 + $0x70] sm:$0xff]
  %v70 = vld [vmem:[%s1 + $0x78] sm:$0xff]
  %v71 = vld [vmem:[%s1 + $0x80] sm:$0xff]
  %v72 = vld [vmem:[%s1 + $0x88] sm:$0xff]
  %v73 = vld [vmem:[%s1 + $0x90] sm:$0xff]
  %v74 = vld [vmem:[%s1 + $0x98] sm:$0xff]
  %v75 = vld [vmem:[%s1 + $0xa0] sm:$0xff]
  %v76 = vld [vmem:[%s1 + $0xa8] sm:$0xff]
  %v77 = vld [vmem:[%s1 + $0xb0] sm:$0xff]
  %v78 = vld [vmem:[%s1 + $0xb8] sm:$0xff]
  %v79 = vld [vmem:[%s1 + $0xc0] sm:$0xff]
  %v80 = vld [vmem:[%s1 + $0xc8] sm:$0xff]
  %v81 = vld [vmem:[%s1 + $0xd0] sm:$0xff]
  %v82 = vld [vmem:[%s1 + $0xd8] sm:$0xff]
  %v83 = vld [vmem:[%s1 + $0xe0] sm:$0xff]
  %v84 = vld [vmem:[%s1 + $0xe8] sm:$0xff]
  %v85 = vld [vmem:[%s1 + $0xf0] sm:$0xff]
  %v86 = vld [vmem:[%s1 + $0xf8] sm:$0xff]
  %v87 = vld [vmem:[%s2] sm:$0xff]
  %v88 = vld [vmem:[%s2 + $0x8] sm:$0xff]
  %v89 = vld [vmem:[%s2 + $0x10] sm:$0xff]
  %v90 = vld [vmem:[%s2 + $0x18] sm:$0xff]
  %v91 = vld [vmem:[%s2 + $0x20] sm:$0xff]
  %v92 = vld [vmem:[%s2 + $0x28] sm:$0xff]
  %v93 = vld [vmem:[%s2 + $0x30] sm:$0xff]
  %v94 = vld [vmem:[%s2 + $0x38] sm:$0xff]
  %v95 = vld [vmem:[%s2 + $0x40] sm:$0xff]
  %v96 = vld [vmem:[%s2 + $0x48] sm:$0xff]
  %v97 = vld [vmem:[%s2 + $0x50] sm:$0xff]
  %v98 = vld [vmem:[%s2 + $0x58] sm:$0xff]
  %v99 = vld [vmem:[%s2 + $0x60] sm:$0xff]
  %v100 = vld [vmem:[%s2 + $0x68] sm:$0xff]
  %v101 = vld [vmem:[%s2 + $0x70] sm:$0xff]
  %v102 = vld [vmem:[%s2 + $0x78] sm:$0xff]
  %v103 = vld [vmem:[%s2 + $0x80] sm:$0xff]
  %v104 = vld [vmem:[%s2 + $0x88] sm:$0xff]
  %v105 = vld [vmem:[%s2 + $0x90] sm:$0xff]
  %v106 = vld [vmem:[%s2 + $0x98] sm:$0xff]
  %v107 = vld [vmem:[%s2 + $0xa0] sm:$0xff]
  %v108 = vld [vmem:[%s2 + $0xa8] sm:$0xff]
  %v109 = vld [vmem:[%s2 + $0xb0] sm:$0xff]
  %v110 = vld [vmem:[%s2 + $0xb8] sm:$0xff]
  %v111 = vld [vmem:[%s2 + $0xc0] sm:$0xff]
  %v112 = vld [vmem:[%s2 + $0xc8] sm:$0xff]
  %v113 = vld [vmem:[%s2 + $0xd0] sm:$0xff]
  %v114 = vld [vmem:[%s2 + $0xd8] sm:$0xff]
  %v115 = vld [vmem:[%s2 + $0xe0] sm:$0xff]
  %v116 = vld [vmem:[%s2 + $0xe8] sm:$0xff]
  %v117 = vld [vmem:[%s2 + $0xf0] sm:$0xff]
  %v118 = vld [vmem:[%s2 + $0xf8] sm:$0xff]
  %v119 = vld [vmem:[%s2 + $0x100] sm:$0xff]
  %v120 = vld [vmem:[%s2 + $0x108] sm:$0xff]
  %v121 = vld [vmem:[%s2 + $0x110] sm:$0xff]
  %v122 = vld [vmem:[%s2 + $0x118] sm:$0xff]
  %v123 = vld [vmem:[%s2 + $0x120] sm:$0xff]
  %v124 = vld [vmem:[%s2 + $0x128] sm:$0xff]
  %v125 = vld [vmem:[%s2 + $0x130] sm:$0xff]
  %v126 = vld [vmem:[%s2 + $0x138] sm:$0xff]
  %v127 = vld [vmem:[%s3] sm:$0xff]
  %v128 = vld [vmem:[%s3 + $0x8] sm:$0xff]
  %v129 = vld [vmem:[%s3 + $0x10] sm:$0xff]
  %v130 = vld [vmem:[%s3 + $0x18] sm:$0xff]
  %v131 = vld [vmem:[%s3 + $0x20] sm:$0xff]
  %v132 = vld [vmem:[%s3 + $0x28] sm:$0xff]
  %v133 = vld [vmem:[%s3 + $0x30] sm:$0xff]
  %v134 = vld [vmem:[%s3 + $0x38] sm:$0xff]
  %v135 = vld [vmem:[%s3 + $0x40] sm:$0xff]
  %v136 = vld [vmem:[%s3 + $0x48] sm:$0xff]
  %v137 = vld [vmem:[%s3 + $0x50] sm:$0xff]
  %v138 = vld [vmem:[%s3 + $0x58] sm:$0xff]
  %v139 = vld [vmem:[%s3 + $0x60] sm:$0xff]
  %v140 = vld [vmem:[%s3 + $0x68] sm:$0xff]
  %v141 = vld [vmem:[%s3 + $0x70] sm:$0xff]
  %v142 = vld [vmem:[%s3 + $0x78] sm:$0xff]
  %v143 = vld [vmem:[%s3 + $0x80] sm:$0xff]
  %v144 = vld [vmem:[%s3 + $0x88] sm:$0xff]
  %v145 = vld [vmem:[%s3 + $0x90] sm:$0xff]
  %v146 = vld [vmem:[%s3 + $0x98] sm:$0xff]
  %v147 = vld [vmem:[%s4] sm:$0xff]
  %v148 = vld [vmem:[%s4 + $0x8] sm:$0xff]
  %v149 = vld [vmem:[%s4 + $0x10] sm:$0xff]
  %v150 = vld [vmem:[%s4 + $0x18] sm:$0xff]
  %v151 = vld [vmem:[%s4 + $0x20] sm:$0xff]
  %v152 = vld [vmem:[%s4 + $0x28] sm:$0xff]
  %v153 = vld [vmem:[%s4 + $0x30] sm:$0xff]
  %v154 = vld [vmem:[%s4 + $0x38] sm:$0xff]
  %v155 = vld [vmem:[%s4 + $0x40] sm:$0xff]
  %v156 = vld [vmem:[%s4 + $0x48] sm:$0xff]
  %v157 = vld [vmem:[%s4 + $0x50] sm:$0xff]
  %v158 = vld [vmem:[%s4 + $0x58] sm:$0xff]
  %v159 = vld [vmem:[%s4 + $0x60] sm:$0xff]
  %v160 = vld [vmem:[%s4 + $0x68] sm:$0xff]
  %v161 = vld [vmem:[%s4 + $0x70] sm:$0xff]
  %v162 = vld [vmem:[%s4 + $0x78] sm:$0xff]
  %v163 = vld [vmem:[%s4 + $0x80] sm:$0xff]
  %v164 = vld [vmem:[%s4 + $0x88] sm:$0xff]
  %v165 = vld [vmem:[%s4 + $0x90] sm:$0xff]
  %v166 = vld [vmem:[%s4 + $0x98] sm:$0xff]
  %v167 = vld [vmem:[%s5] sm:$0x1]
  %vm200 = vcmask 1041408
  %v201 = vrot.slane %v55, 6
  %v202 = vrot.slane %v56, 6
  %v203 = vsel %vm200, %v201, %v202
  %v204 = vrot.slane %v57, 6
  %v205 = vrot.slane %v58, 6
  %v206 = vsel %vm200, %v204, %v205
  %v207 = vrot.slane %v59, 6
  %v208 = vrot.slane %v60, 6
  %v209 = vsel %vm200, %v207, %v208
  %v210 = vrot.slane %v61, 6
  %v211 = vrot.slane %v62, 6
  %v212 = vsel %vm200, %v210, %v211
  %v213 = vrot.slane %v63, 6
  %v214 = vrot.slane %v64, 6
  %v215 = vsel %vm200, %v213, %v214
  %v216 = vrot.slane %v65, 6
  %v217 = vrot.slane %v66, 6
  %v218 = vsel %vm200, %v216, %v217
  %v219 = vrot.slane %v67, 6
  %v220 = vrot.slane %v68, 6
  %v221 = vsel %vm200, %v219, %v220
  %v222 = vrot.slane %v69, 6
  %v223 = vrot.slane %v70, 6
  %v224 = vsel %vm200, %v222, %v223
  %v225 = vrot.slane %v71, 6
  %v226 = vrot.slane %v72, 6
  %v227 = vsel %vm200, %v225, %v226
  %v228 = vrot.slane %v73, 6
  %v229 = vrot.slane %v74, 6
  %v230 = vsel %vm200, %v228, %v229
  %v231 = vrot.slane %v75, 6
  %v232 = vrot.slane %v76, 6
  %v233 = vsel %vm200, %v231, %v232
  %v234 = vrot.slane %v77, 6
  %v235 = vrot.slane %v78, 6
  %v236 = vsel %vm200, %v234, %v235
  %v237 = vrot.slane %v79, 6
  %v238 = vrot.slane %v80, 6
  %v239 = vsel %vm200, %v237, %v238
  %v240 = vrot.slane %v81, 6
  %v241 = vrot.slane %v82, 6
  %v242 = vsel %vm200, %v240, %v241
  %v243 = vrot.slane %v83, 6
  %v244 = vrot.slane %v84, 6
  %v245 = vsel %vm200, %v243, %v244
  %v246 = vrot.slane %v85, 6
  %v247 = vrot.slane %v86, 6
  %v248 = vsel %vm200, %v246, %v247
  %v297 = vsel %vm200, 0.0, %v201
  %v298 = vsel %vm200, 0.0, %v204
  %v299 = vsel %vm200, 0.0, %v207
  %v300 = vsel %vm200, 0.0, %v210
  %v301 = vsel %vm200, 0.0, %v213
  %v302 = vsel %vm200, 0.0, %v216
  %v303 = vsel %vm200, 0.0, %v219
  %v304 = vsel %vm200, 0.0, %v222
  %v305 = vsel %vm200, 0.0, %v225
  %v306 = vsel %vm200, 0.0, %v228
  %v307 = vsel %vm200, 0.0, %v231
  %v308 = vsel %vm200, 0.0, %v234
  %v309 = vsel %vm200, 0.0, %v237
  %v310 = vsel %vm200, 0.0, %v240
  %v311 = vsel %vm200, 0.0, %v243
  %v312 = vsel %vm200, 0.0, %v246
  %v313 = vsel %vm200, %v202, 0.0
  %v314 = vsel %vm200, %v205, 0.0
  %v315 = vsel %vm200, %v208, 0.0
  %v316 = vsel %vm200, %v211, 0.0
  %v317 = vsel %vm200, %v214, 0.0
  %v318 = vsel %vm200, %v217, 0.0
  %v319 = vsel %vm200, %v220, 0.0
  %v320 = vsel %vm200, %v223, 0.0
  %v321 = vsel %vm200, %v226, 0.0
  %v322 = vsel %vm200, %v229, 0.0
  %v323 = vsel %vm200, %v232, 0.0
  %v324 = vsel %vm200, %v235, 0.0
  %v325 = vsel %vm200, %v238, 0.0
  %v326 = vsel %vm200, %v241, 0.0
  %v327 = vsel %vm200, %v244, 0.0
  %v328 = vsel %vm200, %v247, 0.0
  %vm361 = vcmask 1046528
  %v362 = vrot.slane %v297, 1
  %v363 = vrot.slane %v203, 1
  %v364 = vsel %vm361, %v362, %v363
  %v365 = vrot.slane %v313, 1
  %v366 = vsel %vm361, %v363, %v365
  %v367 = vrot.slane %v298, 1
  %v368 = vrot.slane %v206, 1
  %v369 = vsel %vm361, %v367, %v368
  %v370 = vrot.slane %v314, 1
  %v371 = vsel %vm361, %v368, %v370
  %v372 = vrot.slane %v299, 1
  %v373 = vrot.slane %v209, 1
  %v374 = vsel %vm361, %v372, %v373
  %v375 = vrot.slane %v315, 1
  %v376 = vsel %vm361, %v373, %v375
  %v377 = vrot.slane %v300, 1
  %v378 = vrot.slane %v212, 1
  %v379 = vsel %vm361, %v377, %v378
  %v380 = vrot.slane %v316, 1
  %v381 = vsel %vm361, %v378, %v380
  %v382 = vrot.slane %v301, 1
  %v383 = vrot.slane %v215, 1
  %v384 = vsel %vm361, %v382, %v383
  %v385 = vrot.slane %v317, 1
  %v386 = vsel %vm361, %v383, %v385
  %v387 = vrot.slane %v302, 1
  %v388 = vrot.slane %v218, 1
  %v389 = vsel %vm361, %v387, %v388
  %v390 = vrot.slane %v318, 1
  %v391 = vsel %vm361, %v388, %v390
  %v392 = vrot.slane %v303, 1
  %v393 = vrot.slane %v221, 1
  %v394 = vsel %vm361, %v392, %v393
  %v395 = vrot.slane %v319, 1
  %v396 = vsel %vm361, %v393, %v395
  %v397 = vrot.slane %v304, 1
  %v398 = vrot.slane %v224, 1
  %v399 = vsel %vm361, %v397, %v398
  %v400 = vrot.slane %v320, 1
  %v401 = vsel %vm361, %v398, %v400
  %v402 = vrot.slane %v305, 1
  %v403 = vrot.slane %v227, 1
  %v404 = vsel %vm361, %v402, %v403
  %v405 = vrot.slane %v321, 1
  %v406 = vsel %vm361, %v403, %v405
  %v407 = vrot.slane %v306, 1
  %v408 = vrot.slane %v230, 1
  %v409 = vsel %vm361, %v407, %v408
  %v410 = vrot.slane %v322, 1
  %v411 = vsel %vm361, %v408, %v410
  %v412 = vrot.slane %v307, 1
  %v413 = vrot.slane %v233, 1
  %v414 = vsel %vm361, %v412, %v413
  %v415 = vrot.slane %v323, 1
  %v416 = vsel %vm361, %v413, %v415
  %v417 = vrot.slane %v308, 1
  %v418 = vrot.slane %v236, 1
  %v419 = vsel %vm361, %v417, %v418
  %v420 = vrot.slane %v324, 1
  %v421 = vsel %vm361, %v418, %v420
  %v422 = vrot.slane %v309, 1
  %v423 = vrot.slane %v239, 1
  %v424 = vsel %vm361, %v422, %v423
  %v425 = vrot.slane %v325, 1
  %v426 = vsel %vm361, %v423, %v425
  %v427 = vrot.slane %v310, 1
  %v428 = vrot.slane %v242, 1
  %v429 = vsel %vm361, %v427, %v428
  %v430 = vrot.slane %v326, 1
  %v431 = vsel %vm361, %v428, %v430
  %v432 = vrot.slane %v311, 1
  %v433 = vrot.slane %v245, 1
  %v434 = vsel %vm361, %v432, %v433
  %v435 = vrot.slane %v327, 1
  %v436 = vsel %vm361, %v433, %v435
  %v437 = vrot.slane %v312, 1
  %v438 = vrot.slane %v248, 1
  %v439 = vsel %vm361, %v437, %v438
  %v440 = vrot.slane %v328, 1
  %v441 = vsel %vm361, %v438, %v440
  %442 = vrot.lane.b32.xlu0 %v364, 64
  %v443 = vpop.permute.xlu0 %442
  %444 = vrot.lane.b32.xlu0 %v366, 64
  %v445 = vpop.permute.xlu0 %444
  %446 = vrot.lane.b32.xlu0 %v369, 64
  %v447 = vpop.permute.xlu0 %446
  %448 = vrot.lane.b32.xlu0 %v371, 64
  %v449 = vpop.permute.xlu0 %448
  %450 = vrot.lane.b32.xlu0 %v374, 64
  %v451 = vpop.permute.xlu0 %450
  %452 = vrot.lane.b32.xlu0 %v376, 64
  %v453 = vpop.permute.xlu0 %452
  %454 = vrot.lane.b32.xlu0 %v379, 64
  %v455 = vpop.permute.xlu0 %454
  %456 = vrot.lane.b32.xlu0 %v381, 64
  %v457 = vpop.permute.xlu0 %456
  %458 = vrot.lane.b32.xlu0 %v384, 64
  %v459 = vpop.permute.xlu0 %458
  %460 = vrot.lane.b32.xlu0 %v386, 64
  %v461 = vpop.permute.xlu0 %460
  %462 = vrot.lane.b32.xlu0 %v389, 64
  %v463 = vpop.permute.xlu0 %462
  %464 = vrot.lane.b32.xlu0 %v391, 64
  %v465 = vpop.permute.xlu0 %464
  %466 = vrot.lane.b32.xlu0 %v394, 64
  %v467 = vpop.permute.xlu0 %466
  %468 = vrot.lane.b32.xlu0 %v396, 64
  %v469 = vpop.permute.xlu0 %468
  %470 = vrot.lane.b32.xlu0 %v399, 64
  %v471 = vpop.permute.xlu0 %470
  %472 = vrot.lane.b32.xlu0 %v401, 64
  %v473 = vpop.permute.xlu0 %472
  %474 = vrot.lane.b32.xlu0 %v404, 64
  %v475 = vpop.permute.xlu0 %474
  %476 = vrot.lane.b32.xlu0 %v406, 64
  %v477 = vpop.permute.xlu0 %476
  %478 = vrot.lane.b32.xlu0 %v409, 64
  %v479 = vpop.permute.xlu0 %478
  %480 = vrot.lane.b32.xlu0 %v411, 64
  %v481 = vpop.permute.xlu0 %480
  %482 = vrot.lane.b32.xlu0 %v414, 64
  %v483 = vpop.permute.xlu0 %482
  %484 = vrot.lane.b32.xlu0 %v416, 64
  %v485 = vpop.permute.xlu0 %484
  %486 = vrot.lane.b32.xlu0 %v419, 64
  %v487 = vpop.permute.xlu0 %486
  %488 = vrot.lane.b32.xlu0 %v421, 64
  %v489 = vpop.permute.xlu0 %488
  %490 = vrot.lane.b32.xlu0 %v424, 64
  %v491 = vpop.permute.xlu0 %490
  %492 = vrot.lane.b32.xlu0 %v426, 64
  %v493 = vpop.permute.xlu0 %492
  %494 = vrot.lane.b32.xlu0 %v429, 64
  %v495 = vpop.permute.xlu0 %494
  %496 = vrot.lane.b32.xlu0 %v431, 64
  %v497 = vpop.permute.xlu0 %496
  %498 = vrot.lane.b32.xlu0 %v434, 64
  %v499 = vpop.permute.xlu0 %498
  %500 = vrot.lane.b32.xlu0 %v436, 64
  %v501 = vpop.permute.xlu0 %500
  %502 = vrot.lane.b32.xlu0 %v439, 64
  %v503 = vpop.permute.xlu0 %502
  %504 = vrot.lane.b32.xlu0 %v441, 64
  %v505 = vpop.permute.xlu0 %504
  %vm538 = vcmask 1045504
  %v539 = vrot.slane %v297, 2
  %v540 = vrot.slane %v203, 2
  %v541 = vsel %vm538, %v539, %v540
  %v542 = vrot.slane %v313, 2
  %v543 = vsel %vm538, %v540, %v542
  %v544 = vrot.slane %v298, 2
  %v545 = vrot.slane %v206, 2
  %v546 = vsel %vm538, %v544, %v545
  %v547 = vrot.slane %v314, 2
  %v548 = vsel %vm538, %v545, %v547
  %v549 = vrot.slane %v299, 2
  %v550 = vrot.slane %v209, 2
  %v551 = vsel %vm538, %v549, %v550
  %v552 = vrot.slane %v315, 2
  %v553 = vsel %vm538, %v550, %v552
  %v554 = vrot.slane %v300, 2
  %v555 = vrot.slane %v212, 2
  %v556 = vsel %vm538, %v554, %v555
  %v557 = vrot.slane %v316, 2
  %v558 = vsel %vm538, %v555, %v557
  %v559 = vrot.slane %v301, 2
  %v560 = vrot.slane %v215, 2
  %v561 = vsel %vm538, %v559, %v560
  %v562 = vrot.slane %v317, 2
  %v563 = vsel %vm538, %v560, %v562
  %v564 = vrot.slane %v302, 2
  %v565 = vrot.slane %v218, 2
  %v566 = vsel %vm538, %v564, %v565
  %v567 = vrot.slane %v318, 2
  %v568 = vsel %vm538, %v565, %v567
  %v569 = vrot.slane %v303, 2
  %v570 = vrot.slane %v221, 2
  %v571 = vsel %vm538, %v569, %v570
  %v572 = vrot.slane %v319, 2
  %v573 = vsel %vm538, %v570, %v572
  %v574 = vrot.slane %v304, 2
  %v575 = vrot.slane %v224, 2
  %v576 = vsel %vm538, %v574, %v575
  %v577 = vrot.slane %v320, 2
  %v578 = vsel %vm538, %v575, %v577
  %v579 = vrot.slane %v305, 2
  %v580 = vrot.slane %v227, 2
  %v581 = vsel %vm538, %v579, %v580
  %v582 = vrot.slane %v321, 2
  %v583 = vsel %vm538, %v580, %v582
  %v584 = vrot.slane %v306, 2
  %v585 = vrot.slane %v230, 2
  %v586 = vsel %vm538, %v584, %v585
  %v587 = vrot.slane %v322, 2
  %v588 = vsel %vm538, %v585, %v587
  %v589 = vrot.slane %v307, 2
  %v590 = vrot.slane %v233, 2
  %v591 = vsel %vm538, %v589, %v590
  %v592 = vrot.slane %v323, 2
  %v593 = vsel %vm538, %v590, %v592
  %v594 = vrot.slane %v308, 2
  %v595 = vrot.slane %v236, 2
  %v596 = vsel %vm538, %v594, %v595
  %v597 = vrot.slane %v324, 2
  %v598 = vsel %vm538, %v595, %v597
  %v599 = vrot.slane %v309, 2
  %v600 = vrot.slane %v239, 2
  %v601 = vsel %vm538, %v599, %v600
  %v602 = vrot.slane %v325, 2
  %v603 = vsel %vm538, %v600, %v602
  %v604 = vrot.slane %v310, 2
  %v605 = vrot.slane %v242, 2
  %v606 = vsel %vm538, %v604, %v605
  %v607 = vrot.slane %v326, 2
  %v608 = vsel %vm538, %v605, %v607
  %v609 = vrot.slane %v311, 2
  %v610 = vrot.slane %v245, 2
  %v611 = vsel %vm538, %v609, %v610
  %v612 = vrot.slane %v327, 2
  %v613 = vsel %vm538, %v610, %v612
  %v614 = vrot.slane %v312, 2
  %v615 = vrot.slane %v248, 2
  %v616 = vsel %vm538, %v614, %v615
  %v617 = vrot.slane %v328, 2
  %v618 = vsel %vm538, %v615, %v617
  %vm651 = vcmask 1044480
  %v652 = vrot.slane %v297, 3
  %v653 = vrot.slane %v203, 3
  %v654 = vsel %vm651, %v652, %v653
  %v655 = vrot.slane %v313, 3
  %v656 = vsel %vm651, %v653, %v655
  %v657 = vrot.slane %v298, 3
  %v658 = vrot.slane %v206, 3
  %v659 = vsel %vm651, %v657, %v658
  %v660 = vrot.slane %v314, 3
  %v661 = vsel %vm651, %v658, %v660
  %v662 = vrot.slane %v299, 3
  %v663 = vrot.slane %v209, 3
  %v664 = vsel %vm651, %v662, %v663
  %v665 = vrot.slane %v315, 3
  %v666 = vsel %vm651, %v663, %v665
  %v667 = vrot.slane %v300, 3
  %v668 = vrot.slane %v212, 3
  %v669 = vsel %vm651, %v667, %v668
  %v670 = vrot.slane %v316, 3
  %v671 = vsel %vm651, %v668, %v670
  %v672 = vrot.slane %v301, 3
  %v673 = vrot.slane %v215, 3
  %v674 = vsel %vm651, %v672, %v673
  %v675 = vrot.slane %v317, 3
  %v676 = vsel %vm651, %v673, %v675
  %v677 = vrot.slane %v302, 3
  %v678 = vrot.slane %v218, 3
  %v679 = vsel %vm651, %v677, %v678
  %v680 = vrot.slane %v318, 3
  %v681 = vsel %vm651, %v678, %v680
  %v682 = vrot.slane %v303, 3
  %v683 = vrot.slane %v221, 3
  %v684 = vsel %vm651, %v682, %v683
  %v685 = vrot.slane %v319, 3
  %v686 = vsel %vm651, %v683, %v685
  %v687 = vrot.slane %v304, 3
  %v688 = vrot.slane %v224, 3
  %v689 = vsel %vm651, %v687, %v688
  %v690 = vrot.slane %v320, 3
  %v691 = vsel %vm651, %v688, %v690
  %v692 = vrot.slane %v305, 3
  %v693 = vrot.slane %v227, 3
  %v694 = vsel %vm651, %v692, %v693
  %v695 = vrot.slane %v321, 3
  %v696 = vsel %vm651, %v693, %v695
  %v697 = vrot.slane %v306, 3
  %v698 = vrot.slane %v230, 3
  %v699 = vsel %vm651, %v697, %v698
  %v700 = vrot.slane %v322, 3
  %v701 = vsel %vm651, %v698, %v700
  %v702 = vrot.slane %v307, 3
  %v703 = vrot.slane %v233, 3
  %v704 = vsel %vm651, %v702, %v703
  %v705 = vrot.slane %v323, 3
  %v706 = vsel %vm651, %v703, %v705
  %v707 = vrot.slane %v308, 3
  %v708 = vrot.slane %v236, 3
  %v709 = vsel %vm651, %v707, %v708
  %v710 = vrot.slane %v324, 3
  %v711 = vsel %vm651, %v708, %v710
  %v712 = vrot.slane %v309, 3
  %v713 = vrot.slane %v239, 3
  %v714 = vsel %vm651, %v712, %v713
  %v715 = vrot.slane %v325, 3
  %v716 = vsel %vm651, %v713, %v715
  %v717 = vrot.slane %v310, 3
  %v718 = vrot.slane %v242, 3
  %v719 = vsel %vm651, %v717, %v718
  %v720 = vrot.slane %v326, 3
  %v721 = vsel %vm651, %v718, %v720
  %v722 = vrot.slane %v311, 3
  %v723 = vrot.slane %v245, 3
  %v724 = vsel %vm651, %v722, %v723
  %v725 = vrot.slane %v327, 3
  %v726 = vsel %vm651, %v723, %v725
  %v727 = vrot.slane %v312, 3
  %v728 = vrot.slane %v248, 3
  %v729 = vsel %vm651, %v727, %v728
  %v730 = vrot.slane %v328, 3
  %v731 = vsel %vm651, %v728, %v730
  %732 = vrot.lane.b32.xlu0 %v654, 64
  %v733 = vpop.permute.xlu0 %732
  %734 = vrot.lane.b32.xlu0 %v656, 64
  %v735 = vpop.permute.xlu0 %734
  %736 = vrot.lane.b32.xlu0 %v659, 64
  %v737 = vpop.permute.xlu0 %736
  %738 = vrot.lane.b32.xlu0 %v661, 64
  %v739 = vpop.permute.xlu0 %738
  %740 = vrot.lane.b32.xlu0 %v664, 64
  %v741 = vpop.permute.xlu0 %740
  %742 = vrot.lane.b32.xlu0 %v666, 64
  %v743 = vpop.permute.xlu0 %742
  %744 = vrot.lane.b32.xlu0 %v669, 64
  %v745 = vpop.permute.xlu0 %744
  %746 = vrot.lane.b32.xlu0 %v671, 64
  %v747 = vpop.permute.xlu0 %746
  %748 = vrot.lane.b32.xlu0 %v674, 64
  %v749 = vpop.permute.xlu0 %748
  %750 = vrot.lane.b32.xlu0 %v676, 64
  %v751 = vpop.permute.xlu0 %750
  %752 = vrot.lane.b32.xlu0 %v679, 64
  %v753 = vpop.permute.xlu0 %752
  %754 = vrot.lane.b32.xlu0 %v681, 64
  %v755 = vpop.permute.xlu0 %754
  %756 = vrot.lane.b32.xlu0 %v684, 64
  %v757 = vpop.permute.xlu0 %756
  %758 = vrot.lane.b32.xlu0 %v686, 64
  %v759 = vpop.permute.xlu0 %758
  %760 = vrot.lane.b32.xlu0 %v689, 64
  %v761 = vpop.permute.xlu0 %760
  %762 = vrot.lane.b32.xlu0 %v691, 64
  %v763 = vpop.permute.xlu0 %762
  %764 = vrot.lane.b32.xlu0 %v694, 64
  %v765 = vpop.permute.xlu0 %764
  %766 = vrot.lane.b32.xlu0 %v696, 64
  %v767 = vpop.permute.xlu0 %766
  %768 = vrot.lane.b32.xlu0 %v699, 64
  %v769 = vpop.permute.xlu0 %768
  %770 = vrot.lane.b32.xlu0 %v701, 64
  %v771 = vpop.permute.xlu0 %770
  %772 = vrot.lane.b32.xlu0 %v704, 64
  %v773 = vpop.permute.xlu0 %772
  %774 = vrot.lane.b32.xlu0 %v706, 64
  %v775 = vpop.permute.xlu0 %774
  %776 = vrot.lane.b32.xlu0 %v709, 64
  %v777 = vpop.permute.xlu0 %776
  %778 = vrot.lane.b32.xlu0 %v711, 64
  %v779 = vpop.permute.xlu0 %778
  %780 = vrot.lane.b32.xlu0 %v714, 64
  %v781 = vpop.permute.xlu0 %780
  %782 = vrot.lane.b32.xlu0 %v716, 64
  %v783 = vpop.permute.xlu0 %782
  %784 = vrot.lane.b32.xlu0 %v719, 64
  %v785 = vpop.permute.xlu0 %784
  %786 = vrot.lane.b32.xlu0 %v721, 64
  %v787 = vpop.permute.xlu0 %786
  %788 = vrot.lane.b32.xlu0 %v724, 64
  %v789 = vpop.permute.xlu0 %788
  %790 = vrot.lane.b32.xlu0 %v726, 64
  %v791 = vpop.permute.xlu0 %790
  %792 = vrot.lane.b32.xlu0 %v729, 64
  %v793 = vpop.permute.xlu0 %792
  %794 = vrot.lane.b32.xlu0 %v731, 64
  %v795 = vpop.permute.xlu0 %794
  %vm828 = vcmask 1043456
  %v829 = vrot.slane %v297, 4
  %v830 = vrot.slane %v203, 4
  %v831 = vsel %vm828, %v829, %v830
  %v832 = vrot.slane %v313, 4
  %v833 = vsel %vm828, %v830, %v832
  %v834 = vrot.slane %v298, 4
  %v835 = vrot.slane %v206, 4
  %v836 = vsel %vm828, %v834, %v835
  %v837 = vrot.slane %v314, 4
  %v838 = vsel %vm828, %v835, %v837
  %v839 = vrot.slane %v299, 4
  %v840 = vrot.slane %v209, 4
  %v841 = vsel %vm828, %v839, %v840
  %v842 = vrot.slane %v315, 4
  %v843 = vsel %vm828, %v840, %v842
  %v844 = vrot.slane %v300, 4
  %v845 = vrot.slane %v212, 4
  %v846 = vsel %vm828, %v844, %v845
  %v847 = vrot.slane %v316, 4
  %v848 = vsel %vm828, %v845, %v847
  %v849 = vrot.slane %v301, 4
  %v850 = vrot.slane %v215, 4
  %v851 = vsel %vm828, %v849, %v850
  %v852 = vrot.slane %v317, 4
  %v853 = vsel %vm828, %v850, %v852
  %v854 = vrot.slane %v302, 4
  %v855 = vrot.slane %v218, 4
  %v856 = vsel %vm828, %v854, %v855
  %v857 = vrot.slane %v318, 4
  %v858 = vsel %vm828, %v855, %v857
  %v859 = vrot.slane %v303, 4
  %v860 = vrot.slane %v221, 4
  %v861 = vsel %vm828, %v859, %v860
  %v862 = vrot.slane %v319, 4
  %v863 = vsel %vm828, %v860, %v862
  %v864 = vrot.slane %v304, 4
  %v865 = vrot.slane %v224, 4
  %v866 = vsel %vm828, %v864, %v865
  %v867 = vrot.slane %v320, 4
  %v868 = vsel %vm828, %v865, %v867
  %v869 = vrot.slane %v305, 4
  %v870 = vrot.slane %v227, 4
  %v871 = vsel %vm828, %v869, %v870
  %v872 = vrot.slane %v321, 4
  %v873 = vsel %vm828, %v870, %v872
  %v874 = vrot.slane %v306, 4
  %v875 = vrot.slane %v230, 4
  %v876 = vsel %vm828, %v874, %v875
  %v877 = vrot.slane %v322, 4
  %v878 = vsel %vm828, %v875, %v877
  %v879 = vrot.slane %v307, 4
  %v880 = vrot.slane %v233, 4
  %v881 = vsel %vm828, %v879, %v880
  %v882 = vrot.slane %v323, 4
  %v883 = vsel %vm828, %v880, %v882
  %v884 = vrot.slane %v308, 4
  %v885 = vrot.slane %v236, 4
  %v886 = vsel %vm828, %v884, %v885
  %v887 = vrot.slane %v324, 4
  %v888 = vsel %vm828, %v885, %v887
  %v889 = vrot.slane %v309, 4
  %v890 = vrot.slane %v239, 4
  %v891 = vsel %vm828, %v889, %v890
  %v892 = vrot.slane %v325, 4
  %v893 = vsel %vm828, %v890, %v892
  %v894 = vrot.slane %v310, 4
  %v895 = vrot.slane %v242, 4
  %v896 = vsel %vm828, %v894, %v895
  %v897 = vrot.slane %v326, 4
  %v898 = vsel %vm828, %v895, %v897
  %v899 = vrot.slane %v311, 4
  %v900 = vrot.slane %v245, 4
  %v901 = vsel %vm828, %v899, %v900
  %v902 = vrot.slane %v327, 4
  %v903 = vsel %vm828, %v900, %v902
  %v904 = vrot.slane %v312, 4
  %v905 = vrot.slane %v248, 4
  %v906 = vsel %vm828, %v904, %v905
  %v907 = vrot.slane %v328, 4
  %v908 = vsel %vm828, %v905, %v907
  %vm909 = vcmask 523264
  %v910 = vsel %vm909, %v297, %v443
  %v911 = vsel %vm909, %v203, %v445
  %v912 = vsel %vm909, %v298, %v447
  %v913 = vsel %vm909, %v206, %v449
  %v914 = vsel %vm909, %v299, %v451
  %v915 = vsel %vm909, %v209, %v453
  %v916 = vsel %vm909, %v300, %v455
  %v917 = vsel %vm909, %v212, %v457
  %v918 = vsel %vm909, %v301, %v459
  %v919 = vsel %vm909, %v215, %v461
  %v920 = vsel %vm909, %v302, %v463
  %v921 = vsel %vm909, %v218, %v465
  %v922 = vsel %vm909, %v303, %v467
  %v923 = vsel %vm909, %v221, %v469
  %v924 = vsel %vm909, %v304, %v471
  %v925 = vsel %vm909, %v224, %v473
  %v926 = vsel %vm909, %v305, %v475
  %v927 = vsel %vm909, %v227, %v477
  %v928 = vsel %vm909, %v306, %v479
  %v929 = vsel %vm909, %v230, %v481
  %v930 = vsel %vm909, %v307, %v483
  %v931 = vsel %vm909, %v233, %v485
  %v932 = vsel %vm909, %v308, %v487
  %v933 = vsel %vm909, %v236, %v489
  %v934 = vsel %vm909, %v309, %v491
  %v935 = vsel %vm909, %v239, %v493
  %v936 = vsel %vm909, %v310, %v495
  %v937 = vsel %vm909, %v242, %v497
  %v938 = vsel %vm909, %v311, %v499
  %v939 = vsel %vm909, %v245, %v501
  %v940 = vsel %vm909, %v312, %v503
  %v941 = vsel %vm909, %v248, %v505
  %v942 = vsel %vm909, %v541, %v733
  %v943 = vsel %vm909, %v543, %v735
  %v944 = vsel %vm909, %v546, %v737
  %v945 = vsel %vm909, %v548, %v739
  %v946 = vsel %vm909, %v551, %v741
  %v947 = vsel %vm909, %v553, %v743
  %v948 = vsel %vm909, %v556, %v745
  %v949 = vsel %vm909, %v558, %v747
  %v950 = vsel %vm909, %v561, %v749
  %v951 = vsel %vm909, %v563, %v751
  %v952 = vsel %vm909, %v566, %v753
  %v953 = vsel %vm909, %v568, %v755
  %v954 = vsel %vm909, %v571, %v757
  %v955 = vsel %vm909, %v573, %v759
  %v956 = vsel %vm909, %v576, %v761
  %v957 = vsel %vm909, %v578, %v763
  %v958 = vsel %vm909, %v581, %v765
  %v959 = vsel %vm909, %v583, %v767
  %v960 = vsel %vm909, %v586, %v769
  %v961 = vsel %vm909, %v588, %v771
  %v962 = vsel %vm909, %v591, %v773
  %v963 = vsel %vm909, %v593, %v775
  %v964 = vsel %vm909, %v596, %v777
  %v965 = vsel %vm909, %v598, %v779
  %v966 = vsel %vm909, %v601, %v781
  %v967 = vsel %vm909, %v603, %v783
  %v968 = vsel %vm909, %v606, %v785
  %v969 = vsel %vm909, %v608, %v787
  %v970 = vsel %vm909, %v611, %v789
  %v971 = vsel %vm909, %v613, %v791
  %v972 = vsel %vm909, %v616, %v793
  %v973 = vsel %vm909, %v618, %v795
  %v1006 = vrot.slane %v23, 6
  %v1007 = vrot.slane %v24, 6
  %v1008 = vsel %vm200, %v1006, %v1007
  %v1009 = vrot.slane %v25, 6
  %v1010 = vrot.slane %v26, 6
  %v1011 = vsel %vm200, %v1009, %v1010
  %v1012 = vrot.slane %v27, 6
  %v1013 = vrot.slane %v28, 6
  %v1014 = vsel %vm200, %v1012, %v1013
  %v1015 = vrot.slane %v29, 6
  %v1016 = vrot.slane %v30, 6
  %v1017 = vsel %vm200, %v1015, %v1016
  %v1018 = vrot.slane %v31, 6
  %v1019 = vrot.slane %v32, 6
  %v1020 = vsel %vm200, %v1018, %v1019
  %v1021 = vrot.slane %v33, 6
  %v1022 = vrot.slane %v34, 6
  %v1023 = vsel %vm200, %v1021, %v1022
  %v1024 = vrot.slane %v35, 6
  %v1025 = vrot.slane %v36, 6
  %v1026 = vsel %vm200, %v1024, %v1025
  %v1027 = vrot.slane %v37, 6
  %v1028 = vrot.slane %v38, 6
  %v1029 = vsel %vm200, %v1027, %v1028
  %v1030 = vrot.slane %v39, 6
  %v1031 = vrot.slane %v40, 6
  %v1032 = vsel %vm200, %v1030, %v1031
  %v1033 = vrot.slane %v41, 6
  %v1034 = vrot.slane %v42, 6
  %v1035 = vsel %vm200, %v1033, %v1034
  %v1036 = vrot.slane %v43, 6
  %v1037 = vrot.slane %v44, 6
  %v1038 = vsel %vm200, %v1036, %v1037
  %v1039 = vrot.slane %v45, 6
  %v1040 = vrot.slane %v46, 6
  %v1041 = vsel %vm200, %v1039, %v1040
  %v1042 = vrot.slane %v47, 6
  %v1043 = vrot.slane %v48, 6
  %v1044 = vsel %vm200, %v1042, %v1043
  %v1045 = vrot.slane %v49, 6
  %v1046 = vrot.slane %v50, 6
  %v1047 = vsel %vm200, %v1045, %v1046
  %v1048 = vrot.slane %v51, 6
  %v1049 = vrot.slane %v52, 6
  %v1050 = vsel %vm200, %v1048, %v1049
  %v1051 = vrot.slane %v53, 6
  %v1052 = vrot.slane %v54, 6
  %v1053 = vsel %vm200, %v1051, %v1052
  %v1102 = vsel %vm200, 0.0, %v1006
  %v1103 = vsel %vm200, 0.0, %v1009
  %v1104 = vsel %vm200, 0.0, %v1012
  %v1105 = vsel %vm200, 0.0, %v1015
  %v1106 = vsel %vm200, 0.0, %v1018
  %v1107 = vsel %vm200, 0.0, %v1021
  %v1108 = vsel %vm200, 0.0, %v1024
  %v1109 = vsel %vm200, 0.0, %v1027
  %v1110 = vsel %vm200, 0.0, %v1030
  %v1111 = vsel %vm200, 0.0, %v1033
  %v1112 = vsel %vm200, 0.0, %v1036
  %v1113 = vsel %vm200, 0.0, %v1039
  %v1114 = vsel %vm200, 0.0, %v1042
  %v1115 = vsel %vm200, 0.0, %v1045
  %v1116 = vsel %vm200, 0.0, %v1048
  %v1117 = vsel %vm200, 0.0, %v1051
  %v1118 = vsel %vm200, %v1007, 0.0
  %v1119 = vsel %vm200, %v1010, 0.0
  %v1120 = vsel %vm200, %v1013, 0.0
  %v1121 = vsel %vm200, %v1016, 0.0
  %v1122 = vsel %vm200, %v1019, 0.0
  %v1123 = vsel %vm200, %v1022, 0.0
  %v1124 = vsel %vm200, %v1025, 0.0
  %v1125 = vsel %vm200, %v1028, 0.0
  %v1126 = vsel %vm200, %v1031, 0.0
  %v1127 = vsel %vm200, %v1034, 0.0
  %v1128 = vsel %vm200, %v1037, 0.0
  %v1129 = vsel %vm200, %v1040, 0.0
  %v1130 = vsel %vm200, %v1043, 0.0
  %v1131 = vsel %vm200, %v1046, 0.0
  %v1132 = vsel %vm200, %v1049, 0.0
  %v1133 = vsel %vm200, %v1052, 0.0
  %v1166 = vrot.slane %v1102, 1
  %v1167 = vrot.slane %v1008, 1
  %v1168 = vsel %vm361, %v1166, %v1167
  %v1169 = vrot.slane %v1118, 1
  %v1170 = vsel %vm361, %v1167, %v1169
  %v1171 = vrot.slane %v1103, 1
  %v1172 = vrot.slane %v1011, 1
  %v1173 = vsel %vm361, %v1171, %v1172
  %v1174 = vrot.slane %v1119, 1
  %v1175 = vsel %vm361, %v1172, %v1174
  %v1176 = vrot.slane %v1104, 1
  %v1177 = vrot.slane %v1014, 1
  %v1178 = vsel %vm361, %v1176, %v1177
  %v1179 = vrot.slane %v1120, 1
  %v1180 = vsel %vm361, %v1177, %v1179
  %v1181 = vrot.slane %v1105, 1
  %v1182 = vrot.slane %v1017, 1
  %v1183 = vsel %vm361, %v1181, %v1182
  %v1184 = vrot.slane %v1121, 1
  %v1185 = vsel %vm361, %v1182, %v1184
  %v1186 = vrot.slane %v1106, 1
  %v1187 = vrot.slane %v1020, 1
  %v1188 = vsel %vm361, %v1186, %v1187
  %v1189 = vrot.slane %v1122, 1
  %v1190 = vsel %vm361, %v1187, %v1189
  %v1191 = vrot.slane %v1107, 1
  %v1192 = vrot.slane %v1023, 1
  %v1193 = vsel %vm361, %v1191, %v1192
  %v1194 = vrot.slane %v1123, 1
  %v1195 = vsel %vm361, %v1192, %v1194
  %v1196 = vrot.slane %v1108, 1
  %v1197 = vrot.slane %v1026, 1
  %v1198 = vsel %vm361, %v1196, %v1197
  %v1199 = vrot.slane %v1124, 1
  %v1200 = vsel %vm361, %v1197, %v1199
  %v1201 = vrot.slane %v1109, 1
  %v1202 = vrot.slane %v1029, 1
  %v1203 = vsel %vm361, %v1201, %v1202
  %v1204 = vrot.slane %v1125, 1
  %v1205 = vsel %vm361, %v1202, %v1204
  %v1206 = vrot.slane %v1110, 1
  %v1207 = vrot.slane %v1032, 1
  %v1208 = vsel %vm361, %v1206, %v1207
  %v1209 = vrot.slane %v1126, 1
  %v1210 = vsel %vm361, %v1207, %v1209
  %v1211 = vrot.slane %v1111, 1
  %v1212 = vrot.slane %v1035, 1
  %v1213 = vsel %vm361, %v1211, %v1212
  %v1214 = vrot.slane %v1127, 1
  %v1215 = vsel %vm361, %v1212, %v1214
  %v1216 = vrot.slane %v1112, 1
  %v1217 = vrot.slane %v1038, 1
  %v1218 = vsel %vm361, %v1216, %v1217
  %v1219 = vrot.slane %v1128, 1
  %v1220 = vsel %vm361, %v1217, %v1219
  %v1221 = vrot.slane %v1113, 1
  %v1222 = vrot.slane %v1041, 1
  %v1223 = vsel %vm361, %v1221, %v1222
  %v1224 = vrot.slane %v1129, 1
  %v1225 = vsel %vm361, %v1222, %v1224
  %v1226 = vrot.slane %v1114, 1
  %v1227 = vrot.slane %v1044, 1
  %v1228 = vsel %vm361, %v1226, %v1227
  %v1229 = vrot.slane %v1130, 1
  %v1230 = vsel %vm361, %v1227, %v1229
  %v1231 = vrot.slane %v1115, 1
  %v1232 = vrot.slane %v1047, 1
  %v1233 = vsel %vm361, %v1231, %v1232
  %v1234 = vrot.slane %v1131, 1
  %v1235 = vsel %vm361, %v1232, %v1234
  %v1236 = vrot.slane %v1116, 1
  %v1237 = vrot.slane %v1050, 1
  %v1238 = vsel %vm361, %v1236, %v1237
  %v1239 = vrot.slane %v1132, 1
  %v1240 = vsel %vm361, %v1237, %v1239
  %v1241 = vrot.slane %v1117, 1
  %v1242 = vrot.slane %v1053, 1
  %v1243 = vsel %vm361, %v1241, %v1242
  %v1244 = vrot.slane %v1133, 1
  %v1245 = vsel %vm361, %v1242, %v1244
  %1246 = vrot.lane.b32.xlu0 %v1168, 32
  %v1247 = vpop.permute.xlu0 %1246
  %1248 = vrot.lane.b32.xlu0 %v1170, 32
  %v1249 = vpop.permute.xlu0 %1248
  %1250 = vrot.lane.b32.xlu0 %v1173, 32
  %v1251 = vpop.permute.xlu0 %1250
  %1252 = vrot.lane.b32.xlu0 %v1175, 32
  %v1253 = vpop.permute.xlu0 %1252
  %1254 = vrot.lane.b32.xlu0 %v1178, 32
  %v1255 = vpop.permute.xlu0 %1254
  %1256 = vrot.lane.b32.xlu0 %v1180, 32
  %v1257 = vpop.permute.xlu0 %1256
  %1258 = vrot.lane.b32.xlu0 %v1183, 32
  %v1259 = vpop.permute.xlu0 %1258
  %1260 = vrot.lane.b32.xlu0 %v1185, 32
  %v1261 = vpop.permute.xlu0 %1260
  %1262 = vrot.lane.b32.xlu0 %v1188, 32
  %v1263 = vpop.permute.xlu0 %1262
  %1264 = vrot.lane.b32.xlu0 %v1190, 32
  %v1265 = vpop.permute.xlu0 %1264
  %1266 = vrot.lane.b32.xlu0 %v1193, 32
  %v1267 = vpop.permute.xlu0 %1266
  %1268 = vrot.lane.b32.xlu0 %v1195, 32
  %v1269 = vpop.permute.xlu0 %1268
  %1270 = vrot.lane.b32.xlu0 %v1198, 32
  %v1271 = vpop.permute.xlu0 %1270
  %1272 = vrot.lane.b32.xlu0 %v1200, 32
  %v1273 = vpop.permute.xlu0 %1272
  %1274 = vrot.lane.b32.xlu0 %v1203, 32
  %v1275 = vpop.permute.xlu0 %1274
  %1276 = vrot.lane.b32.xlu0 %v1205, 32
  %v1277 = vpop.permute.xlu0 %1276
  %1278 = vrot.lane.b32.xlu0 %v1208, 32
  %v1279 = vpop.permute.xlu0 %1278
  %1280 = vrot.lane.b32.xlu0 %v1210, 32
  %v1281 = vpop.permute.xlu0 %1280
  %1282 = vrot.lane.b32.xlu0 %v1213, 32
  %v1283 = vpop.permute.xlu0 %1282
  %1284 = vrot.lane.b32.xlu0 %v1215, 32
  %v1285 = vpop.permute.xlu0 %1284
  %1286 = vrot.lane.b32.xlu0 %v1218, 32
  %v1287 = vpop.permute.xlu0 %1286
  %1288 = vrot.lane.b32.xlu0 %v1220, 32
  %v1289 = vpop.permute.xlu0 %1288
  %1290 = vrot.lane.b32.xlu0 %v1223, 32
  %v1291 = vpop.permute.xlu0 %1290
  %1292 = vrot.lane.b32.xlu0 %v1225, 32
  %v1293 = vpop.permute.xlu0 %1292
  %1294 = vrot.lane.b32.xlu0 %v1228, 32
  %v1295 = vpop.permute.xlu0 %1294
  %1296 = vrot.lane.b32.xlu0 %v1230, 32
  %v1297 = vpop.permute.xlu0 %1296
  %1298 = vrot.lane.b32.xlu0 %v1233, 32
  %v1299 = vpop.permute.xlu0 %1298
  %1300 = vrot.lane.b32.xlu0 %v1235, 32
  %v1301 = vpop.permute.xlu0 %1300
  %1302 = vrot.lane.b32.xlu0 %v1238, 32
  %v1303 = vpop.permute.xlu0 %1302
  %1304 = vrot.lane.b32.xlu0 %v1240, 32
  %v1305 = vpop.permute.xlu0 %1304
  %1306 = vrot.lane.b32.xlu0 %v1243, 32
  %v1307 = vpop.permute.xlu0 %1306
  %1308 = vrot.lane.b32.xlu0 %v1245, 32
  %v1309 = vpop.permute.xlu0 %1308
  %v1342 = vrot.slane %v1102, 2
  %v1343 = vrot.slane %v1008, 2
  %v1344 = vsel %vm538, %v1342, %v1343
  %v1345 = vrot.slane %v1118, 2
  %v1346 = vsel %vm538, %v1343, %v1345
  %v1347 = vrot.slane %v1103, 2
  %v1348 = vrot.slane %v1011, 2
  %v1349 = vsel %vm538, %v1347, %v1348
  %v1350 = vrot.slane %v1119, 2
  %v1351 = vsel %vm538, %v1348, %v1350
  %v1352 = vrot.slane %v1104, 2
  %v1353 = vrot.slane %v1014, 2
  %v1354 = vsel %vm538, %v1352, %v1353
  %v1355 = vrot.slane %v1120, 2
  %v1356 = vsel %vm538, %v1353, %v1355
  %v1357 = vrot.slane %v1105, 2
  %v1358 = vrot.slane %v1017, 2
  %v1359 = vsel %vm538, %v1357, %v1358
  %v1360 = vrot.slane %v1121, 2
  %v1361 = vsel %vm538, %v1358, %v1360
  %v1362 = vrot.slane %v1106, 2
  %v1363 = vrot.slane %v1020, 2
  %v1364 = vsel %vm538, %v1362, %v1363
  %v1365 = vrot.slane %v1122, 2
  %v1366 = vsel %vm538, %v1363, %v1365
  %v1367 = vrot.slane %v1107, 2
  %v1368 = vrot.slane %v1023, 2
  %v1369 = vsel %vm538, %v1367, %v1368
  %v1370 = vrot.slane %v1123, 2
  %v1371 = vsel %vm538, %v1368, %v1370
  %v1372 = vrot.slane %v1108, 2
  %v1373 = vrot.slane %v1026, 2
  %v1374 = vsel %vm538, %v1372, %v1373
  %v1375 = vrot.slane %v1124, 2
  %v1376 = vsel %vm538, %v1373, %v1375
  %v1377 = vrot.slane %v1109, 2
  %v1378 = vrot.slane %v1029, 2
  %v1379 = vsel %vm538, %v1377, %v1378
  %v1380 = vrot.slane %v1125, 2
  %v1381 = vsel %vm538, %v1378, %v1380
  %v1382 = vrot.slane %v1110, 2
  %v1383 = vrot.slane %v1032, 2
  %v1384 = vsel %vm538, %v1382, %v1383
  %v1385 = vrot.slane %v1126, 2
  %v1386 = vsel %vm538, %v1383, %v1385
  %v1387 = vrot.slane %v1111, 2
  %v1388 = vrot.slane %v1035, 2
  %v1389 = vsel %vm538, %v1387, %v1388
  %v1390 = vrot.slane %v1127, 2
  %v1391 = vsel %vm538, %v1388, %v1390
  %v1392 = vrot.slane %v1112, 2
  %v1393 = vrot.slane %v1038, 2
  %v1394 = vsel %vm538, %v1392, %v1393
  %v1395 = vrot.slane %v1128, 2
  %v1396 = vsel %vm538, %v1393, %v1395
  %v1397 = vrot.slane %v1113, 2
  %v1398 = vrot.slane %v1041, 2
  %v1399 = vsel %vm538, %v1397, %v1398
  %v1400 = vrot.slane %v1129, 2
  %v1401 = vsel %vm538, %v1398, %v1400
  %v1402 = vrot.slane %v1114, 2
  %v1403 = vrot.slane %v1044, 2
  %v1404 = vsel %vm538, %v1402, %v1403
  %v1405 = vrot.slane %v1130, 2
  %v1406 = vsel %vm538, %v1403, %v1405
  %v1407 = vrot.slane %v1115, 2
  %v1408 = vrot.slane %v1047, 2
  %v1409 = vsel %vm538, %v1407, %v1408
  %v1410 = vrot.slane %v1131, 2
  %v1411 = vsel %vm538, %v1408, %v1410
  %v1412 = vrot.slane %v1116, 2
  %v1413 = vrot.slane %v1050, 2
  %v1414 = vsel %vm538, %v1412, %v1413
  %v1415 = vrot.slane %v1132, 2
  %v1416 = vsel %vm538, %v1413, %v1415
  %v1417 = vrot.slane %v1117, 2
  %v1418 = vrot.slane %v1053, 2
  %v1419 = vsel %vm538, %v1417, %v1418
  %v1420 = vrot.slane %v1133, 2
  %v1421 = vsel %vm538, %v1418, %v1420
  %1422 = vrot.lane.b32.xlu0 %v1344, 64
  %v1423 = vpop.permute.xlu0 %1422
  %1424 = vrot.lane.b32.xlu0 %v1346, 64
  %v1425 = vpop.permute.xlu0 %1424
  %1426 = vrot.lane.b32.xlu0 %v1349, 64
  %v1427 = vpop.permute.xlu0 %1426
  %1428 = vrot.lane.b32.xlu0 %v1351, 64
  %v1429 = vpop.permute.xlu0 %1428
  %1430 = vrot.lane.b32.xlu0 %v1354, 64
  %v1431 = vpop.permute.xlu0 %1430
  %1432 = vrot.lane.b32.xlu0 %v1356, 64
  %v1433 = vpop.permute.xlu0 %1432
  %1434 = vrot.lane.b32.xlu0 %v1359, 64
  %v1435 = vpop.permute.xlu0 %1434
  %1436 = vrot.lane.b32.xlu0 %v1361, 64
  %v1437 = vpop.permute.xlu0 %1436
  %1438 = vrot.lane.b32.xlu0 %v1364, 64
  %v1439 = vpop.permute.xlu0 %1438
  %1440 = vrot.lane.b32.xlu0 %v1366, 64
  %v1441 = vpop.permute.xlu0 %1440
  %1442 = vrot.lane.b32.xlu0 %v1369, 64
  %v1443 = vpop.permute.xlu0 %1442
  %1444 = vrot.lane.b32.xlu0 %v1371, 64
  %v1445 = vpop.permute.xlu0 %1444
  %1446 = vrot.lane.b32.xlu0 %v1374, 64
  %v1447 = vpop.permute.xlu0 %1446
  %1448 = vrot.lane.b32.xlu0 %v1376, 64
  %v1449 = vpop.permute.xlu0 %1448
  %1450 = vrot.lane.b32.xlu0 %v1379, 64
  %v1451 = vpop.permute.xlu0 %1450
  %1452 = vrot.lane.b32.xlu0 %v1381, 64
  %v1453 = vpop.permute.xlu0 %1452
  %1454 = vrot.lane.b32.xlu0 %v1384, 64
  %v1455 = vpop.permute.xlu0 %1454
  %1456 = vrot.lane.b32.xlu0 %v1386, 64
  %v1457 = vpop.permute.xlu0 %1456
  %1458 = vrot.lane.b32.xlu0 %v1389, 64
  %v1459 = vpop.permute.xlu0 %1458
  %1460 = vrot.lane.b32.xlu0 %v1391, 64
  %v1461 = vpop.permute.xlu0 %1460
  %1462 = vrot.lane.b32.xlu0 %v1394, 64
  %v1463 = vpop.permute.xlu0 %1462
  %1464 = vrot.lane.b32.xlu0 %v1396, 64
  %v1465 = vpop.permute.xlu0 %1464
  %1466 = vrot.lane.b32.xlu0 %v1399, 64
  %v1467 = vpop.permute.xlu0 %1466
  %1468 = vrot.lane.b32.xlu0 %v1401, 64
  %v1469 = vpop.permute.xlu0 %1468
  %1470 = vrot.lane.b32.xlu0 %v1404, 64
  %v1471 = vpop.permute.xlu0 %1470
  %1472 = vrot.lane.b32.xlu0 %v1406, 64
  %v1473 = vpop.permute.xlu0 %1472
  %1474 = vrot.lane.b32.xlu0 %v1409, 64
  %v1475 = vpop.permute.xlu0 %1474
  %1476 = vrot.lane.b32.xlu0 %v1411, 64
  %v1477 = vpop.permute.xlu0 %1476
  %1478 = vrot.lane.b32.xlu0 %v1414, 64
  %v1479 = vpop.permute.xlu0 %1478
  %1480 = vrot.lane.b32.xlu0 %v1416, 64
  %v1481 = vpop.permute.xlu0 %1480
  %1482 = vrot.lane.b32.xlu0 %v1419, 64
  %v1483 = vpop.permute.xlu0 %1482
  %1484 = vrot.lane.b32.xlu0 %v1421, 64
  %v1485 = vpop.permute.xlu0 %1484
  %v1518 = vrot.slane %v1102, 3
  %v1519 = vrot.slane %v1008, 3
  %v1520 = vsel %vm651, %v1518, %v1519
  %v1521 = vrot.slane %v1118, 3
  %v1522 = vsel %vm651, %v1519, %v1521
  %v1523 = vrot.slane %v1103, 3
  %v1524 = vrot.slane %v1011, 3
  %v1525 = vsel %vm651, %v1523, %v1524
  %v1526 = vrot.slane %v1119, 3
  %v1527 = vsel %vm651, %v1524, %v1526
  %v1528 = vrot.slane %v1104, 3
  %v1529 = vrot.slane %v1014, 3
  %v1530 = vsel %vm651, %v1528, %v1529
  %v1531 = vrot.slane %v1120, 3
  %v1532 = vsel %vm651, %v1529, %v1531
  %v1533 = vrot.slane %v1105, 3
  %v1534 = vrot.slane %v1017, 3
  %v1535 = vsel %vm651, %v1533, %v1534
  %v1536 = vrot.slane %v1121, 3
  %v1537 = vsel %vm651, %v1534, %v1536
  %v1538 = vrot.slane %v1106, 3
  %v1539 = vrot.slane %v1020, 3
  %v1540 = vsel %vm651, %v1538, %v1539
  %v1541 = vrot.slane %v1122, 3
  %v1542 = vsel %vm651, %v1539, %v1541
  %v1543 = vrot.slane %v1107, 3
  %v1544 = vrot.slane %v1023, 3
  %v1545 = vsel %vm651, %v1543, %v1544
  %v1546 = vrot.slane %v1123, 3
  %v1547 = vsel %vm651, %v1544, %v1546
  %v1548 = vrot.slane %v1108, 3
  %v1549 = vrot.slane %v1026, 3
  %v1550 = vsel %vm651, %v1548, %v1549
  %v1551 = vrot.slane %v1124, 3
  %v1552 = vsel %vm651, %v1549, %v1551
  %v1553 = vrot.slane %v1109, 3
  %v1554 = vrot.slane %v1029, 3
  %v1555 = vsel %vm651, %v1553, %v1554
  %v1556 = vrot.slane %v1125, 3
  %v1557 = vsel %vm651, %v1554, %v1556
  %v1558 = vrot.slane %v1110, 3
  %v1559 = vrot.slane %v1032, 3
  %v1560 = vsel %vm651, %v1558, %v1559
  %v1561 = vrot.slane %v1126, 3
  %v1562 = vsel %vm651, %v1559, %v1561
  %v1563 = vrot.slane %v1111, 3
  %v1564 = vrot.slane %v1035, 3
  %v1565 = vsel %vm651, %v1563, %v1564
  %v1566 = vrot.slane %v1127, 3
  %v1567 = vsel %vm651, %v1564, %v1566
  %v1568 = vrot.slane %v1112, 3
  %v1569 = vrot.slane %v1038, 3
  %v1570 = vsel %vm651, %v1568, %v1569
  %v1571 = vrot.slane %v1128, 3
  %v1572 = vsel %vm651, %v1569, %v1571
  %v1573 = vrot.slane %v1113, 3
  %v1574 = vrot.slane %v1041, 3
  %v1575 = vsel %vm651, %v1573, %v1574
  %v1576 = vrot.slane %v1129, 3
  %v1577 = vsel %vm651, %v1574, %v1576
  %v1578 = vrot.slane %v1114, 3
  %v1579 = vrot.slane %v1044, 3
  %v1580 = vsel %vm651, %v1578, %v1579
  %v1581 = vrot.slane %v1130, 3
  %v1582 = vsel %vm651, %v1579, %v1581
  %v1583 = vrot.slane %v1115, 3
  %v1584 = vrot.slane %v1047, 3
  %v1585 = vsel %vm651, %v1583, %v1584
  %v1586 = vrot.slane %v1131, 3
  %v1587 = vsel %vm651, %v1584, %v1586
  %v1588 = vrot.slane %v1116, 3
  %v1589 = vrot.slane %v1050, 3
  %v1590 = vsel %vm651, %v1588, %v1589
  %v1591 = vrot.slane %v1132, 3
  %v1592 = vsel %vm651, %v1589, %v1591
  %v1593 = vrot.slane %v1117, 3
  %v1594 = vrot.slane %v1053, 3
  %v1595 = vsel %vm651, %v1593, %v1594
  %v1596 = vrot.slane %v1133, 3
  %v1597 = vsel %vm651, %v1594, %v1596
  %1598 = vrot.lane.b32.xlu0 %v1520, 96
  %v1599 = vpop.permute.xlu0 %1598
  %1600 = vrot.lane.b32.xlu0 %v1522, 96
  %v1601 = vpop.permute.xlu0 %1600
  %1602 = vrot.lane.b32.xlu0 %v1525, 96
  %v1603 = vpop.permute.xlu0 %1602
  %1604 = vrot.lane.b32.xlu0 %v1527, 96
  %v1605 = vpop.permute.xlu0 %1604
  %1606 = vrot.lane.b32.xlu0 %v1530, 96
  %v1607 = vpop.permute.xlu0 %1606
  %1608 = vrot.lane.b32.xlu0 %v1532, 96
  %v1609 = vpop.permute.xlu0 %1608
  %1610 = vrot.lane.b32.xlu0 %v1535, 96
  %v1611 = vpop.permute.xlu0 %1610
  %1612 = vrot.lane.b32.xlu0 %v1537, 96
  %v1613 = vpop.permute.xlu0 %1612
  %1614 = vrot.lane.b32.xlu0 %v1540, 96
  %v1615 = vpop.permute.xlu0 %1614
  %1616 = vrot.lane.b32.xlu0 %v1542, 96
  %v1617 = vpop.permute.xlu0 %1616
  %1618 = vrot.lane.b32.xlu0 %v1545, 96
  %v1619 = vpop.permute.xlu0 %1618
  %1620 = vrot.lane.b32.xlu0 %v1547, 96
  %v1621 = vpop.permute.xlu0 %1620
  %1622 = vrot.lane.b32.xlu0 %v1550, 96
  %v1623 = vpop.permute.xlu0 %1622
  %1624 = vrot.lane.b32.xlu0 %v1552, 96
  %v1625 = vpop.permute.xlu0 %1624
  %1626 = vrot.lane.b32.xlu0 %v1555, 96
  %v1627 = vpop.permute.xlu0 %1626
  %1628 = vrot.lane.b32.xlu0 %v1557, 96
  %v1629 = vpop.permute.xlu0 %1628
  %1630 = vrot.lane.b32.xlu0 %v1560, 96
  %v1631 = vpop.permute.xlu0 %1630
  %1632 = vrot.lane.b32.xlu0 %v1562, 96
  %v1633 = vpop.permute.xlu0 %1632
  %1634 = vrot.lane.b32.xlu0 %v1565, 96
  %v1635 = vpop.permute.xlu0 %1634
  %1636 = vrot.lane.b32.xlu0 %v1567, 96
  %v1637 = vpop.permute.xlu0 %1636
  %1638 = vrot.lane.b32.xlu0 %v1570, 96
  %v1639 = vpop.permute.xlu0 %1638
  %1640 = vrot.lane.b32.xlu0 %v1572, 96
  %v1641 = vpop.permute.xlu0 %1640
  %1642 = vrot.lane.b32.xlu0 %v1575, 96
  %v1643 = vpop.permute.xlu0 %1642
  %1644 = vrot.lane.b32.xlu0 %v1577, 96
  %v1645 = vpop.permute.xlu0 %1644
  %1646 = vrot.lane.b32.xlu0 %v1580, 96
  %v1647 = vpop.permute.xlu0 %1646
  %1648 = vrot.lane.b32.xlu0 %v1582, 96
  %v1649 = vpop.permute.xlu0 %1648
  %1650 = vrot.lane.b32.xlu0 %v1585, 96
  %v1651 = vpop.permute.xlu0 %1650
  %1652 = vrot.lane.b32.xlu0 %v1587, 96
  %v1653 = vpop.permute.xlu0 %1652
  %1654 = vrot.lane.b32.xlu0 %v1590, 96
  %v1655 = vpop.permute.xlu0 %1654
  %1656 = vrot.lane.b32.xlu0 %v1592, 96
  %v1657 = vpop.permute.xlu0 %1656
  %1658 = vrot.lane.b32.xlu0 %v1595, 96
  %v1659 = vpop.permute.xlu0 %1658
  %1660 = vrot.lane.b32.xlu0 %v1597, 96
  %v1661 = vpop.permute.xlu0 %1660
  %v1694 = vrot.slane %v1102, 4
  %v1695 = vrot.slane %v1008, 4
  %v1696 = vsel %vm828, %v1694, %v1695
  %v1697 = vrot.slane %v1118, 4
  %v1698 = vsel %vm828, %v1695, %v1697
  %v1699 = vrot.slane %v1103, 4
  %v1700 = vrot.slane %v1011, 4
  %v1701 = vsel %vm828, %v1699, %v1700
  %v1702 = vrot.slane %v1119, 4
  %v1703 = vsel %vm828, %v1700, %v1702
  %v1704 = vrot.slane %v1104, 4
  %v1705 = vrot.slane %v1014, 4
  %v1706 = vsel %vm828, %v1704, %v1705
  %v1707 = vrot.slane %v1120, 4
  %v1708 = vsel %vm828, %v1705, %v1707
  %v1709 = vrot.slane %v1105, 4
  %v1710 = vrot.slane %v1017, 4
  %v1711 = vsel %vm828, %v1709, %v1710
  %v1712 = vrot.slane %v1121, 4
  %v1713 = vsel %vm828, %v1710, %v1712
  %v1714 = vrot.slane %v1106, 4
  %v1715 = vrot.slane %v1020, 4
  %v1716 = vsel %vm828, %v1714, %v1715
  %v1717 = vrot.slane %v1122, 4
  %v1718 = vsel %vm828, %v1715, %v1717
  %v1719 = vrot.slane %v1107, 4
  %v1720 = vrot.slane %v1023, 4
  %v1721 = vsel %vm828, %v1719, %v1720
  %v1722 = vrot.slane %v1123, 4
  %v1723 = vsel %vm828, %v1720, %v1722
  %v1724 = vrot.slane %v1108, 4
  %v1725 = vrot.slane %v1026, 4
  %v1726 = vsel %vm828, %v1724, %v1725
  %v1727 = vrot.slane %v1124, 4
  %v1728 = vsel %vm828, %v1725, %v1727
  %v1729 = vrot.slane %v1109, 4
  %v1730 = vrot.slane %v1029, 4
  %v1731 = vsel %vm828, %v1729, %v1730
  %v1732 = vrot.slane %v1125, 4
  %v1733 = vsel %vm828, %v1730, %v1732
  %v1734 = vrot.slane %v1110, 4
  %v1735 = vrot.slane %v1032, 4
  %v1736 = vsel %vm828, %v1734, %v1735
  %v1737 = vrot.slane %v1126, 4
  %v1738 = vsel %vm828, %v1735, %v1737
  %v1739 = vrot.slane %v1111, 4
  %v1740 = vrot.slane %v1035, 4
  %v1741 = vsel %vm828, %v1739, %v1740
  %v1742 = vrot.slane %v1127, 4
  %v1743 = vsel %vm828, %v1740, %v1742
  %v1744 = vrot.slane %v1112, 4
  %v1745 = vrot.slane %v1038, 4
  %v1746 = vsel %vm828, %v1744, %v1745
  %v1747 = vrot.slane %v1128, 4
  %v1748 = vsel %vm828, %v1745, %v1747
  %v1749 = vrot.slane %v1113, 4
  %v1750 = vrot.slane %v1041, 4
  %v1751 = vsel %vm828, %v1749, %v1750
  %v1752 = vrot.slane %v1129, 4
  %v1753 = vsel %vm828, %v1750, %v1752
  %v1754 = vrot.slane %v1114, 4
  %v1755 = vrot.slane %v1044, 4
  %v1756 = vsel %vm828, %v1754, %v1755
  %v1757 = vrot.slane %v1130, 4
  %v1758 = vsel %vm828, %v1755, %v1757
  %v1759 = vrot.slane %v1115, 4
  %v1760 = vrot.slane %v1047, 4
  %v1761 = vsel %vm828, %v1759, %v1760
  %v1762 = vrot.slane %v1131, 4
  %v1763 = vsel %vm828, %v1760, %v1762
  %v1764 = vrot.slane %v1116, 4
  %v1765 = vrot.slane %v1050, 4
  %v1766 = vsel %vm828, %v1764, %v1765
  %v1767 = vrot.slane %v1132, 4
  %v1768 = vsel %vm828, %v1765, %v1767
  %v1769 = vrot.slane %v1117, 4
  %v1770 = vrot.slane %v1053, 4
  %v1771 = vsel %vm828, %v1769, %v1770
  %v1772 = vrot.slane %v1133, 4
  %v1773 = vsel %vm828, %v1770, %v1772
  %vm1774 = vcmask 261120
  %v1775 = vsel %vm1774, %v1102, %v1247
  %v1776 = vsel %vm1774, %v1008, %v1249
  %v1777 = vsel %vm1774, %v1103, %v1251
  %v1778 = vsel %vm1774, %v1011, %v1253
  %v1779 = vsel %vm1774, %v1104, %v1255
  %v1780 = vsel %vm1774, %v1014, %v1257
  %v1781 = vsel %vm1774, %v1105, %v1259
  %v1782 = vsel %vm1774, %v1017, %v1261
  %v1783 = vsel %vm1774, %v1106, %v1263
  %v1784 = vsel %vm1774, %v1020, %v1265
  %v1785 = vsel %vm1774, %v1107, %v1267
  %v1786 = vsel %vm1774, %v1023, %v1269
  %v1787 = vsel %vm1774, %v1108, %v1271
  %v1788 = vsel %vm1774, %v1026, %v1273
  %v1789 = vsel %vm1774, %v1109, %v1275
  %v1790 = vsel %vm1774, %v1029, %v1277
  %v1791 = vsel %vm1774, %v1110, %v1279
  %v1792 = vsel %vm1774, %v1032, %v1281
  %v1793 = vsel %vm1774, %v1111, %v1283
  %v1794 = vsel %vm1774, %v1035, %v1285
  %v1795 = vsel %vm1774, %v1112, %v1287
  %v1796 = vsel %vm1774, %v1038, %v1289
  %v1797 = vsel %vm1774, %v1113, %v1291
  %v1798 = vsel %vm1774, %v1041, %v1293
  %v1799 = vsel %vm1774, %v1114, %v1295
  %v1800 = vsel %vm1774, %v1044, %v1297
  %v1801 = vsel %vm1774, %v1115, %v1299
  %v1802 = vsel %vm1774, %v1047, %v1301
  %v1803 = vsel %vm1774, %v1116, %v1303
  %v1804 = vsel %vm1774, %v1050, %v1305
  %v1805 = vsel %vm1774, %v1117, %v1307
  %v1806 = vsel %vm1774, %v1053, %v1309
  %v1807 = vsel %vm909, %v1775, %v1423
  %v1808 = vsel %vm909, %v1776, %v1425
  %v1809 = vsel %vm909, %v1777, %v1427
  %v1810 = vsel %vm909, %v1778, %v1429
  %v1811 = vsel %vm909, %v1779, %v1431
  %v1812 = vsel %vm909, %v1780, %v1433
  %v1813 = vsel %vm909, %v1781, %v1435
  %v1814 = vsel %vm909, %v1782, %v1437
  %v1815 = vsel %vm909, %v1783, %v1439
  %v1816 = vsel %vm909, %v1784, %v1441
  %v1817 = vsel %vm909, %v1785, %v1443
  %v1818 = vsel %vm909, %v1786, %v1445
  %v1819 = vsel %vm909, %v1787, %v1447
  %v1820 = vsel %vm909, %v1788, %v1449
  %v1821 = vsel %vm909, %v1789, %v1451
  %v1822 = vsel %vm909, %v1790, %v1453
  %v1823 = vsel %vm909, %v1791, %v1455
  %v1824 = vsel %vm909, %v1792, %v1457
  %v1825 = vsel %vm909, %v1793, %v1459
  %v1826 = vsel %vm909, %v1794, %v1461
  %v1827 = vsel %vm909, %v1795, %v1463
  %v1828 = vsel %vm909, %v1796, %v1465
  %v1829 = vsel %vm909, %v1797, %v1467
  %v1830 = vsel %vm909, %v1798, %v1469
  %v1831 = vsel %vm909, %v1799, %v1471
  %v1832 = vsel %vm909, %v1800, %v1473
  %v1833 = vsel %vm909, %v1801, %v1475
  %v1834 = vsel %vm909, %v1802, %v1477
  %v1835 = vsel %vm909, %v1803, %v1479
  %v1836 = vsel %vm909, %v1804, %v1481
  %v1837 = vsel %vm909, %v1805, %v1483
  %v1838 = vsel %vm909, %v1806, %v1485
  %vm1839 = vcmask 785408
  %v1840 = vsel %vm1839, %v1807, %v1599
  %v1841 = vsel %vm1839, %v1808, %v1601
  %v1842 = vsel %vm1839, %v1809, %v1603
  %v1843 = vsel %vm1839, %v1810, %v1605
  %v1844 = vsel %vm1839, %v1811, %v1607
  %v1845 = vsel %vm1839, %v1812, %v1609
  %v1846 = vsel %vm1839, %v1813, %v1611
  %v1847 = vsel %vm1839, %v1814, %v1613
  %v1848 = vsel %vm1839, %v1815, %v1615
  %v1849 = vsel %vm1839, %v1816, %v1617
  %v1850 = vsel %vm1839, %v1817, %v1619
  %v1851 = vsel %vm1839, %v1818, %v1621
  %v1852 = vsel %vm1839, %v1819, %v1623
  %v1853 = vsel %vm1839, %v1820, %v1625
  %v1854 = vsel %vm1839, %v1821, %v1627
  %v1855 = vsel %vm1839, %v1822, %v1629
  %v1856 = vsel %vm1839, %v1823, %v1631
  %v1857 = vsel %vm1839, %v1824, %v1633
  %v1858 = vsel %vm1839, %v1825, %v1635
  %v1859 = vsel %vm1839, %v1826, %v1637
  %v1860 = vsel %vm1839, %v1827, %v1639
  %v1861 = vsel %vm1839, %v1828, %v1641
  %v1862 = vsel %vm1839, %v1829, %v1643
  %v1863 = vsel %vm1839, %v1830, %v1645
  %v1864 = vsel %vm1839, %v1831, %v1647
  %v1865 = vsel %vm1839, %v1832, %v1649
  %v1866 = vsel %vm1839, %v1833, %v1651
  %v1867 = vsel %vm1839, %v1834, %v1653
  %v1868 = vsel %vm1839, %v1835, %v1655
  %v1869 = vsel %vm1839, %v1836, %v1657
  %v1870 = vsel %vm1839, %v1837, %v1659
  %v1871 = vsel %vm1839, %v1838, %v1661
  %v1873 = vlaneseq
  %v1874 = vshrl.u32 %v1873, 7
  %v1875 = vsub.s32 0, %v1874
  %v1876 = vrot.slane %v167, %v1875
  %v1878 = vsel %vm909, %v831, 0
  %v1880 = vsel %vm909, %v833, 0
  %v1882 = vsel %vm909, %v836, 0
  %v1884 = vsel %vm909, %v838, 0
  %v1886 = vsel %vm909, %v841, 0
  %v1888 = vsel %vm909, %v843, 0
  %v1890 = vsel %vm909, %v846, 0
  %v1892 = vsel %vm909, %v848, 0
  %v1894 = vsel %vm909, %v851, 0
  %v1896 = vsel %vm909, %v853, 0
  %v1898 = vsel %vm909, %v856, 0
  %v1900 = vsel %vm909, %v858, 0
  %v1902 = vsel %vm909, %v861, 0
  %v1904 = vsel %vm909, %v863, 0
  %v1906 = vsel %vm909, %v866, 0
  %v1908 = vsel %vm909, %v868, 0
  %v1910 = vsel %vm909, %v871, 0
  %v1912 = vsel %vm909, %v873, 0
  %v1914 = vsel %vm909, %v876, 0
  %v1916 = vsel %vm909, %v878, 0
  %v1918 = vsel %vm909, %v881, 0
  %v1920 = vsel %vm909, %v883, 0
  %v1922 = vsel %vm909, %v886, 0
  %v1924 = vsel %vm909, %v888, 0
  %v1926 = vsel %vm909, %v891, 0
  %v1928 = vsel %vm909, %v893, 0
  %v1930 = vsel %vm909, %v896, 0
  %v1932 = vsel %vm909, %v898, 0
  %v1934 = vsel %vm909, %v901, 0
  %v1936 = vsel %vm909, %v903, 0
  %v1938 = vsel %vm909, %v906, 0
  %v1940 = vsel %vm909, %v908, 0
  %1942 = vmatprep.subr.mxu0 0.0
  %1943 = vmatpush1.msra.mxu0 %v87
  %1944 = vmatprep.subr.mxu0 0.0
  %1945 = vmatpush1.msra.mxu0 %v88
  %1946 = vmatprep.subr.mxu0 0.0
  %1947 = vmatpush1.msra.mxu0 %v89
  %1948 = vmatprep.subr.mxu0 0.0
  %1949 = vmatpush1.msra.mxu0 %v90
  %1950 = vmatprep.subr.mxu0 0.0
  %1951 = vmatpush1.msra.mxu0 %v91
  %1952 = vmatprep.subr.mxu0 0.0
  %1953 = vmatpush1.msra.mxu0 %v92
  %1954 = vmatprep.subr.mxu0 0.0
  %1955 = vmatpush1.msra.mxu0 %v93
  %1956 = vmatprep.subr.mxu0 0.0
  %1957 = vmatpush1.msra.mxu0 %v94
  %1958 = vmatprep.subr.mxu0 0.0
  %1959 = vmatpush1.msra.mxu0 %v95
  %1960 = vmatprep.subr.mxu0 0.0
  %1961 = vmatpush1.msra.mxu0 %v96
  %1962 = vmatprep.subr.mxu0 0.0
  %1963 = vmatpush1.msra.mxu0 %v97
  %1964 = vmatprep.subr.mxu0 0.0
  %1965 = vmatpush1.msra.mxu0 %v98
  %1966 = vmatprep.subr.mxu0 0.0
  %1967 = vmatpush1.msra.mxu0 %v99
  %1968 = vmatprep.subr.mxu0 0.0
  %1969 = vmatpush1.msra.mxu0 %v100
  %1970 = vmatprep.subr.mxu0 0.0
  %1971 = vmatpush1.msra.mxu0 %v101
  %1972 = vmatprep.subr.mxu0 0.0
  %1973 = vmatpush1.msra.mxu0 %v102
  %1974 = vmatprep.subr.mxu0 0.0
  %1975 = vmatpush1.msra.mxu0 %v103
  %1976 = vmatprep.subr.mxu0 0.0
  %1977 = vmatpush1.msra.mxu0 %v104
  %1978 = vmatprep.subr.mxu0 0.0
  %1979 = vmatpush1.msra.mxu0 %v105
  %1980 = vmatprep.subr.mxu0 0.0
  %1981 = vmatpush1.msra.mxu0 %v106
  %1982 = vmatprep.subr.mxu0 0.0
  %1983 = vmatpush1.msra.mxu0 %v107
  %1984 = vmatprep.subr.mxu0 0.0
  %1985 = vmatpush1.msra.mxu0 %v108
  %1986 = vmatprep.subr.mxu0 0.0
  %1987 = vmatpush1.msra.mxu0 %v109
  %1988 = vmatprep.subr.mxu0 0.0
  %1989 = vmatpush1.msra.mxu0 %v110
  %1990 = vmatprep.subr.mxu0 0.0
  %1991 = vmatpush1.msra.mxu0 %v111
  %1992 = vmatprep.subr.mxu0 0.0
  %1993 = vmatpush1.msra.mxu0 %v112
  %1994 = vmatprep.subr.mxu0 0.0
  %1995 = vmatpush1.msra.mxu0 %v113
  %1996 = vmatprep.subr.mxu0 0.0
  %1997 = vmatpush1.msra.mxu0 %v114
  %1998 = vmatprep.subr.mxu0 0.0
  %1999 = vmatpush1.msra.mxu0 %v115
  %2000 = vmatprep.subr.mxu0 0.0
  %2001 = vmatpush1.msra.mxu0 %v116
  %2002 = vmatprep.subr.mxu0 0.0
  %2003 = vmatpush1.msra.mxu0 %v117
  %2004 = vmatprep.subr.mxu0 0.0
  %2005 = vmatpush1.msra.mxu0 %v118
  %2006 = vmatprep.mubr.f32.mxu0 %v942
  %2007 = vmatmul.mubr.f32.gmra.mrb[0].mxu0 %v910
  %v2008 = vpop.f32.mrb[0].mxu0
  %v2009 = vadd.f32 %v1876, %v2008
  %v2010 = vpop.f32.mrb[0].mxu0
  %2011 = vmatprep.mubr.f32.mxu0 %v943
  %2012 = vmatmul.mubr.f32.gmra.mrb[0].mxu0 %v911
  %v2013 = vpop.f32.mrb[0].mxu0
  %v2014 = vadd.f32 %v1876, %v2013
  %v2015 = vpop.f32.mrb[0].mxu0
  %2016 = vmatprep.mubr.f32.mxu0 %v944
  %2017 = vmatmul.mubr.f32.gmra.mrb[0].mxu0 %v912
  %v2018 = vpop.f32.mrb[0].mxu0
  %v2019 = vadd.f32 %v1876, %v2018
  %v2020 = vpop.f32.mrb[0].mxu0
  %2021 = vmatprep.mubr.f32.mxu0 %v945
  %2022 = vmatmul.mubr.f32.gmra.mrb[0].mxu0 %v913
  %v2023 = vpop.f32.mrb[0].mxu0
  %v2024 = vadd.f32 %v1876, %v2023
  %v2025 = vpop.f32.mrb[0].mxu0
  %2026 = vmatprep.mubr.f32.mxu0 %v946
  %2027 = vmatmul.mubr.f32.gmra.mrb[0].mxu0 %v914
  %v2028 = vpop.f32.mrb[0].mxu0
  %v2029 = vadd.f32 %v1876, %v2028
  %v2030 = vpop.f32.mrb[0].mxu0
  %2031 = vmatprep.mubr.f32.mxu0 %v947
  %2032 = vmatmul.mubr.f32.gmra.mrb[0].mxu0 %v915
  %v2033 = vpop.f32.mrb[0].mxu0
  %v2034 = vadd.f32 %v1876, %v2033
  %v2035 = vpop.f32.mrb[0].mxu0
  %2036 = vmatprep.mubr.f32.mxu0 %v948
  %2037 = vmatmul.mubr.f32.gmra.mrb[0].mxu0 %v916
  %v2038 = vpop.f32.mrb[0].mxu0
  %v2039 = vadd.f32 %v1876, %v2038
  %v2040 = vpop.f32.mrb[0].mxu0
  %2041 = vmatprep.mubr.f32.mxu0 %v949
  %2042 = vmatmul.mubr.f32.gmra.mrb[0].mxu0 %v917
  %v2043 = vpop.f32.mrb[0].mxu0
  %v2044 = vadd.f32 %v1876, %v2043
  %v2045 = vpop.f32.mrb[0].mxu0
  %2046 = vmatprep.mubr.f32.mxu0 %v950
  %2047 = vmatmul.mubr.f32.gmra.mrb[0].mxu0 %v918
  %v2048 = vpop.f32.mrb[0].mxu0
  %v2049 = vadd.f32 %v1876, %v2048
  %v2050 = vpop.f32.mrb[0].mxu0
  %2051 = vmatprep.mubr.f32.mxu0 %v951
  %2052 = vmatmul.mubr.f32.gmra.mrb[0].mxu0 %v919
  %v2053 = vpop.f32.mrb[0].mxu0
  %v2054 = vadd.f32 %v1876, %v2053
  %v2055 = vpop.f32.mrb[0].mxu0
  %2056 = vmatprep.mubr.f32.mxu0 %v952
  %2057 = vmatmul.mubr.f32.gmra.mrb[0].mxu0 %v920
  %v2058 = vpop.f32.mrb[0].mxu0
  %v2059 = vadd.f32 %v1876, %v2058
  %v2060 = vpop.f32.mrb[0].mxu0
  %2061 = vmatprep.mubr.f32.mxu0 %v953
  %2062 = vmatmul.mubr.f32.gmra.mrb[0].mxu0 %v921
  %v2063 = vpop.f32.mrb[0].mxu0
  %v2064 = vadd.f32 %v1876, %v2063
  %v2065 = vpop.f32.mrb[0].mxu0
  %2066 = vmatprep.mubr.f32.mxu0 %v954
  %2067 = vmatmul.mubr.f32.gmra.mrb[0].mxu0 %v922
  %v2068 = vpop.f32.mrb[0].mxu0
  %v2069 = vadd.f32 %v1876, %v2068
  %v2070 = vpop.f32.mrb[0].mxu0
  %2071 = vmatprep.mubr.f32.mxu0 %v955
  %2072 = vmatmul.mubr.f32.gmra.mrb[0].mxu0 %v923
  %v2073 = vpop.f32.mrb[0].mxu0
  %v2074 = vadd.f32 %v1876, %v2073
  %v2075 = vpop.f32.mrb[0].mxu0
  %2076 = vmatprep.mubr.f32.mxu0 %v956
  %2077 = vmatmul.mubr.f32.gmra.mrb[0].mxu0 %v924
  %v2078 = vpop.f32.mrb[0].mxu0
  %v2079 = vadd.f32 %v1876, %v2078
  %v2080 = vpop.f32.mrb[0].mxu0
  %2081 = vmatprep.mubr.f32.mxu0 %v957
  %2082 = vmatmul.mubr.f32.gmra.mrb[0].mxu0 %v925
  %v2083 = vpop.f32.mrb[0].mxu0
  %v2084 = vadd.f32 %v1876, %v2083
  %v2085 = vpop.f32.mrb[0].mxu0
  %2086 = vmatprep.mubr.f32.mxu0 %v958
  %2087 = vmatmul.mubr.f32.gmra.mrb[0].mxu0 %v926
  %v2088 = vpop.f32.mrb[0].mxu0
  %v2089 = vadd.f32 %v1876, %v2088
  %v2090 = vpop.f32.mrb[0].mxu0
  %2091 = vmatprep.mubr.f32.mxu0 %v959
  %2092 = vmatmul.mubr.f32.gmra.mrb[0].mxu0 %v927
  %v2093 = vpop.f32.mrb[0].mxu0
  %v2094 = vadd.f32 %v1876, %v2093
  %v2095 = vpop.f32.mrb[0].mxu0
  %2096 = vmatprep.mubr.f32.mxu0 %v960
  %2097 = vmatmul.mubr.f32.gmra.mrb[0].mxu0 %v928
  %v2098 = vpop.f32.mrb[0].mxu0
  %v2099 = vadd.f32 %v1876, %v2098
  %v2100 = vpop.f32.mrb[0].mxu0
  %2101 = vmatprep.mubr.f32.mxu0 %v961
  %2102 = vmatmul.mubr.f32.gmra.mrb[0].mxu0 %v929
  %v2103 = vpop.f32.mrb[0].mxu0
  %v2104 = vadd.f32 %v1876, %v2103
  %v2105 = vpop.f32.mrb[0].mxu0
  %2106 = vmatprep.mubr.f32.mxu0 %v962
  %2107 = vmatmul.mubr.f32.gmra.mrb[0].mxu0 %v930
  %v2108 = vpop.f32.mrb[0].mxu0
  %v2109 = vadd.f32 %v1876, %v2108
  %v2110 = vpop.f32.mrb[0].mxu0
  %2111 = vmatprep.mubr.f32.mxu0 %v963
  %2112 = vmatmul.mubr.f32.gmra.mrb[0].mxu0 %v931
  %v2113 = vpop.f32.mrb[0].mxu0
  %v2114 = vadd.f32 %v1876, %v2113
  %v2115 = vpop.f32.mrb[0].mxu0
  %2116 = vmatprep.mubr.f32.mxu0 %v964
  %2117 = vmatmul.mubr.f32.gmra.mrb[0].mxu0 %v932
  %v2118 = vpop.f32.mrb[0].mxu0
  %v2119 = vadd.f32 %v1876, %v2118
  %v2120 = vpop.f32.mrb[0].mxu0
  %2121 = vmatprep.mubr.f32.mxu0 %v965
  %2122 = vmatmul.mubr.f32.gmra.mrb[0].mxu0 %v933
  %v2123 = vpop.f32.mrb[0].mxu0
  %v2124 = vadd.f32 %v1876, %v2123
  %v2125 = vpop.f32.mrb[0].mxu0
  %2126 = vmatprep.mubr.f32.mxu0 %v966
  %2127 = vmatmul.mubr.f32.gmra.mrb[0].mxu0 %v934
  %v2128 = vpop.f32.mrb[0].mxu0
  %v2129 = vadd.f32 %v1876, %v2128
  %v2130 = vpop.f32.mrb[0].mxu0
  %2131 = vmatprep.mubr.f32.mxu0 %v967
  %2132 = vmatmul.mubr.f32.gmra.mrb[0].mxu0 %v935
  %v2133 = vpop.f32.mrb[0].mxu0
  %v2134 = vadd.f32 %v1876, %v2133
  %v2135 = vpop.f32.mrb[0].mxu0
  %2136 = vmatprep.mubr.f32.mxu0 %v968
  %2137 = vmatmul.mubr.f32.gmra.mrb[0].mxu0 %v936
  %v2138 = vpop.f32.mrb[0].mxu0
  %v2139 = vadd.f32 %v1876, %v2138
  %v2140 = vpop.f32.mrb[0].mxu0
  %2141 = vmatprep.mubr.f32.mxu0 %v969
  %2142 = vmatmul.mubr.f32.gmra.mrb[0].mxu0 %v937
  %v2143 = vpop.f32.mrb[0].mxu0
  %v2144 = vadd.f32 %v1876, %v2143
  %v2145 = vpop.f32.mrb[0].mxu0
  %2146 = vmatprep.mubr.f32.mxu0 %v970
  %2147 = vmatmul.mubr.f32.gmra.mrb[0].mxu0 %v938
  %v2148 = vpop.f32.mrb[0].mxu0
  %v2149 = vadd.f32 %v1876, %v2148
  %v2150 = vpop.f32.mrb[0].mxu0
  %2151 = vmatprep.mubr.f32.mxu0 %v971
  %2152 = vmatmul.mubr.f32.gmra.mrb[0].mxu0 %v939
  %v2153 = vpop.f32.mrb[0].mxu0
  %v2154 = vadd.f32 %v1876, %v2153
  %v2155 = vpop.f32.mrb[0].mxu0
  %2156 = vmatprep.mubr.f32.mxu0 %v972
  %2157 = vmatmul.mubr.f32.gmra.mrb[0].mxu0 %v940
  %v2158 = vpop.f32.mrb[0].mxu0
  %v2159 = vadd.f32 %v1876, %v2158
  %v2160 = vpop.f32.mrb[0].mxu0
  %2161 = vmatprep.mubr.f32.mxu0 %v973
  %2162 = vmatmul.mubr.f32.gmra.mrb[0].mxu0 %v941
  %v2163 = vpop.f32.mrb[0].mxu0
  %v2164 = vadd.f32 %v1876, %v2163
  %v2165 = vpop.f32.mrb[0].mxu0
  %2166 = vdwg.mxu0
  %2167 = vmatprep.subr.mxu0 0.0
  %2168 = vmatpush1.msra.mxu0 %v119
  %2169 = vmatprep.subr.mxu0 0.0
  %2170 = vmatpush1.msra.mxu0 %v120
  %2171 = vmatprep.subr.mxu0 0.0
  %2172 = vmatpush1.msra.mxu0 %v121
  %2173 = vmatprep.subr.mxu0 0.0
  %2174 = vmatpush1.msra.mxu0 %v122
  %2175 = vmatprep.subr.mxu0 0.0
  %2176 = vmatpush1.msra.mxu0 %v123
  %2177 = vmatprep.subr.mxu0 0.0
  %2178 = vmatpush1.msra.mxu0 %v124
  %2179 = vmatprep.subr.mxu0 0.0
  %2180 = vmatpush1.msra.mxu0 %v125
  %2181 = vmatprep.subr.mxu0 0.0
  %2182 = vmatpush1.msra.mxu0 %v126
  %2183 = vmatprep.subr.mxu0 0.0
  %2184 = vmatpush1.msra.mxu0 0.0
  %2185 = vmatprep.subr.mxu0 0.0
  %2186 = vmatpush1.msra.mxu0 0.0
  %2187 = vmatprep.subr.mxu0 0.0
  %2188 = vmatpush1.msra.mxu0 0.0
  %2189 = vmatprep.subr.mxu0 0.0
  %2190 = vmatpush1.msra.mxu0 0.0
  %2191 = vmatprep.subr.mxu0 0.0
  %2192 = vmatpush1.msra.mxu0 0.0
  %2193 = vmatprep.subr.mxu0 0.0
  %2194 = vmatpush1.msra.mxu0 0.0
  %2195 = vmatprep.subr.mxu0 0.0
  %2196 = vmatpush1.msra.mxu0 0.0
  %2197 = vmatprep.subr.mxu0 0.0
  %2198 = vmatpush1.msra.mxu0 0.0
  %2199 = vmatprep.subr.mxu0 0.0
  %2200 = vmatpush1.msra.mxu0 0.0
  %2201 = vmatprep.subr.mxu0 0.0
  %2202 = vmatpush1.msra.mxu0 0.0
  %2203 = vmatprep.subr.mxu0 0.0
  %2204 = vmatpush1.msra.mxu0 0.0
  %2205 = vmatprep.subr.mxu0 0.0
  %2206 = vmatpush1.msra.mxu0 0.0
  %2207 = vmatprep.subr.mxu0 0.0
  %2208 = vmatpush1.msra.mxu0 0.0
  %2209 = vmatprep.subr.mxu0 0.0
  %2210 = vmatpush1.msra.mxu0 0.0
  %2211 = vmatprep.subr.mxu0 0.0
  %2212 = vmatpush1.msra.mxu0 0.0
  %2213 = vmatprep.subr.mxu0 0.0
  %2214 = vmatpush1.msra.mxu0 0.0
  %2215 = vmatprep.subr.mxu0 0.0
  %2216 = vmatpush1.msra.mxu0 0.0
  %2217 = vmatprep.subr.mxu0 0.0
  %2218 = vmatpush1.msra.mxu0 0.0
  %2219 = vmatprep.subr.mxu0 0.0
  %2220 = vmatpush1.msra.mxu0 0.0
  %2221 = vmatprep.subr.mxu0 0.0
  %2222 = vmatpush1.msra.mxu0 0.0
  %2223 = vmatprep.subr.mxu0 0.0
  %2224 = vmatpush1.msra.mxu0 0.0
  %2225 = vmatprep.subr.mxu0 0.0
  %2226 = vmatpush1.msra.mxu0 0.0
  %2227 = vmatprep.subr.mxu0 0.0
  %2228 = vmatpush1.msra.mxu0 0.0
  %2229 = vmatprep.subr.mxu0 0.0
  %2230 = vmatpush1.msra.mxu0 0.0
  %2231 = vmatprep.mubr.f32.mxu0 0.0
  %2232 = vmatmul.mubr.f32.gmra.mrb[0].mxu0 %v1878
  %v2233 = vpop.f32.mrb[0].mxu0
  %v2234 = vadd.f32 %v2009, %v2233
  %v2235 = vpop.f32.mrb[0].mxu0
  %2236 = vmatprep.mubr.f32.mxu0 0.0
  %2237 = vmatmul.mubr.f32.gmra.mrb[0].mxu0 %v1880
  %v2238 = vpop.f32.mrb[0].mxu0
  %v2239 = vadd.f32 %v2014, %v2238
  %v2240 = vpop.f32.mrb[0].mxu0
  %2241 = vmatprep.mubr.f32.mxu0 0.0
  %2242 = vmatmul.mubr.f32.gmra.mrb[0].mxu0 %v1882
  %v2243 = vpop.f32.mrb[0].mxu0
  %v2244 = vadd.f32 %v2019, %v2243
  %v2245 = vpop.f32.mrb[0].mxu0
  %2246 = vmatprep.mubr.f32.mxu0 0.0
  %2247 = vmatmul.mubr.f32.gmra.mrb[0].mxu0 %v1884
  %v2248 = vpop.f32.mrb[0].mxu0
  %v2249 = vadd.f32 %v2024, %v2248
  %v2250 = vpop.f32.mrb[0].mxu0
  %2251 = vmatprep.mubr.f32.mxu0 0.0
  %2252 = vmatmul.mubr.f32.gmra.mrb[0].mxu0 %v1886
  %v2253 = vpop.f32.mrb[0].mxu0
  %v2254 = vadd.f32 %v2029, %v2253
  %v2255 = vpop.f32.mrb[0].mxu0
  %2256 = vmatprep.mubr.f32.mxu0 0.0
  %2257 = vmatmul.mubr.f32.gmra.mrb[0].mxu0 %v1888
  %v2258 = vpop.f32.mrb[0].mxu0
  %v2259 = vadd.f32 %v2034, %v2258
  %v2260 = vpop.f32.mrb[0].mxu0
  %2261 = vmatprep.mubr.f32.mxu0 0.0
  %2262 = vmatmul.mubr.f32.gmra.mrb[0].mxu0 %v1890
  %v2263 = vpop.f32.mrb[0].mxu0
  %v2264 = vadd.f32 %v2039, %v2263
  %v2265 = vpop.f32.mrb[0].mxu0
  %2266 = vmatprep.mubr.f32.mxu0 0.0
  %2267 = vmatmul.mubr.f32.gmra.mrb[0].mxu0 %v1892
  %v2268 = vpop.f32.mrb[0].mxu0
  %v2269 = vadd.f32 %v2044, %v2268
  %v2270 = vpop.f32.mrb[0].mxu0
  %2271 = vmatprep.mubr.f32.mxu0 0.0
  %2272 = vmatmul.mubr.f32.gmra.mrb[0].mxu0 %v1894
  %v2273 = vpop.f32.mrb[0].mxu0
  %v2274 = vadd.f32 %v2049, %v2273
  %v2275 = vpop.f32.mrb[0].mxu0
  %2276 = vmatprep.mubr.f32.mxu0 0.0
  %2277 = vmatmul.mubr.f32.gmra.mrb[0].mxu0 %v1896
  %v2278 = vpop.f32.mrb[0].mxu0
  %v2279 = vadd.f32 %v2054, %v2278
  %v2280 = vpop.f32.mrb[0].mxu0
  %2281 = vmatprep.mubr.f32.mxu0 0.0
  %2282 = vmatmul.mubr.f32.gmra.mrb[0].mxu0 %v1898
  %v2283 = vpop.f32.mrb[0].mxu0
  %v2284 = vadd.f32 %v2059, %v2283
  %v2285 = vpop.f32.mrb[0].mxu0
  %2286 = vmatprep.mubr.f32.mxu0 0.0
  %2287 = vmatmul.mubr.f32.gmra.mrb[0].mxu0 %v1900
  %v2288 = vpop.f32.mrb[0].mxu0
  %v2289 = vadd.f32 %v2064, %v2288
  %v2290 = vpop.f32.mrb[0].mxu0
  %2291 = vmatprep.mubr.f32.mxu0 0.0
  %2292 = vmatmul.mubr.f32.gmra.mrb[0].mxu0 %v1902
  %v2293 = vpop.f32.mrb[0].mxu0
  %v2294 = vadd.f32 %v2069, %v2293
  %v2295 = vpop.f32.mrb[0].mxu0
  %2296 = vmatprep.mubr.f32.mxu0 0.0
  %2297 = vmatmul.mubr.f32.gmra.mrb[0].mxu0 %v1904
  %v2298 = vpop.f32.mrb[0].mxu0
  %v2299 = vadd.f32 %v2074, %v2298
  %v2300 = vpop.f32.mrb[0].mxu0
  %2301 = vmatprep.mubr.f32.mxu0 0.0
  %2302 = vmatmul.mubr.f32.gmra.mrb[0].mxu0 %v1906
  %v2303 = vpop.f32.mrb[0].mxu0
  %v2304 = vadd.f32 %v2079, %v2303
  %v2305 = vpop.f32.mrb[0].mxu0
  %2306 = vmatprep.mubr.f32.mxu0 0.0
  %2307 = vmatmul.mubr.f32.gmra.mrb[0].mxu0 %v1908
  %v2308 = vpop.f32.mrb[0].mxu0
  %v2309 = vadd.f32 %v2084, %v2308
  %v2310 = vpop.f32.mrb[0].mxu0
  %2311 = vmatprep.mubr.f32.mxu0 0.0
  %2312 = vmatmul.mubr.f32.gmra.mrb[0].mxu0 %v1910
  %v2313 = vpop.f32.mrb[0].mxu0
  %v2314 = vadd.f32 %v2089, %v2313
  %v2315 = vpop.f32.mrb[0].mxu0
  %2316 = vmatprep.mubr.f32.mxu0 0.0
  %2317 = vmatmul.mubr.f32.gmra.mrb[0].mxu0 %v1912
  %v2318 = vpop.f32.mrb[0].mxu0
  %v2319 = vadd.f32 %v2094, %v2318
  %v2320 = vpop.f32.mrb[0].mxu0
  %2321 = vmatprep.mubr.f32.mxu0 0.0
  %2322 = vmatmul.mubr.f32.gmra.mrb[0].mxu0 %v1914
  %v2323 = vpop.f32.mrb[0].mxu0
  %v2324 = vadd.f32 %v2099, %v2323
  %v2325 = vpop.f32.mrb[0].mxu0
  %2326 = vmatprep.mubr.f32.mxu0 0.0
  %2327 = vmatmul.mubr.f32.gmra.mrb[0].mxu0 %v1916
  %v2328 = vpop.f32.mrb[0].mxu0
  %v2329 = vadd.f32 %v2104, %v2328
  %v2330 = vpop.f32.mrb[0].mxu0
  %2331 = vmatprep.mubr.f32.mxu0 0.0
  %2332 = vmatmul.mubr.f32.gmra.mrb[0].mxu0 %v1918
  %v2333 = vpop.f32.mrb[0].mxu0
  %v2334 = vadd.f32 %v2109, %v2333
  %v2335 = vpop.f32.mrb[0].mxu0
  %2336 = vmatprep.mubr.f32.mxu0 0.0
  %2337 = vmatmul.mubr.f32.gmra.mrb[0].mxu0 %v1920
  %v2338 = vpop.f32.mrb[0].mxu0
  %v2339 = vadd.f32 %v2114, %v2338
  %v2340 = vpop.f32.mrb[0].mxu0
  %2341 = vmatprep.mubr.f32.mxu0 0.0
  %2342 = vmatmul.mubr.f32.gmra.mrb[0].mxu0 %v1922
  %v2343 = vpop.f32.mrb[0].mxu0
  %v2344 = vadd.f32 %v2119, %v2343
  %v2345 = vpop.f32.mrb[0].mxu0
  %2346 = vmatprep.mubr.f32.mxu0 0.0
  %2347 = vmatmul.mubr.f32.gmra.mrb[0].mxu0 %v1924
  %v2348 = vpop.f32.mrb[0].mxu0
  %v2349 = vadd.f32 %v2124, %v2348
  %v2350 = vpop.f32.mrb[0].mxu0
  %2351 = vmatprep.mubr.f32.mxu0 0.0
  %2352 = vmatmul.mubr.f32.gmra.mrb[0].mxu0 %v1926
  %v2353 = vpop.f32.mrb[0].mxu0
  %v2354 = vadd.f32 %v2129, %v2353
  %v2355 = vpop.f32.mrb[0].mxu0
  %2356 = vmatprep.mubr.f32.mxu0 0.0
  %2357 = vmatmul.mubr.f32.gmra.mrb[0].mxu0 %v1928
  %v2358 = vpop.f32.mrb[0].mxu0
  %v2359 = vadd.f32 %v2134, %v2358
  %v2360 = vpop.f32.mrb[0].mxu0
  %2361 = vmatprep.mubr.f32.mxu0 0.0
  %2362 = vmatmul.mubr.f32.gmra.mrb[0].mxu0 %v1930
  %v2363 = vpop.f32.mrb[0].mxu0
  %v2364 = vadd.f32 %v2139, %v2363
  %v2365 = vpop.f32.mrb[0].mxu0
  %2366 = vmatprep.mubr.f32.mxu0 0.0
  %2367 = vmatmul.mubr.f32.gmra.mrb[0].mxu0 %v1932
  %v2368 = vpop.f32.mrb[0].mxu0
  %v2369 = vadd.f32 %v2144, %v2368
  %v2370 = vpop.f32.mrb[0].mxu0
  %2371 = vmatprep.mubr.f32.mxu0 0.0
  %2372 = vmatmul.mubr.f32.gmra.mrb[0].mxu0 %v1934
  %v2373 = vpop.f32.mrb[0].mxu0
  %v2374 = vadd.f32 %v2149, %v2373
  %v2375 = vpop.f32.mrb[0].mxu0
  %2376 = vmatprep.mubr.f32.mxu0 0.0
  %2377 = vmatmul.mubr.f32.gmra.mrb[0].mxu0 %v1936
  %v2378 = vpop.f32.mrb[0].mxu0
  %v2379 = vadd.f32 %v2154, %v2378
  %v2380 = vpop.f32.mrb[0].mxu0
  %2381 = vmatprep.mubr.f32.mxu0 0.0
  %2382 = vmatmul.mubr.f32.gmra.mrb[0].mxu0 %v1938
  %v2383 = vpop.f32.mrb[0].mxu0
  %v2384 = vadd.f32 %v2159, %v2383
  %v2385 = vpop.f32.mrb[0].mxu0
  %2386 = vmatprep.mubr.f32.mxu0 0.0
  %2387 = vmatmul.mubr.f32.gmra.mrb[0].mxu0 %v1940
  %v2388 = vpop.f32.mrb[0].mxu0
  %v2389 = vadd.f32 %v2164, %v2388
  %v2390 = vpop.f32.mrb[0].mxu0
  %2391 = vdwg.mxu0
  %v2392 = vsel %vm1774, %v1696, 0
  %v2394 = vsel %vm1774, %v1698, 0
  %v2396 = vsel %vm1774, %v1701, 0
  %v2398 = vsel %vm1774, %v1703, 0
  %v2400 = vsel %vm1774, %v1706, 0
  %v2402 = vsel %vm1774, %v1708, 0
  %v2404 = vsel %vm1774, %v1711, 0
  %v2406 = vsel %vm1774, %v1713, 0
  %v2408 = vsel %vm1774, %v1716, 0
  %v2410 = vsel %vm1774, %v1718, 0
  %v2412 = vsel %vm1774, %v1721, 0
  %v2414 = vsel %vm1774, %v1723, 0
  %v2416 = vsel %vm1774, %v1726, 0
  %v2418 = vsel %vm1774, %v1728, 0
  %v2420 = vsel %vm1774, %v1731, 0
  %v2422 = vsel %vm1774, %v1733, 0
  %v2424 = vsel %vm1774, %v1736, 0
  %v2426 = vsel %vm1774, %v1738, 0
  %v2428 = vsel %vm1774, %v1741, 0
  %v2430 = vsel %vm1774, %v1743, 0
  %v2432 = vsel %vm1774, %v1746, 0
  %v2434 = vsel %vm1774, %v1748, 0
  %v2436 = vsel %vm1774, %v1751, 0
  %v2438 = vsel %vm1774, %v1753, 0
  %v2440 = vsel %vm1774, %v1756, 0
  %v2442 = vsel %vm1774, %v1758, 0
  %v2444 = vsel %vm1774, %v1761, 0
  %v2446 = vsel %vm1774, %v1763, 0
  %v2448 = vsel %vm1774, %v1766, 0
  %v2450 = vsel %vm1774, %v1768, 0
  %v2452 = vsel %vm1774, %v1771, 0
  %v2454 = vsel %vm1774, %v1773, 0
  %2456 = vmatprep.subr.mxu0 0.0
  %2457 = vmatpush1.msra.mxu0 %v127
  %2458 = vmatprep.subr.mxu0 0.0
  %2459 = vmatpush1.msra.mxu0 %v128
  %2460 = vmatprep.subr.mxu0 0.0
  %2461 = vmatpush1.msra.mxu0 %v129
  %2462 = vmatprep.subr.mxu0 0.0
  %2463 = vmatpush1.msra.mxu0 %v130
  %2464 = vmatprep.subr.mxu0 0.0
  %2465 = vmatpush1.msra.mxu0 %v131
  %2466 = vmatprep.subr.mxu0 0.0
  %2467 = vmatpush1.msra.mxu0 %v132
  %2468 = vmatprep.subr.mxu0 0.0
  %2469 = vmatpush1.msra.mxu0 %v133
  %2470 = vmatprep.subr.mxu0 0.0
  %2471 = vmatpush1.msra.mxu0 %v134
  %2472 = vmatprep.subr.mxu0 0.0
  %2473 = vmatpush1.msra.mxu0 %v135
  %2474 = vmatprep.subr.mxu0 0.0
  %2475 = vmatpush1.msra.mxu0 %v136
  %2476 = vmatprep.subr.mxu0 0.0
  %2477 = vmatpush1.msra.mxu0 %v137
  %2478 = vmatprep.subr.mxu0 0.0
  %2479 = vmatpush1.msra.mxu0 %v138
  %2480 = vmatprep.subr.mxu0 0.0
  %2481 = vmatpush1.msra.mxu0 %v139
  %2482 = vmatprep.subr.mxu0 0.0
  %2483 = vmatpush1.msra.mxu0 %v140
  %2484 = vmatprep.subr.mxu0 0.0
  %2485 = vmatpush1.msra.mxu0 %v141
  %2486 = vmatprep.subr.mxu0 0.0
  %2487 = vmatpush1.msra.mxu0 %v142
  %2488 = vmatprep.subr.mxu0 0.0
  %2489 = vmatpush1.msra.mxu0 %v143
  %2490 = vmatprep.subr.mxu0 0.0
  %2491 = vmatpush1.msra.mxu0 %v144
  %2492 = vmatprep.subr.mxu0 0.0
  %2493 = vmatpush1.msra.mxu0 %v145
  %2494 = vmatprep.subr.mxu0 0.0
  %2495 = vmatpush1.msra.mxu0 %v146
  %2496 = vmatprep.subr.mxu0 0.0
  %2497 = vmatpush1.msra.mxu0 0.0
  %2498 = vmatprep.subr.mxu0 0.0
  %2499 = vmatpush1.msra.mxu0 0.0
  %2500 = vmatprep.subr.mxu0 0.0
  %2501 = vmatpush1.msra.mxu0 0.0
  %2502 = vmatprep.subr.mxu0 0.0
  %2503 = vmatpush1.msra.mxu0 0.0
  %2504 = vmatprep.subr.mxu0 0.0
  %2505 = vmatpush1.msra.mxu0 0.0
  %2506 = vmatprep.subr.mxu0 0.0
  %2507 = vmatpush1.msra.mxu0 0.0
  %2508 = vmatprep.subr.mxu0 0.0
  %2509 = vmatpush1.msra.mxu0 0.0
  %2510 = vmatprep.subr.mxu0 0.0
  %2511 = vmatpush1.msra.mxu0 0.0
  %2512 = vmatprep.subr.mxu0 0.0
  %2513 = vmatpush1.msra.mxu0 0.0
  %2514 = vmatprep.subr.mxu0 0.0
  %2515 = vmatpush1.msra.mxu0 0.0
  %2516 = vmatprep.subr.mxu0 0.0
  %2517 = vmatpush1.msra.mxu0 0.0
  %2518 = vmatprep.subr.mxu0 0.0
  %2519 = vmatpush1.msra.mxu0 0.0
  %2520 = vmatprep.mubr.f32.mxu0 %v2392
  %2521 = vmatmul.mubr.f32.gmra.mrb[0].mxu0 %v1840
  %v2522 = vpop.f32.mrb[0].mxu0
  %v2523 = vadd.f32 %v2234, %v2522
  %v2524 = vpop.f32.mrb[0].mxu0
  %2525 = vmatprep.mubr.f32.mxu0 %v2394
  %2526 = vmatmul.mubr.f32.gmra.mrb[0].mxu0 %v1841
  %v2527 = vpop.f32.mrb[0].mxu0
  %v2528 = vadd.f32 %v2239, %v2527
  %v2529 = vpop.f32.mrb[0].mxu0
  %2530 = vmatprep.mubr.f32.mxu0 %v2396
  %2531 = vmatmul.mubr.f32.gmra.mrb[0].mxu0 %v1842
  %v2532 = vpop.f32.mrb[0].mxu0
  %v2533 = vadd.f32 %v2244, %v2532
  %v2534 = vpop.f32.mrb[0].mxu0
  %2535 = vmatprep.mubr.f32.mxu0 %v2398
  %2536 = vmatmul.mubr.f32.gmra.mrb[0].mxu0 %v1843
  %v2537 = vpop.f32.mrb[0].mxu0
  %v2538 = vadd.f32 %v2249, %v2537
  %v2539 = vpop.f32.mrb[0].mxu0
  %2540 = vmatprep.mubr.f32.mxu0 %v2400
  %2541 = vmatmul.mubr.f32.gmra.mrb[0].mxu0 %v1844
  %v2542 = vpop.f32.mrb[0].mxu0
  %v2543 = vadd.f32 %v2254, %v2542
  %v2544 = vpop.f32.mrb[0].mxu0
  %2545 = vmatprep.mubr.f32.mxu0 %v2402
  %2546 = vmatmul.mubr.f32.gmra.mrb[0].mxu0 %v1845
  %v2547 = vpop.f32.mrb[0].mxu0
  %v2548 = vadd.f32 %v2259, %v2547
  %v2549 = vpop.f32.mrb[0].mxu0
  %2550 = vmatprep.mubr.f32.mxu0 %v2404
  %2551 = vmatmul.mubr.f32.gmra.mrb[0].mxu0 %v1846
  %v2552 = vpop.f32.mrb[0].mxu0
  %v2553 = vadd.f32 %v2264, %v2552
  %v2554 = vpop.f32.mrb[0].mxu0
  %2555 = vmatprep.mubr.f32.mxu0 %v2406
  %2556 = vmatmul.mubr.f32.gmra.mrb[0].mxu0 %v1847
  %v2557 = vpop.f32.mrb[0].mxu0
  %v2558 = vadd.f32 %v2269, %v2557
  %v2559 = vpop.f32.mrb[0].mxu0
  %2560 = vmatprep.mubr.f32.mxu0 %v2408
  %2561 = vmatmul.mubr.f32.gmra.mrb[0].mxu0 %v1848
  %v2562 = vpop.f32.mrb[0].mxu0
  %v2563 = vadd.f32 %v2274, %v2562
  %v2564 = vpop.f32.mrb[0].mxu0
  %2565 = vmatprep.mubr.f32.mxu0 %v2410
  %2566 = vmatmul.mubr.f32.gmra.mrb[0].mxu0 %v1849
  %v2567 = vpop.f32.mrb[0].mxu0
  %v2568 = vadd.f32 %v2279, %v2567
  %v2569 = vpop.f32.mrb[0].mxu0
  %2570 = vmatprep.mubr.f32.mxu0 %v2412
  %2571 = vmatmul.mubr.f32.gmra.mrb[0].mxu0 %v1850
  %v2572 = vpop.f32.mrb[0].mxu0
  %v2573 = vadd.f32 %v2284, %v2572
  %v2574 = vpop.f32.mrb[0].mxu0
  %2575 = vmatprep.mubr.f32.mxu0 %v2414
  %2576 = vmatmul.mubr.f32.gmra.mrb[0].mxu0 %v1851
  %v2577 = vpop.f32.mrb[0].mxu0
  %v2578 = vadd.f32 %v2289, %v2577
  %v2579 = vpop.f32.mrb[0].mxu0
  %2580 = vmatprep.mubr.f32.mxu0 %v2416
  %2581 = vmatmul.mubr.f32.gmra.mrb[0].mxu0 %v1852
  %v2582 = vpop.f32.mrb[0].mxu0
  %v2583 = vadd.f32 %v2294, %v2582
  %v2584 = vpop.f32.mrb[0].mxu0
  %2585 = vmatprep.mubr.f32.mxu0 %v2418
  %2586 = vmatmul.mubr.f32.gmra.mrb[0].mxu0 %v1853
  %v2587 = vpop.f32.mrb[0].mxu0
  %v2588 = vadd.f32 %v2299, %v2587
  %v2589 = vpop.f32.mrb[0].mxu0
  %2590 = vmatprep.mubr.f32.mxu0 %v2420
  %2591 = vmatmul.mubr.f32.gmra.mrb[0].mxu0 %v1854
  %v2592 = vpop.f32.mrb[0].mxu0
  %v2593 = vadd.f32 %v2304, %v2592
  %v2594 = vpop.f32.mrb[0].mxu0
  %2595 = vmatprep.mubr.f32.mxu0 %v2422
  %2596 = vmatmul.mubr.f32.gmra.mrb[0].mxu0 %v1855
  %v2597 = vpop.f32.mrb[0].mxu0
  %v2598 = vadd.f32 %v2309, %v2597
  %v2599 = vpop.f32.mrb[0].mxu0
  %2600 = vmatprep.mubr.f32.mxu0 %v2424
  %2601 = vmatmul.mubr.f32.gmra.mrb[0].mxu0 %v1856
  %v2602 = vpop.f32.mrb[0].mxu0
  %v2603 = vadd.f32 %v2314, %v2602
  %v2604 = vpop.f32.mrb[0].mxu0
  %2605 = vmatprep.mubr.f32.mxu0 %v2426
  %2606 = vmatmul.mubr.f32.gmra.mrb[0].mxu0 %v1857
  %v2607 = vpop.f32.mrb[0].mxu0
  %v2608 = vadd.f32 %v2319, %v2607
  %v2609 = vpop.f32.mrb[0].mxu0
  %2610 = vmatprep.mubr.f32.mxu0 %v2428
  %2611 = vmatmul.mubr.f32.gmra.mrb[0].mxu0 %v1858
  %v2612 = vpop.f32.mrb[0].mxu0
  %v2613 = vadd.f32 %v2324, %v2612
  %v2614 = vpop.f32.mrb[0].mxu0
  %2615 = vmatprep.mubr.f32.mxu0 %v2430
  %2616 = vmatmul.mubr.f32.gmra.mrb[0].mxu0 %v1859
  %v2617 = vpop.f32.mrb[0].mxu0
  %v2618 = vadd.f32 %v2329, %v2617
  %v2619 = vpop.f32.mrb[0].mxu0
  %2620 = vmatprep.mubr.f32.mxu0 %v2432
  %2621 = vmatmul.mubr.f32.gmra.mrb[0].mxu0 %v1860
  %v2622 = vpop.f32.mrb[0].mxu0
  %v2623 = vadd.f32 %v2334, %v2622
  %v2624 = vpop.f32.mrb[0].mxu0
  %2625 = vmatprep.mubr.f32.mxu0 %v2434
  %2626 = vmatmul.mubr.f32.gmra.mrb[0].mxu0 %v1861
  %v2627 = vpop.f32.mrb[0].mxu0
  %v2628 = vadd.f32 %v2339, %v2627
  %v2629 = vpop.f32.mrb[0].mxu0
  %2630 = vmatprep.mubr.f32.mxu0 %v2436
  %2631 = vmatmul.mubr.f32.gmra.mrb[0].mxu0 %v1862
  %v2632 = vpop.f32.mrb[0].mxu0
  %v2633 = vadd.f32 %v2344, %v2632
  %v2634 = vpop.f32.mrb[0].mxu0
  %2635 = vmatprep.mubr.f32.mxu0 %v2438
  %2636 = vmatmul.mubr.f32.gmra.mrb[0].mxu0 %v1863
  %v2637 = vpop.f32.mrb[0].mxu0
  %v2638 = vadd.f32 %v2349, %v2637
  %v2639 = vpop.f32.mrb[0].mxu0
  %2640 = vmatprep.mubr.f32.mxu0 %v2440
  %2641 = vmatmul.mubr.f32.gmra.mrb[0].mxu0 %v1864
  %v2642 = vpop.f32.mrb[0].mxu0
  %v2643 = vadd.f32 %v2354, %v2642
  %v2644 = vpop.f32.mrb[0].mxu0
  %2645 = vmatprep.mubr.f32.mxu0 %v2442
  %2646 = vmatmul.mubr.f32.gmra.mrb[0].mxu0 %v1865
  %v2647 = vpop.f32.mrb[0].mxu0
  %v2648 = vadd.f32 %v2359, %v2647
  %v2649 = vpop.f32.mrb[0].mxu0
  %2650 = vmatprep.mubr.f32.mxu0 %v2444
  %2651 = vmatmul.mubr.f32.gmra.mrb[0].mxu0 %v1866
  %v2652 = vpop.f32.mrb[0].mxu0
  %v2653 = vadd.f32 %v2364, %v2652
  %v2654 = vpop.f32.mrb[0].mxu0
  %2655 = vmatprep.mubr.f32.mxu0 %v2446
  %2656 = vmatmul.mubr.f32.gmra.mrb[0].mxu0 %v1867
  %v2657 = vpop.f32.mrb[0].mxu0
  %v2658 = vadd.f32 %v2369, %v2657
  %v2659 = vpop.f32.mrb[0].mxu0
  %2660 = vmatprep.mubr.f32.mxu0 %v2448
  %2661 = vmatmul.mubr.f32.gmra.mrb[0].mxu0 %v1868
  %v2662 = vpop.f32.mrb[0].mxu0
  %v2663 = vadd.f32 %v2374, %v2662
  %v2664 = vpop.f32.mrb[0].mxu0
  %2665 = vmatprep.mubr.f32.mxu0 %v2450
  %2666 = vmatmul.mubr.f32.gmra.mrb[0].mxu0 %v1869
  %v2667 = vpop.f32.mrb[0].mxu0
  %v2668 = vadd.f32 %v2379, %v2667
  %v2669 = vpop.f32.mrb[0].mxu0
  %2670 = vmatprep.mubr.f32.mxu0 %v2452
  %2671 = vmatmul.mubr.f32.gmra.mrb[0].mxu0 %v1870
  %v2672 = vpop.f32.mrb[0].mxu0
  %v2673 = vadd.f32 %v2384, %v2672
  %v2674 = vpop.f32.mrb[0].mxu0
  %2675 = vmatprep.mubr.f32.mxu0 %v2454
  %2676 = vmatmul.mubr.f32.gmra.mrb[0].mxu0 %v1871
  %v2677 = vpop.f32.mrb[0].mxu0
  %v2678 = vadd.f32 %v2389, %v2677
  %v2679 = vpop.f32.mrb[0].mxu0
  %2680 = vdwg.mxu0
  %v2681 = vxor.u32 %v2523, 2147483648
  %v2682 = vxor.u32 %v2528, 2147483648
  %v2683 = vxor.u32 %v2533, 2147483648
  %v2684 = vxor.u32 %v2538, 2147483648
  %v2685 = vxor.u32 %v2543, 2147483648
  %v2686 = vxor.u32 %v2548, 2147483648
  %v2687 = vxor.u32 %v2553, 2147483648
  %v2688 = vxor.u32 %v2558, 2147483648
  %v2689 = vxor.u32 %v2563, 2147483648
  %v2690 = vxor.u32 %v2568, 2147483648
  %v2691 = vxor.u32 %v2573, 2147483648
  %v2692 = vxor.u32 %v2578, 2147483648
  %v2693 = vxor.u32 %v2583, 2147483648
  %v2694 = vxor.u32 %v2588, 2147483648
  %v2695 = vxor.u32 %v2593, 2147483648
  %v2696 = vxor.u32 %v2598, 2147483648
  %v2697 = vxor.u32 %v2603, 2147483648
  %v2698 = vxor.u32 %v2608, 2147483648
  %v2699 = vxor.u32 %v2613, 2147483648
  %v2700 = vxor.u32 %v2618, 2147483648
  %v2701 = vxor.u32 %v2623, 2147483648
  %v2702 = vxor.u32 %v2628, 2147483648
  %v2703 = vxor.u32 %v2633, 2147483648
  %v2704 = vxor.u32 %v2638, 2147483648
  %v2705 = vxor.u32 %v2643, 2147483648
  %v2706 = vxor.u32 %v2648, 2147483648
  %v2707 = vxor.u32 %v2653, 2147483648
  %v2708 = vxor.u32 %v2658, 2147483648
  %v2709 = vxor.u32 %v2663, 2147483648
  %v2710 = vxor.u32 %v2668, 2147483648
  %v2711 = vxor.u32 %v2673, 2147483648
  %v2712 = vxor.u32 %v2678, 2147483648
  %v2713 = vmul.f32 %v2681, 1.442695
  %v2714 = vpow.pop %v2713
  %v2715 = vmul.f32 %v2682, 1.442695
  %v2716 = vpow.pop %v2715
  %v2717 = vmul.f32 %v2683, 1.442695
  %v2718 = vpow.pop %v2717
  %v2719 = vmul.f32 %v2684, 1.442695
  %v2720 = vpow.pop %v2719
  %v2721 = vmul.f32 %v2685, 1.442695
  %v2722 = vpow.pop %v2721
  %v2723 = vmul.f32 %v2686, 1.442695
  %v2724 = vpow.pop %v2723
  %v2725 = vmul.f32 %v2687, 1.442695
  %v2726 = vpow.pop %v2725
  %v2727 = vmul.f32 %v2688, 1.442695
  %v2728 = vpow.pop %v2727
  %v2729 = vmul.f32 %v2689, 1.442695
  %v2730 = vpow.pop %v2729
  %v2731 = vmul.f32 %v2690, 1.442695
  %v2732 = vpow.pop %v2731
  %v2733 = vmul.f32 %v2691, 1.442695
  %v2734 = vpow.pop %v2733
  %v2735 = vmul.f32 %v2692, 1.442695
  %v2736 = vpow.pop %v2735
  %v2737 = vmul.f32 %v2693, 1.442695
  %v2738 = vpow.pop %v2737
  %v2739 = vmul.f32 %v2694, 1.442695
  %v2740 = vpow.pop %v2739
  %v2741 = vmul.f32 %v2695, 1.442695
  %v2742 = vpow.pop %v2741
  %v2743 = vmul.f32 %v2696, 1.442695
  %v2744 = vpow.pop %v2743
  %v2745 = vmul.f32 %v2697, 1.442695
  %v2746 = vpow.pop %v2745
  %v2747 = vmul.f32 %v2698, 1.442695
  %v2748 = vpow.pop %v2747
  %v2749 = vmul.f32 %v2699, 1.442695
  %v2750 = vpow.pop %v2749
  %v2751 = vmul.f32 %v2700, 1.442695
  %v2752 = vpow.pop %v2751
  %v2753 = vmul.f32 %v2701, 1.442695
  %v2754 = vpow.pop %v2753
  %v2755 = vmul.f32 %v2702, 1.442695
  %v2756 = vpow.pop %v2755
  %v2757 = vmul.f32 %v2703, 1.442695
  %v2758 = vpow.pop %v2757
  %v2759 = vmul.f32 %v2704, 1.442695
  %v2760 = vpow.pop %v2759
  %v2761 = vmul.f32 %v2705, 1.442695
  %v2762 = vpow.pop %v2761
  %v2763 = vmul.f32 %v2706, 1.442695
  %v2764 = vpow.pop %v2763
  %v2765 = vmul.f32 %v2707, 1.442695
  %v2766 = vpow.pop %v2765
  %v2767 = vmul.f32 %v2708, 1.442695
  %v2768 = vpow.pop %v2767
  %v2769 = vmul.f32 %v2709, 1.442695
  %v2770 = vpow.pop %v2769
  %v2771 = vmul.f32 %v2710, 1.442695
  %v2772 = vpow.pop %v2771
  %v2773 = vmul.f32 %v2711, 1.442695
  %v2774 = vpow.pop %v2773
  %v2775 = vmul.f32 %v2712, 1.442695
  %v2776 = vpow.pop %v2775
  %v2777 = vadd.f32 %v2714, 1.0
  %v2778 = vadd.f32 %v2716, 1.0
  %v2779 = vadd.f32 %v2718, 1.0
  %v2780 = vadd.f32 %v2720, 1.0
  %v2781 = vadd.f32 %v2722, 1.0
  %v2782 = vadd.f32 %v2724, 1.0
  %v2783 = vadd.f32 %v2726, 1.0
  %v2784 = vadd.f32 %v2728, 1.0
  %v2785 = vadd.f32 %v2730, 1.0
  %v2786 = vadd.f32 %v2732, 1.0
  %v2787 = vadd.f32 %v2734, 1.0
  %v2788 = vadd.f32 %v2736, 1.0
  %v2789 = vadd.f32 %v2738, 1.0
  %v2790 = vadd.f32 %v2740, 1.0
  %v2791 = vadd.f32 %v2742, 1.0
  %v2792 = vadd.f32 %v2744, 1.0
  %v2793 = vadd.f32 %v2746, 1.0
  %v2794 = vadd.f32 %v2748, 1.0
  %v2795 = vadd.f32 %v2750, 1.0
  %v2796 = vadd.f32 %v2752, 1.0
  %v2797 = vadd.f32 %v2754, 1.0
  %v2798 = vadd.f32 %v2756, 1.0
  %v2799 = vadd.f32 %v2758, 1.0
  %v2800 = vadd.f32 %v2760, 1.0
  %v2801 = vadd.f32 %v2762, 1.0
  %v2802 = vadd.f32 %v2764, 1.0
  %v2803 = vadd.f32 %v2766, 1.0
  %v2804 = vadd.f32 %v2768, 1.0
  %v2805 = vadd.f32 %v2770, 1.0
  %v2806 = vadd.f32 %v2772, 1.0
  %v2807 = vadd.f32 %v2774, 1.0
  %v2808 = vadd.f32 %v2776, 1.0
  %v2809 = vrcp.pop %v2777
  %v2810 = vmul.f32 1.0, %v2809
  %v2811 = vrcp.pop %v2778
  %v2812 = vmul.f32 1.0, %v2811
  %v2813 = vrcp.pop %v2779
  %v2814 = vmul.f32 1.0, %v2813
  %v2815 = vrcp.pop %v2780
  %v2816 = vmul.f32 1.0, %v2815
  %v2817 = vrcp.pop %v2781
  %v2818 = vmul.f32 1.0, %v2817
  %v2819 = vrcp.pop %v2782
  %v2820 = vmul.f32 1.0, %v2819
  %v2821 = vrcp.pop %v2783
  %v2822 = vmul.f32 1.0, %v2821
  %v2823 = vrcp.pop %v2784
  %v2824 = vmul.f32 1.0, %v2823
  %v2825 = vrcp.pop %v2785
  %v2826 = vmul.f32 1.0, %v2825
  %v2827 = vrcp.pop %v2786
  %v2828 = vmul.f32 1.0, %v2827
  %v2829 = vrcp.pop %v2787
  %v2830 = vmul.f32 1.0, %v2829
  %v2831 = vrcp.pop %v2788
  %v2832 = vmul.f32 1.0, %v2831
  %v2833 = vrcp.pop %v2789
  %v2834 = vmul.f32 1.0, %v2833
  %v2835 = vrcp.pop %v2790
  %v2836 = vmul.f32 1.0, %v2835
  %v2837 = vrcp.pop %v2791
  %v2838 = vmul.f32 1.0, %v2837
  %v2839 = vrcp.pop %v2792
  %v2840 = vmul.f32 1.0, %v2839
  %v2841 = vrcp.pop %v2793
  %v2842 = vmul.f32 1.0, %v2841
  %v2843 = vrcp.pop %v2794
  %v2844 = vmul.f32 1.0, %v2843
  %v2845 = vrcp.pop %v2795
  %v2846 = vmul.f32 1.0, %v2845
  %v2847 = vrcp.pop %v2796
  %v2848 = vmul.f32 1.0, %v2847
  %v2849 = vrcp.pop %v2797
  %v2850 = vmul.f32 1.0, %v2849
  %v2851 = vrcp.pop %v2798
  %v2852 = vmul.f32 1.0, %v2851
  %v2853 = vrcp.pop %v2799
  %v2854 = vmul.f32 1.0, %v2853
  %v2855 = vrcp.pop %v2800
  %v2856 = vmul.f32 1.0, %v2855
  %v2857 = vrcp.pop %v2801
  %v2858 = vmul.f32 1.0, %v2857
  %v2859 = vrcp.pop %v2802
  %v2860 = vmul.f32 1.0, %v2859
  %v2861 = vrcp.pop %v2803
  %v2862 = vmul.f32 1.0, %v2861
  %v2863 = vrcp.pop %v2804
  %v2864 = vmul.f32 1.0, %v2863
  %v2865 = vrcp.pop %v2805
  %v2866 = vmul.f32 1.0, %v2865
  %v2867 = vrcp.pop %v2806
  %v2868 = vmul.f32 1.0, %v2867
  %v2869 = vrcp.pop %v2807
  %v2870 = vmul.f32 1.0, %v2869
  %v2871 = vrcp.pop %v2808
  %v2872 = vmul.f32 1.0, %v2871
  %2873 = vrot.lane.b32.xlu0 %v23, 32
  %v2874 = vpop.permute.xlu0 %2873
  %2875 = vrot.lane.b32.xlu0 %v24, 32
  %v2876 = vpop.permute.xlu0 %2875
  %2877 = vrot.lane.b32.xlu0 %v25, 32
  %v2878 = vpop.permute.xlu0 %2877
  %2879 = vrot.lane.b32.xlu0 %v26, 32
  %v2880 = vpop.permute.xlu0 %2879
  %2881 = vrot.lane.b32.xlu0 %v27, 32
  %v2882 = vpop.permute.xlu0 %2881
  %2883 = vrot.lane.b32.xlu0 %v28, 32
  %v2884 = vpop.permute.xlu0 %2883
  %2885 = vrot.lane.b32.xlu0 %v29, 32
  %v2886 = vpop.permute.xlu0 %2885
  %2887 = vrot.lane.b32.xlu0 %v30, 32
  %v2888 = vpop.permute.xlu0 %2887
  %2889 = vrot.lane.b32.xlu0 %v31, 32
  %v2890 = vpop.permute.xlu0 %2889
  %2891 = vrot.lane.b32.xlu0 %v32, 32
  %v2892 = vpop.permute.xlu0 %2891
  %2893 = vrot.lane.b32.xlu0 %v33, 32
  %v2894 = vpop.permute.xlu0 %2893
  %2895 = vrot.lane.b32.xlu0 %v34, 32
  %v2896 = vpop.permute.xlu0 %2895
  %2897 = vrot.lane.b32.xlu0 %v35, 32
  %v2898 = vpop.permute.xlu0 %2897
  %2899 = vrot.lane.b32.xlu0 %v36, 32
  %v2900 = vpop.permute.xlu0 %2899
  %2901 = vrot.lane.b32.xlu0 %v37, 32
  %v2902 = vpop.permute.xlu0 %2901
  %2903 = vrot.lane.b32.xlu0 %v38, 32
  %v2904 = vpop.permute.xlu0 %2903
  %2905 = vrot.lane.b32.xlu0 %v39, 32
  %v2906 = vpop.permute.xlu0 %2905
  %2907 = vrot.lane.b32.xlu0 %v40, 32
  %v2908 = vpop.permute.xlu0 %2907
  %2909 = vrot.lane.b32.xlu0 %v41, 32
  %v2910 = vpop.permute.xlu0 %2909
  %2911 = vrot.lane.b32.xlu0 %v42, 32
  %v2912 = vpop.permute.xlu0 %2911
  %2913 = vrot.lane.b32.xlu0 %v43, 32
  %v2914 = vpop.permute.xlu0 %2913
  %2915 = vrot.lane.b32.xlu0 %v44, 32
  %v2916 = vpop.permute.xlu0 %2915
  %2917 = vrot.lane.b32.xlu0 %v45, 32
  %v2918 = vpop.permute.xlu0 %2917
  %2919 = vrot.lane.b32.xlu0 %v46, 32
  %v2920 = vpop.permute.xlu0 %2919
  %2921 = vrot.lane.b32.xlu0 %v47, 32
  %v2922 = vpop.permute.xlu0 %2921
  %2923 = vrot.lane.b32.xlu0 %v48, 32
  %v2924 = vpop.permute.xlu0 %2923
  %2925 = vrot.lane.b32.xlu0 %v49, 32
  %v2926 = vpop.permute.xlu0 %2925
  %2927 = vrot.lane.b32.xlu0 %v50, 32
  %v2928 = vpop.permute.xlu0 %2927
  %2929 = vrot.lane.b32.xlu0 %v51, 32
  %v2930 = vpop.permute.xlu0 %2929
  %2931 = vrot.lane.b32.xlu0 %v52, 32
  %v2932 = vpop.permute.xlu0 %2931
  %2933 = vrot.lane.b32.xlu0 %v53, 32
  %v2934 = vpop.permute.xlu0 %2933
  %2935 = vrot.lane.b32.xlu0 %v54, 32
  %v2936 = vpop.permute.xlu0 %2935
  %v2969 = vmul.f32 %v2810, %v2874
  %v2970 = vmul.f32 %v2812, %v2876
  %v2971 = vmul.f32 %v2814, %v2878
  %v2972 = vmul.f32 %v2816, %v2880
  %v2973 = vmul.f32 %v2818, %v2882
  %v2974 = vmul.f32 %v2820, %v2884
  %v2975 = vmul.f32 %v2822, %v2886
  %v2976 = vmul.f32 %v2824, %v2888
  %v2977 = vmul.f32 %v2826, %v2890
  %v2978 = vmul.f32 %v2828, %v2892
  %v2979 = vmul.f32 %v2830, %v2894
  %v2980 = vmul.f32 %v2832, %v2896
  %v2981 = vmul.f32 %v2834, %v2898
  %v2982 = vmul.f32 %v2836, %v2900
  %v2983 = vmul.f32 %v2838, %v2902
  %v2984 = vmul.f32 %v2840, %v2904
  %v2985 = vmul.f32 %v2842, %v2906
  %v2986 = vmul.f32 %v2844, %v2908
  %v2987 = vmul.f32 %v2846, %v2910
  %v2988 = vmul.f32 %v2848, %v2912
  %v2989 = vmul.f32 %v2850, %v2914
  %v2990 = vmul.f32 %v2852, %v2916
  %v2991 = vmul.f32 %v2854, %v2918
  %v2992 = vmul.f32 %v2856, %v2920
  %v2993 = vmul.f32 %v2858, %v2922
  %v2994 = vmul.f32 %v2860, %v2924
  %v2995 = vmul.f32 %v2862, %v2926
  %v2996 = vmul.f32 %v2864, %v2928
  %v2997 = vmul.f32 %v2866, %v2930
  %v2998 = vmul.f32 %v2868, %v2932
  %v2999 = vmul.f32 %v2870, %v2934
  %v3000 = vmul.f32 %v2872, %v2936
  %v3033 = vrot.slane %v2969, 6
  %v3034 = vrot.slane %v2970, 6
  %v3035 = vsel %vm200, %v3033, %v3034
  %v3036 = vrot.slane %v2971, 6
  %v3037 = vrot.slane %v2972, 6
  %v3038 = vsel %vm200, %v3036, %v3037
  %v3039 = vrot.slane %v2973, 6
  %v3040 = vrot.slane %v2974, 6
  %v3041 = vsel %vm200, %v3039, %v3040
  %v3042 = vrot.slane %v2975, 6
  %v3043 = vrot.slane %v2976, 6
  %v3044 = vsel %vm200, %v3042, %v3043
  %v3045 = vrot.slane %v2977, 6
  %v3046 = vrot.slane %v2978, 6
  %v3047 = vsel %vm200, %v3045, %v3046
  %v3048 = vrot.slane %v2979, 6
  %v3049 = vrot.slane %v2980, 6
  %v3050 = vsel %vm200, %v3048, %v3049
  %v3051 = vrot.slane %v2981, 6
  %v3052 = vrot.slane %v2982, 6
  %v3053 = vsel %vm200, %v3051, %v3052
  %v3054 = vrot.slane %v2983, 6
  %v3055 = vrot.slane %v2984, 6
  %v3056 = vsel %vm200, %v3054, %v3055
  %v3057 = vrot.slane %v2985, 6
  %v3058 = vrot.slane %v2986, 6
  %v3059 = vsel %vm200, %v3057, %v3058
  %v3060 = vrot.slane %v2987, 6
  %v3061 = vrot.slane %v2988, 6
  %v3062 = vsel %vm200, %v3060, %v3061
  %v3063 = vrot.slane %v2989, 6
  %v3064 = vrot.slane %v2990, 6
  %v3065 = vsel %vm200, %v3063, %v3064
  %v3066 = vrot.slane %v2991, 6
  %v3067 = vrot.slane %v2992, 6
  %v3068 = vsel %vm200, %v3066, %v3067
  %v3069 = vrot.slane %v2993, 6
  %v3070 = vrot.slane %v2994, 6
  %v3071 = vsel %vm200, %v3069, %v3070
  %v3072 = vrot.slane %v2995, 6
  %v3073 = vrot.slane %v2996, 6
  %v3074 = vsel %vm200, %v3072, %v3073
  %v3075 = vrot.slane %v2997, 6
  %v3076 = vrot.slane %v2998, 6
  %v3077 = vsel %vm200, %v3075, %v3076
  %v3078 = vrot.slane %v2999, 6
  %v3079 = vrot.slane %v3000, 6
  %v3080 = vsel %vm200, %v3078, %v3079
  %3081 = vrot.lane.b32.xlu0 %v3033, 96
  %v3082 = vpop.permute.xlu0 %3081
  %3083 = vrot.lane.b32.xlu0 %v3035, 96
  %v3084 = vpop.permute.xlu0 %3083
  %3085 = vrot.lane.b32.xlu0 %v3034, 96
  %v3086 = vpop.permute.xlu0 %3085
  %3087 = vrot.lane.b32.xlu0 %v3036, 96
  %v3088 = vpop.permute.xlu0 %3087
  %3089 = vrot.lane.b32.xlu0 %v3038, 96
  %v3090 = vpop.permute.xlu0 %3089
  %3091 = vrot.lane.b32.xlu0 %v3037, 96
  %v3092 = vpop.permute.xlu0 %3091
  %3093 = vrot.lane.b32.xlu0 %v3039, 96
  %v3094 = vpop.permute.xlu0 %3093
  %3095 = vrot.lane.b32.xlu0 %v3041, 96
  %v3096 = vpop.permute.xlu0 %3095
  %3097 = vrot.lane.b32.xlu0 %v3040, 96
  %v3098 = vpop.permute.xlu0 %3097
  %3099 = vrot.lane.b32.xlu0 %v3042, 96
  %v3100 = vpop.permute.xlu0 %3099
  %3101 = vrot.lane.b32.xlu0 %v3044, 96
  %v3102 = vpop.permute.xlu0 %3101
  %3103 = vrot.lane.b32.xlu0 %v3043, 96
  %v3104 = vpop.permute.xlu0 %3103
  %3105 = vrot.lane.b32.xlu0 %v3045, 96
  %v3106 = vpop.permute.xlu0 %3105
  %3107 = vrot.lane.b32.xlu0 %v3047, 96
  %v3108 = vpop.permute.xlu0 %3107
  %3109 = vrot.lane.b32.xlu0 %v3046, 96
  %v3110 = vpop.permute.xlu0 %3109
  %3111 = vrot.lane.b32.xlu0 %v3048, 96
  %v3112 = vpop.permute.xlu0 %3111
  %3113 = vrot.lane.b32.xlu0 %v3050, 96
  %v3114 = vpop.permute.xlu0 %3113
  %3115 = vrot.lane.b32.xlu0 %v3049, 96
  %v3116 = vpop.permute.xlu0 %3115
  %3117 = vrot.lane.b32.xlu0 %v3051, 96
  %v3118 = vpop.permute.xlu0 %3117
  %3119 = vrot.lane.b32.xlu0 %v3053, 96
  %v3120 = vpop.permute.xlu0 %3119
  %3121 = vrot.lane.b32.xlu0 %v3052, 96
  %v3122 = vpop.permute.xlu0 %3121
  %3123 = vrot.lane.b32.xlu0 %v3054, 96
  %v3124 = vpop.permute.xlu0 %3123
  %3125 = vrot.lane.b32.xlu0 %v3056, 96
  %v3126 = vpop.permute.xlu0 %3125
  %3127 = vrot.lane.b32.xlu0 %v3055, 96
  %v3128 = vpop.permute.xlu0 %3127
  %3129 = vrot.lane.b32.xlu0 %v3057, 96
  %v3130 = vpop.permute.xlu0 %3129
  %3131 = vrot.lane.b32.xlu0 %v3059, 96
  %v3132 = vpop.permute.xlu0 %3131
  %3133 = vrot.lane.b32.xlu0 %v3058, 96
  %v3134 = vpop.permute.xlu0 %3133
  %3135 = vrot.lane.b32.xlu0 %v3060, 96
  %v3136 = vpop.permute.xlu0 %3135
  %3137 = vrot.lane.b32.xlu0 %v3062, 96
  %v3138 = vpop.permute.xlu0 %3137
  %3139 = vrot.lane.b32.xlu0 %v3061, 96
  %v3140 = vpop.permute.xlu0 %3139
  %3141 = vrot.lane.b32.xlu0 %v3063, 96
  %v3142 = vpop.permute.xlu0 %3141
  %3143 = vrot.lane.b32.xlu0 %v3065, 96
  %v3144 = vpop.permute.xlu0 %3143
  %3145 = vrot.lane.b32.xlu0 %v3064, 96
  %v3146 = vpop.permute.xlu0 %3145
  %3147 = vrot.lane.b32.xlu0 %v3066, 96
  %v3148 = vpop.permute.xlu0 %3147
  %3149 = vrot.lane.b32.xlu0 %v3068, 96
  %v3150 = vpop.permute.xlu0 %3149
  %3151 = vrot.lane.b32.xlu0 %v3067, 96
  %v3152 = vpop.permute.xlu0 %3151
  %3153 = vrot.lane.b32.xlu0 %v3069, 96
  %v3154 = vpop.permute.xlu0 %3153
  %3155 = vrot.lane.b32.xlu0 %v3071, 96
  %v3156 = vpop.permute.xlu0 %3155
  %3157 = vrot.lane.b32.xlu0 %v3070, 96
  %v3158 = vpop.permute.xlu0 %3157
  %3159 = vrot.lane.b32.xlu0 %v3072, 96
  %v3160 = vpop.permute.xlu0 %3159
  %3161 = vrot.lane.b32.xlu0 %v3074, 96
  %v3162 = vpop.permute.xlu0 %3161
  %3163 = vrot.lane.b32.xlu0 %v3073, 96
  %v3164 = vpop.permute.xlu0 %3163
  %3165 = vrot.lane.b32.xlu0 %v3075, 96
  %v3166 = vpop.permute.xlu0 %3165
  %3167 = vrot.lane.b32.xlu0 %v3077, 96
  %v3168 = vpop.permute.xlu0 %3167
  %3169 = vrot.lane.b32.xlu0 %v3076, 96
  %v3170 = vpop.permute.xlu0 %3169
  %3171 = vrot.lane.b32.xlu0 %v3078, 96
  %v3172 = vpop.permute.xlu0 %3171
  %3173 = vrot.lane.b32.xlu0 %v3080, 96
  %v3174 = vpop.permute.xlu0 %3173
  %3175 = vrot.lane.b32.xlu0 %v3079, 96
  %v3176 = vpop.permute.xlu0 %3175
  %v3225 = vsel %vm200, 0.0, %v3082
  %v3226 = vsel %vm200, 0.0, %v3088
  %v3227 = vsel %vm200, 0.0, %v3094
  %v3228 = vsel %vm200, 0.0, %v3100
  %v3229 = vsel %vm200, 0.0, %v3106
  %v3230 = vsel %vm200, 0.0, %v3112
  %v3231 = vsel %vm200, 0.0, %v3118
  %v3232 = vsel %vm200, 0.0, %v3124
  %v3233 = vsel %vm200, 0.0, %v3130
  %v3234 = vsel %vm200, 0.0, %v3136
  %v3235 = vsel %vm200, 0.0, %v3142
  %v3236 = vsel %vm200, 0.0, %v3148
  %v3237 = vsel %vm200, 0.0, %v3154
  %v3238 = vsel %vm200, 0.0, %v3160
  %v3239 = vsel %vm200, 0.0, %v3166
  %v3240 = vsel %vm200, 0.0, %v3172
  %v3241 = vsel %vm200, %v3086, 0.0
  %v3242 = vsel %vm200, %v3092, 0.0
  %v3243 = vsel %vm200, %v3098, 0.0
  %v3244 = vsel %vm200, %v3104, 0.0
  %v3245 = vsel %vm200, %v3110, 0.0
  %v3246 = vsel %vm200, %v3116, 0.0
  %v3247 = vsel %vm200, %v3122, 0.0
  %v3248 = vsel %vm200, %v3128, 0.0
  %v3249 = vsel %vm200, %v3134, 0.0
  %v3250 = vsel %vm200, %v3140, 0.0
  %v3251 = vsel %vm200, %v3146, 0.0
  %v3252 = vsel %vm200, %v3152, 0.0
  %v3253 = vsel %vm200, %v3158, 0.0
  %v3254 = vsel %vm200, %v3164, 0.0
  %v3255 = vsel %vm200, %v3170, 0.0
  %v3256 = vsel %vm200, %v3176, 0.0
  %v3289 = vrot.slane %v3225, 1
  %v3290 = vrot.slane %v3084, 1
  %v3291 = vsel %vm361, %v3289, %v3290
  %v3292 = vrot.slane %v3241, 1
  %v3293 = vsel %vm361, %v3290, %v3292
  %v3294 = vrot.slane %v3226, 1
  %v3295 = vrot.slane %v3090, 1
  %v3296 = vsel %vm361, %v3294, %v3295
  %v3297 = vrot.slane %v3242, 1
  %v3298 = vsel %vm361, %v3295, %v3297
  %v3299 = vrot.slane %v3227, 1
  %v3300 = vrot.slane %v3096, 1
  %v3301 = vsel %vm361, %v3299, %v3300
  %v3302 = vrot.slane %v3243, 1
  %v3303 = vsel %vm361, %v3300, %v3302
  %v3304 = vrot.slane %v3228, 1
  %v3305 = vrot.slane %v3102, 1
  %v3306 = vsel %vm361, %v3304, %v3305
  %v3307 = vrot.slane %v3244, 1
  %v3308 = vsel %vm361, %v3305, %v3307
  %v3309 = vrot.slane %v3229, 1
  %v3310 = vrot.slane %v3108, 1
  %v3311 = vsel %vm361, %v3309, %v3310
  %v3312 = vrot.slane %v3245, 1
  %v3313 = vsel %vm361, %v3310, %v3312
  %v3314 = vrot.slane %v3230, 1
  %v3315 = vrot.slane %v3114, 1
  %v3316 = vsel %vm361, %v3314, %v3315
  %v3317 = vrot.slane %v3246, 1
  %v3318 = vsel %vm361, %v3315, %v3317
  %v3319 = vrot.slane %v3231, 1
  %v3320 = vrot.slane %v3120, 1
  %v3321 = vsel %vm361, %v3319, %v3320
  %v3322 = vrot.slane %v3247, 1
  %v3323 = vsel %vm361, %v3320, %v3322
  %v3324 = vrot.slane %v3232, 1
  %v3325 = vrot.slane %v3126, 1
  %v3326 = vsel %vm361, %v3324, %v3325
  %v3327 = vrot.slane %v3248, 1
  %v3328 = vsel %vm361, %v3325, %v3327
  %v3329 = vrot.slane %v3233, 1
  %v3330 = vrot.slane %v3132, 1
  %v3331 = vsel %vm361, %v3329, %v3330
  %v3332 = vrot.slane %v3249, 1
  %v3333 = vsel %vm361, %v3330, %v3332
  %v3334 = vrot.slane %v3234, 1
  %v3335 = vrot.slane %v3138, 1
  %v3336 = vsel %vm361, %v3334, %v3335
  %v3337 = vrot.slane %v3250, 1
  %v3338 = vsel %vm361, %v3335, %v3337
  %v3339 = vrot.slane %v3235, 1
  %v3340 = vrot.slane %v3144, 1
  %v3341 = vsel %vm361, %v3339, %v3340
  %v3342 = vrot.slane %v3251, 1
  %v3343 = vsel %vm361, %v3340, %v3342
  %v3344 = vrot.slane %v3236, 1
  %v3345 = vrot.slane %v3150, 1
  %v3346 = vsel %vm361, %v3344, %v3345
  %v3347 = vrot.slane %v3252, 1
  %v3348 = vsel %vm361, %v3345, %v3347
  %v3349 = vrot.slane %v3237, 1
  %v3350 = vrot.slane %v3156, 1
  %v3351 = vsel %vm361, %v3349, %v3350
  %v3352 = vrot.slane %v3253, 1
  %v3353 = vsel %vm361, %v3350, %v3352
  %v3354 = vrot.slane %v3238, 1
  %v3355 = vrot.slane %v3162, 1
  %v3356 = vsel %vm361, %v3354, %v3355
  %v3357 = vrot.slane %v3254, 1
  %v3358 = vsel %vm361, %v3355, %v3357
  %v3359 = vrot.slane %v3239, 1
  %v3360 = vrot.slane %v3168, 1
  %v3361 = vsel %vm361, %v3359, %v3360
  %v3362 = vrot.slane %v3255, 1
  %v3363 = vsel %vm361, %v3360, %v3362
  %v3364 = vrot.slane %v3240, 1
  %v3365 = vrot.slane %v3174, 1
  %v3366 = vsel %vm361, %v3364, %v3365
  %v3367 = vrot.slane %v3256, 1
  %v3368 = vsel %vm361, %v3365, %v3367
  %3369 = vrot.lane.b32.xlu0 %v3291, 32
  %v3370 = vpop.permute.xlu0 %3369
  %3371 = vrot.lane.b32.xlu0 %v3293, 32
  %v3372 = vpop.permute.xlu0 %3371
  %3373 = vrot.lane.b32.xlu0 %v3296, 32
  %v3374 = vpop.permute.xlu0 %3373
  %3375 = vrot.lane.b32.xlu0 %v3298, 32
  %v3376 = vpop.permute.xlu0 %3375
  %3377 = vrot.lane.b32.xlu0 %v3301, 32
  %v3378 = vpop.permute.xlu0 %3377
  %3379 = vrot.lane.b32.xlu0 %v3303, 32
  %v3380 = vpop.permute.xlu0 %3379
  %3381 = vrot.lane.b32.xlu0 %v3306, 32
  %v3382 = vpop.permute.xlu0 %3381
  %3383 = vrot.lane.b32.xlu0 %v3308, 32
  %v3384 = vpop.permute.xlu0 %3383
  %3385 = vrot.lane.b32.xlu0 %v3311, 32
  %v3386 = vpop.permute.xlu0 %3385
  %3387 = vrot.lane.b32.xlu0 %v3313, 32
  %v3388 = vpop.permute.xlu0 %3387
  %3389 = vrot.lane.b32.xlu0 %v3316, 32
  %v3390 = vpop.permute.xlu0 %3389
  %3391 = vrot.lane.b32.xlu0 %v3318, 32
  %v3392 = vpop.permute.xlu0 %3391
  %3393 = vrot.lane.b32.xlu0 %v3321, 32
  %v3394 = vpop.permute.xlu0 %3393
  %3395 = vrot.lane.b32.xlu0 %v3323, 32
  %v3396 = vpop.permute.xlu0 %3395
  %3397 = vrot.lane.b32.xlu0 %v3326, 32
  %v3398 = vpop.permute.xlu0 %3397
  %3399 = vrot.lane.b32.xlu0 %v3328, 32
  %v3400 = vpop.permute.xlu0 %3399
  %3401 = vrot.lane.b32.xlu0 %v3331, 32
  %v3402 = vpop.permute.xlu0 %3401
  %3403 = vrot.lane.b32.xlu0 %v3333, 32
  %v3404 = vpop.permute.xlu0 %3403
  %3405 = vrot.lane.b32.xlu0 %v3336, 32
  %v3406 = vpop.permute.xlu0 %3405
  %3407 = vrot.lane.b32.xlu0 %v3338, 32
  %v3408 = vpop.permute.xlu0 %3407
  %3409 = vrot.lane.b32.xlu0 %v3341, 32
  %v3410 = vpop.permute.xlu0 %3409
  %3411 = vrot.lane.b32.xlu0 %v3343, 32
  %v3412 = vpop.permute.xlu0 %3411
  %3413 = vrot.lane.b32.xlu0 %v3346, 32
  %v3414 = vpop.permute.xlu0 %3413
  %3415 = vrot.lane.b32.xlu0 %v3348, 32
  %v3416 = vpop.permute.xlu0 %3415
  %3417 = vrot.lane.b32.xlu0 %v3351, 32
  %v3418 = vpop.permute.xlu0 %3417
  %3419 = vrot.lane.b32.xlu0 %v3353, 32
  %v3420 = vpop.permute.xlu0 %3419
  %3421 = vrot.lane.b32.xlu0 %v3356, 32
  %v3422 = vpop.permute.xlu0 %3421
  %3423 = vrot.lane.b32.xlu0 %v3358, 32
  %v3424 = vpop.permute.xlu0 %3423
  %3425 = vrot.lane.b32.xlu0 %v3361, 32
  %v3426 = vpop.permute.xlu0 %3425
  %3427 = vrot.lane.b32.xlu0 %v3363, 32
  %v3428 = vpop.permute.xlu0 %3427
  %3429 = vrot.lane.b32.xlu0 %v3366, 32
  %v3430 = vpop.permute.xlu0 %3429
  %3431 = vrot.lane.b32.xlu0 %v3368, 32
  %v3432 = vpop.permute.xlu0 %3431
  %v3465 = vrot.slane %v3225, 2
  %v3466 = vrot.slane %v3084, 2
  %v3467 = vsel %vm538, %v3465, %v3466
  %v3468 = vrot.slane %v3241, 2
  %v3469 = vsel %vm538, %v3466, %v3468
  %v3470 = vrot.slane %v3226, 2
  %v3471 = vrot.slane %v3090, 2
  %v3472 = vsel %vm538, %v3470, %v3471
  %v3473 = vrot.slane %v3242, 2
  %v3474 = vsel %vm538, %v3471, %v3473
  %v3475 = vrot.slane %v3227, 2
  %v3476 = vrot.slane %v3096, 2
  %v3477 = vsel %vm538, %v3475, %v3476
  %v3478 = vrot.slane %v3243, 2
  %v3479 = vsel %vm538, %v3476, %v3478
  %v3480 = vrot.slane %v3228, 2
  %v3481 = vrot.slane %v3102, 2
  %v3482 = vsel %vm538, %v3480, %v3481
  %v3483 = vrot.slane %v3244, 2
  %v3484 = vsel %vm538, %v3481, %v3483
  %v3485 = vrot.slane %v3229, 2
  %v3486 = vrot.slane %v3108, 2
  %v3487 = vsel %vm538, %v3485, %v3486
  %v3488 = vrot.slane %v3245, 2
  %v3489 = vsel %vm538, %v3486, %v3488
  %v3490 = vrot.slane %v3230, 2
  %v3491 = vrot.slane %v3114, 2
  %v3492 = vsel %vm538, %v3490, %v3491
  %v3493 = vrot.slane %v3246, 2
  %v3494 = vsel %vm538, %v3491, %v3493
  %v3495 = vrot.slane %v3231, 2
  %v3496 = vrot.slane %v3120, 2
  %v3497 = vsel %vm538, %v3495, %v3496
  %v3498 = vrot.slane %v3247, 2
  %v3499 = vsel %vm538, %v3496, %v3498
  %v3500 = vrot.slane %v3232, 2
  %v3501 = vrot.slane %v3126, 2
  %v3502 = vsel %vm538, %v3500, %v3501
  %v3503 = vrot.slane %v3248, 2
  %v3504 = vsel %vm538, %v3501, %v3503
  %v3505 = vrot.slane %v3233, 2
  %v3506 = vrot.slane %v3132, 2
  %v3507 = vsel %vm538, %v3505, %v3506
  %v3508 = vrot.slane %v3249, 2
  %v3509 = vsel %vm538, %v3506, %v3508
  %v3510 = vrot.slane %v3234, 2
  %v3511 = vrot.slane %v3138, 2
  %v3512 = vsel %vm538, %v3510, %v3511
  %v3513 = vrot.slane %v3250, 2
  %v3514 = vsel %vm538, %v3511, %v3513
  %v3515 = vrot.slane %v3235, 2
  %v3516 = vrot.slane %v3144, 2
  %v3517 = vsel %vm538, %v3515, %v3516
  %v3518 = vrot.slane %v3251, 2
  %v3519 = vsel %vm538, %v3516, %v3518
  %v3520 = vrot.slane %v3236, 2
  %v3521 = vrot.slane %v3150, 2
  %v3522 = vsel %vm538, %v3520, %v3521
  %v3523 = vrot.slane %v3252, 2
  %v3524 = vsel %vm538, %v3521, %v3523
  %v3525 = vrot.slane %v3237, 2
  %v3526 = vrot.slane %v3156, 2
  %v3527 = vsel %vm538, %v3525, %v3526
  %v3528 = vrot.slane %v3253, 2
  %v3529 = vsel %vm538, %v3526, %v3528
  %v3530 = vrot.slane %v3238, 2
  %v3531 = vrot.slane %v3162, 2
  %v3532 = vsel %vm538, %v3530, %v3531
  %v3533 = vrot.slane %v3254, 2
  %v3534 = vsel %vm538, %v3531, %v3533
  %v3535 = vrot.slane %v3239, 2
  %v3536 = vrot.slane %v3168, 2
  %v3537 = vsel %vm538, %v3535, %v3536
  %v3538 = vrot.slane %v3255, 2
  %v3539 = vsel %vm538, %v3536, %v3538
  %v3540 = vrot.slane %v3240, 2
  %v3541 = vrot.slane %v3174, 2
  %v3542 = vsel %vm538, %v3540, %v3541
  %v3543 = vrot.slane %v3256, 2
  %v3544 = vsel %vm538, %v3541, %v3543
  %3545 = vrot.lane.b32.xlu0 %v3467, 64
  %v3546 = vpop.permute.xlu0 %3545
  %3547 = vrot.lane.b32.xlu0 %v3469, 64
  %v3548 = vpop.permute.xlu0 %3547
  %3549 = vrot.lane.b32.xlu0 %v3472, 64
  %v3550 = vpop.permute.xlu0 %3549
  %3551 = vrot.lane.b32.xlu0 %v3474, 64
  %v3552 = vpop.permute.xlu0 %3551
  %3553 = vrot.lane.b32.xlu0 %v3477, 64
  %v3554 = vpop.permute.xlu0 %3553
  %3555 = vrot.lane.b32.xlu0 %v3479, 64
  %v3556 = vpop.permute.xlu0 %3555
  %3557 = vrot.lane.b32.xlu0 %v3482, 64
  %v3558 = vpop.permute.xlu0 %3557
  %3559 = vrot.lane.b32.xlu0 %v3484, 64
  %v3560 = vpop.permute.xlu0 %3559
  %3561 = vrot.lane.b32.xlu0 %v3487, 64
  %v3562 = vpop.permute.xlu0 %3561
  %3563 = vrot.lane.b32.xlu0 %v3489, 64
  %v3564 = vpop.permute.xlu0 %3563
  %3565 = vrot.lane.b32.xlu0 %v3492, 64
  %v3566 = vpop.permute.xlu0 %3565
  %3567 = vrot.lane.b32.xlu0 %v3494, 64
  %v3568 = vpop.permute.xlu0 %3567
  %3569 = vrot.lane.b32.xlu0 %v3497, 64
  %v3570 = vpop.permute.xlu0 %3569
  %3571 = vrot.lane.b32.xlu0 %v3499, 64
  %v3572 = vpop.permute.xlu0 %3571
  %3573 = vrot.lane.b32.xlu0 %v3502, 64
  %v3574 = vpop.permute.xlu0 %3573
  %3575 = vrot.lane.b32.xlu0 %v3504, 64
  %v3576 = vpop.permute.xlu0 %3575
  %3577 = vrot.lane.b32.xlu0 %v3507, 64
  %v3578 = vpop.permute.xlu0 %3577
  %3579 = vrot.lane.b32.xlu0 %v3509, 64
  %v3580 = vpop.permute.xlu0 %3579
  %3581 = vrot.lane.b32.xlu0 %v3512, 64
  %v3582 = vpop.permute.xlu0 %3581
  %3583 = vrot.lane.b32.xlu0 %v3514, 64
  %v3584 = vpop.permute.xlu0 %3583
  %3585 = vrot.lane.b32.xlu0 %v3517, 64
  %v3586 = vpop.permute.xlu0 %3585
  %3587 = vrot.lane.b32.xlu0 %v3519, 64
  %v3588 = vpop.permute.xlu0 %3587
  %3589 = vrot.lane.b32.xlu0 %v3522, 64
  %v3590 = vpop.permute.xlu0 %3589
  %3591 = vrot.lane.b32.xlu0 %v3524, 64
  %v3592 = vpop.permute.xlu0 %3591
  %3593 = vrot.lane.b32.xlu0 %v3527, 64
  %v3594 = vpop.permute.xlu0 %3593
  %3595 = vrot.lane.b32.xlu0 %v3529, 64
  %v3596 = vpop.permute.xlu0 %3595
  %3597 = vrot.lane.b32.xlu0 %v3532, 64
  %v3598 = vpop.permute.xlu0 %3597
  %3599 = vrot.lane.b32.xlu0 %v3534, 64
  %v3600 = vpop.permute.xlu0 %3599
  %3601 = vrot.lane.b32.xlu0 %v3537, 64
  %v3602 = vpop.permute.xlu0 %3601
  %3603 = vrot.lane.b32.xlu0 %v3539, 64
  %v3604 = vpop.permute.xlu0 %3603
  %3605 = vrot.lane.b32.xlu0 %v3542, 64
  %v3606 = vpop.permute.xlu0 %3605
  %3607 = vrot.lane.b32.xlu0 %v3544, 64
  %v3608 = vpop.permute.xlu0 %3607
  %v3641 = vrot.slane %v3225, 3
  %v3642 = vrot.slane %v3084, 3
  %v3643 = vsel %vm651, %v3641, %v3642
  %v3644 = vrot.slane %v3241, 3
  %v3645 = vsel %vm651, %v3642, %v3644
  %v3646 = vrot.slane %v3226, 3
  %v3647 = vrot.slane %v3090, 3
  %v3648 = vsel %vm651, %v3646, %v3647
  %v3649 = vrot.slane %v3242, 3
  %v3650 = vsel %vm651, %v3647, %v3649
  %v3651 = vrot.slane %v3227, 3
  %v3652 = vrot.slane %v3096, 3
  %v3653 = vsel %vm651, %v3651, %v3652
  %v3654 = vrot.slane %v3243, 3
  %v3655 = vsel %vm651, %v3652, %v3654
  %v3656 = vrot.slane %v3228, 3
  %v3657 = vrot.slane %v3102, 3
  %v3658 = vsel %vm651, %v3656, %v3657
  %v3659 = vrot.slane %v3244, 3
  %v3660 = vsel %vm651, %v3657, %v3659
  %v3661 = vrot.slane %v3229, 3
  %v3662 = vrot.slane %v3108, 3
  %v3663 = vsel %vm651, %v3661, %v3662
  %v3664 = vrot.slane %v3245, 3
  %v3665 = vsel %vm651, %v3662, %v3664
  %v3666 = vrot.slane %v3230, 3
  %v3667 = vrot.slane %v3114, 3
  %v3668 = vsel %vm651, %v3666, %v3667
  %v3669 = vrot.slane %v3246, 3
  %v3670 = vsel %vm651, %v3667, %v3669
  %v3671 = vrot.slane %v3231, 3
  %v3672 = vrot.slane %v3120, 3
  %v3673 = vsel %vm651, %v3671, %v3672
  %v3674 = vrot.slane %v3247, 3
  %v3675 = vsel %vm651, %v3672, %v3674
  %v3676 = vrot.slane %v3232, 3
  %v3677 = vrot.slane %v3126, 3
  %v3678 = vsel %vm651, %v3676, %v3677
  %v3679 = vrot.slane %v3248, 3
  %v3680 = vsel %vm651, %v3677, %v3679
  %v3681 = vrot.slane %v3233, 3
  %v3682 = vrot.slane %v3132, 3
  %v3683 = vsel %vm651, %v3681, %v3682
  %v3684 = vrot.slane %v3249, 3
  %v3685 = vsel %vm651, %v3682, %v3684
  %v3686 = vrot.slane %v3234, 3
  %v3687 = vrot.slane %v3138, 3
  %v3688 = vsel %vm651, %v3686, %v3687
  %v3689 = vrot.slane %v3250, 3
  %v3690 = vsel %vm651, %v3687, %v3689
  %v3691 = vrot.slane %v3235, 3
  %v3692 = vrot.slane %v3144, 3
  %v3693 = vsel %vm651, %v3691, %v3692
  %v3694 = vrot.slane %v3251, 3
  %v3695 = vsel %vm651, %v3692, %v3694
  %v3696 = vrot.slane %v3236, 3
  %v3697 = vrot.slane %v3150, 3
  %v3698 = vsel %vm651, %v3696, %v3697
  %v3699 = vrot.slane %v3252, 3
  %v3700 = vsel %vm651, %v3697, %v3699
  %v3701 = vrot.slane %v3237, 3
  %v3702 = vrot.slane %v3156, 3
  %v3703 = vsel %vm651, %v3701, %v3702
  %v3704 = vrot.slane %v3253, 3
  %v3705 = vsel %vm651, %v3702, %v3704
  %v3706 = vrot.slane %v3238, 3
  %v3707 = vrot.slane %v3162, 3
  %v3708 = vsel %vm651, %v3706, %v3707
  %v3709 = vrot.slane %v3254, 3
  %v3710 = vsel %vm651, %v3707, %v3709
  %v3711 = vrot.slane %v3239, 3
  %v3712 = vrot.slane %v3168, 3
  %v3713 = vsel %vm651, %v3711, %v3712
  %v3714 = vrot.slane %v3255, 3
  %v3715 = vsel %vm651, %v3712, %v3714
  %v3716 = vrot.slane %v3240, 3
  %v3717 = vrot.slane %v3174, 3
  %v3718 = vsel %vm651, %v3716, %v3717
  %v3719 = vrot.slane %v3256, 3
  %v3720 = vsel %vm651, %v3717, %v3719
  %3721 = vrot.lane.b32.xlu0 %v3643, 96
  %v3722 = vpop.permute.xlu0 %3721
  %3723 = vrot.lane.b32.xlu0 %v3645, 96
  %v3724 = vpop.permute.xlu0 %3723
  %3725 = vrot.lane.b32.xlu0 %v3648, 96
  %v3726 = vpop.permute.xlu0 %3725
  %3727 = vrot.lane.b32.xlu0 %v3650, 96
  %v3728 = vpop.permute.xlu0 %3727
  %3729 = vrot.lane.b32.xlu0 %v3653, 96
  %v3730 = vpop.permute.xlu0 %3729
  %3731 = vrot.lane.b32.xlu0 %v3655, 96
  %v3732 = vpop.permute.xlu0 %3731
  %3733 = vrot.lane.b32.xlu0 %v3658, 96
  %v3734 = vpop.permute.xlu0 %3733
  %3735 = vrot.lane.b32.xlu0 %v3660, 96
  %v3736 = vpop.permute.xlu0 %3735
  %3737 = vrot.lane.b32.xlu0 %v3663, 96
  %v3738 = vpop.permute.xlu0 %3737
  %3739 = vrot.lane.b32.xlu0 %v3665, 96
  %v3740 = vpop.permute.xlu0 %3739
  %3741 = vrot.lane.b32.xlu0 %v3668, 96
  %v3742 = vpop.permute.xlu0 %3741
  %3743 = vrot.lane.b32.xlu0 %v3670, 96
  %v3744 = vpop.permute.xlu0 %3743
  %3745 = vrot.lane.b32.xlu0 %v3673, 96
  %v3746 = vpop.permute.xlu0 %3745
  %3747 = vrot.lane.b32.xlu0 %v3675, 96
  %v3748 = vpop.permute.xlu0 %3747
  %3749 = vrot.lane.b32.xlu0 %v3678, 96
  %v3750 = vpop.permute.xlu0 %3749
  %3751 = vrot.lane.b32.xlu0 %v3680, 96
  %v3752 = vpop.permute.xlu0 %3751
  %3753 = vrot.lane.b32.xlu0 %v3683, 96
  %v3754 = vpop.permute.xlu0 %3753
  %3755 = vrot.lane.b32.xlu0 %v3685, 96
  %v3756 = vpop.permute.xlu0 %3755
  %3757 = vrot.lane.b32.xlu0 %v3688, 96
  %v3758 = vpop.permute.xlu0 %3757
  %3759 = vrot.lane.b32.xlu0 %v3690, 96
  %v3760 = vpop.permute.xlu0 %3759
  %3761 = vrot.lane.b32.xlu0 %v3693, 96
  %v3762 = vpop.permute.xlu0 %3761
  %3763 = vrot.lane.b32.xlu0 %v3695, 96
  %v3764 = vpop.permute.xlu0 %3763
  %3765 = vrot.lane.b32.xlu0 %v3698, 96
  %v3766 = vpop.permute.xlu0 %3765
  %3767 = vrot.lane.b32.xlu0 %v3700, 96
  %v3768 = vpop.permute.xlu0 %3767
  %3769 = vrot.lane.b32.xlu0 %v3703, 96
  %v3770 = vpop.permute.xlu0 %3769
  %3771 = vrot.lane.b32.xlu0 %v3705, 96
  %v3772 = vpop.permute.xlu0 %3771
  %3773 = vrot.lane.b32.xlu0 %v3708, 96
  %v3774 = vpop.permute.xlu0 %3773
  %3775 = vrot.lane.b32.xlu0 %v3710, 96
  %v3776 = vpop.permute.xlu0 %3775
  %3777 = vrot.lane.b32.xlu0 %v3713, 96
  %v3778 = vpop.permute.xlu0 %3777
  %3779 = vrot.lane.b32.xlu0 %v3715, 96
  %v3780 = vpop.permute.xlu0 %3779
  %3781 = vrot.lane.b32.xlu0 %v3718, 96
  %v3782 = vpop.permute.xlu0 %3781
  %3783 = vrot.lane.b32.xlu0 %v3720, 96
  %v3784 = vpop.permute.xlu0 %3783
  %v3817 = vrot.slane %v3225, 4
  %v3818 = vrot.slane %v3084, 4
  %v3819 = vsel %vm828, %v3817, %v3818
  %v3820 = vrot.slane %v3241, 4
  %v3821 = vsel %vm828, %v3818, %v3820
  %v3822 = vrot.slane %v3226, 4
  %v3823 = vrot.slane %v3090, 4
  %v3824 = vsel %vm828, %v3822, %v3823
  %v3825 = vrot.slane %v3242, 4
  %v3826 = vsel %vm828, %v3823, %v3825
  %v3827 = vrot.slane %v3227, 4
  %v3828 = vrot.slane %v3096, 4
  %v3829 = vsel %vm828, %v3827, %v3828
  %v3830 = vrot.slane %v3243, 4
  %v3831 = vsel %vm828, %v3828, %v3830
  %v3832 = vrot.slane %v3228, 4
  %v3833 = vrot.slane %v3102, 4
  %v3834 = vsel %vm828, %v3832, %v3833
  %v3835 = vrot.slane %v3244, 4
  %v3836 = vsel %vm828, %v3833, %v3835
  %v3837 = vrot.slane %v3229, 4
  %v3838 = vrot.slane %v3108, 4
  %v3839 = vsel %vm828, %v3837, %v3838
  %v3840 = vrot.slane %v3245, 4
  %v3841 = vsel %vm828, %v3838, %v3840
  %v3842 = vrot.slane %v3230, 4
  %v3843 = vrot.slane %v3114, 4
  %v3844 = vsel %vm828, %v3842, %v3843
  %v3845 = vrot.slane %v3246, 4
  %v3846 = vsel %vm828, %v3843, %v3845
  %v3847 = vrot.slane %v3231, 4
  %v3848 = vrot.slane %v3120, 4
  %v3849 = vsel %vm828, %v3847, %v3848
  %v3850 = vrot.slane %v3247, 4
  %v3851 = vsel %vm828, %v3848, %v3850
  %v3852 = vrot.slane %v3232, 4
  %v3853 = vrot.slane %v3126, 4
  %v3854 = vsel %vm828, %v3852, %v3853
  %v3855 = vrot.slane %v3248, 4
  %v3856 = vsel %vm828, %v3853, %v3855
  %v3857 = vrot.slane %v3233, 4
  %v3858 = vrot.slane %v3132, 4
  %v3859 = vsel %vm828, %v3857, %v3858
  %v3860 = vrot.slane %v3249, 4
  %v3861 = vsel %vm828, %v3858, %v3860
  %v3862 = vrot.slane %v3234, 4
  %v3863 = vrot.slane %v3138, 4
  %v3864 = vsel %vm828, %v3862, %v3863
  %v3865 = vrot.slane %v3250, 4
  %v3866 = vsel %vm828, %v3863, %v3865
  %v3867 = vrot.slane %v3235, 4
  %v3868 = vrot.slane %v3144, 4
  %v3869 = vsel %vm828, %v3867, %v3868
  %v3870 = vrot.slane %v3251, 4
  %v3871 = vsel %vm828, %v3868, %v3870
  %v3872 = vrot.slane %v3236, 4
  %v3873 = vrot.slane %v3150, 4
  %v3874 = vsel %vm828, %v3872, %v3873
  %v3875 = vrot.slane %v3252, 4
  %v3876 = vsel %vm828, %v3873, %v3875
  %v3877 = vrot.slane %v3237, 4
  %v3878 = vrot.slane %v3156, 4
  %v3879 = vsel %vm828, %v3877, %v3878
  %v3880 = vrot.slane %v3253, 4
  %v3881 = vsel %vm828, %v3878, %v3880
  %v3882 = vrot.slane %v3238, 4
  %v3883 = vrot.slane %v3162, 4
  %v3884 = vsel %vm828, %v3882, %v3883
  %v3885 = vrot.slane %v3254, 4
  %v3886 = vsel %vm828, %v3883, %v3885
  %v3887 = vrot.slane %v3239, 4
  %v3888 = vrot.slane %v3168, 4
  %v3889 = vsel %vm828, %v3887, %v3888
  %v3890 = vrot.slane %v3255, 4
  %v3891 = vsel %vm828, %v3888, %v3890
  %v3892 = vrot.slane %v3240, 4
  %v3893 = vrot.slane %v3174, 4
  %v3894 = vsel %vm828, %v3892, %v3893
  %v3895 = vrot.slane %v3256, 4
  %v3896 = vsel %vm828, %v3893, %v3895
  %v3897 = vsel %vm1774, %v3225, %v3370
  %v3898 = vsel %vm1774, %v3084, %v3372
  %v3899 = vsel %vm1774, %v3226, %v3374
  %v3900 = vsel %vm1774, %v3090, %v3376
  %v3901 = vsel %vm1774, %v3227, %v3378
  %v3902 = vsel %vm1774, %v3096, %v3380
  %v3903 = vsel %vm1774, %v3228, %v3382
  %v3904 = vsel %vm1774, %v3102, %v3384
  %v3905 = vsel %vm1774, %v3229, %v3386
  %v3906 = vsel %vm1774, %v3108, %v3388
  %v3907 = vsel %vm1774, %v3230, %v3390
  %v3908 = vsel %vm1774, %v3114, %v3392
  %v3909 = vsel %vm1774, %v3231, %v3394
  %v3910 = vsel %vm1774, %v3120, %v3396
  %v3911 = vsel %vm1774, %v3232, %v3398
  %v3912 = vsel %vm1774, %v3126, %v3400
  %v3913 = vsel %vm1774, %v3233, %v3402
  %v3914 = vsel %vm1774, %v3132, %v3404
  %v3915 = vsel %vm1774, %v3234, %v3406
  %v3916 = vsel %vm1774, %v3138, %v3408
  %v3917 = vsel %vm1774, %v3235, %v3410
  %v3918 = vsel %vm1774, %v3144, %v3412
  %v3919 = vsel %vm1774, %v3236, %v3414
  %v3920 = vsel %vm1774, %v3150, %v3416
  %v3921 = vsel %vm1774, %v3237, %v3418
  %v3922 = vsel %vm1774, %v3156, %v3420
  %v3923 = vsel %vm1774, %v3238, %v3422
  %v3924 = vsel %vm1774, %v3162, %v3424
  %v3925 = vsel %vm1774, %v3239, %v3426
  %v3926 = vsel %vm1774, %v3168, %v3428
  %v3927 = vsel %vm1774, %v3240, %v3430
  %v3928 = vsel %vm1774, %v3174, %v3432
  %v3929 = vsel %vm909, %v3897, %v3546
  %v3930 = vsel %vm909, %v3898, %v3548
  %v3931 = vsel %vm909, %v3899, %v3550
  %v3932 = vsel %vm909, %v3900, %v3552
  %v3933 = vsel %vm909, %v3901, %v3554
  %v3934 = vsel %vm909, %v3902, %v3556
  %v3935 = vsel %vm909, %v3903, %v3558
  %v3936 = vsel %vm909, %v3904, %v3560
  %v3937 = vsel %vm909, %v3905, %v3562
  %v3938 = vsel %vm909, %v3906, %v3564
  %v3939 = vsel %vm909, %v3907, %v3566
  %v3940 = vsel %vm909, %v3908, %v3568
  %v3941 = vsel %vm909, %v3909, %v3570
  %v3942 = vsel %vm909, %v3910, %v3572
  %v3943 = vsel %vm909, %v3911, %v3574
  %v3944 = vsel %vm909, %v3912, %v3576
  %v3945 = vsel %vm909, %v3913, %v3578
  %v3946 = vsel %vm909, %v3914, %v3580
  %v3947 = vsel %vm909, %v3915, %v3582
  %v3948 = vsel %vm909, %v3916, %v3584
  %v3949 = vsel %vm909, %v3917, %v3586
  %v3950 = vsel %vm909, %v3918, %v3588
  %v3951 = vsel %vm909, %v3919, %v3590
  %v3952 = vsel %vm909, %v3920, %v3592
  %v3953 = vsel %vm909, %v3921, %v3594
  %v3954 = vsel %vm909, %v3922, %v3596
  %v3955 = vsel %vm909, %v3923, %v3598
  %v3956 = vsel %vm909, %v3924, %v3600
  %v3957 = vsel %vm909, %v3925, %v3602
  %v3958 = vsel %vm909, %v3926, %v3604
  %v3959 = vsel %vm909, %v3927, %v3606
  %v3960 = vsel %vm909, %v3928, %v3608
  %v3961 = vsel %vm1839, %v3929, %v3722
  %v3962 = vsel %vm1839, %v3930, %v3724
  %v3963 = vsel %vm1839, %v3931, %v3726
  %v3964 = vsel %vm1839, %v3932, %v3728
  %v3965 = vsel %vm1839, %v3933, %v3730
  %v3966 = vsel %vm1839, %v3934, %v3732
  %v3967 = vsel %vm1839, %v3935, %v3734
  %v3968 = vsel %vm1839, %v3936, %v3736
  %v3969 = vsel %vm1839, %v3937, %v3738
  %v3970 = vsel %vm1839, %v3938, %v3740
  %v3971 = vsel %vm1839, %v3939, %v3742
  %v3972 = vsel %vm1839, %v3940, %v3744
  %v3973 = vsel %vm1839, %v3941, %v3746
  %v3974 = vsel %vm1839, %v3942, %v3748
  %v3975 = vsel %vm1839, %v3943, %v3750
  %v3976 = vsel %vm1839, %v3944, %v3752
  %v3977 = vsel %vm1839, %v3945, %v3754
  %v3978 = vsel %vm1839, %v3946, %v3756
  %v3979 = vsel %vm1839, %v3947, %v3758
  %v3980 = vsel %vm1839, %v3948, %v3760
  %v3981 = vsel %vm1839, %v3949, %v3762
  %v3982 = vsel %vm1839, %v3950, %v3764
  %v3983 = vsel %vm1839, %v3951, %v3766
  %v3984 = vsel %vm1839, %v3952, %v3768
  %v3985 = vsel %vm1839, %v3953, %v3770
  %v3986 = vsel %vm1839, %v3954, %v3772
  %v3987 = vsel %vm1839, %v3955, %v3774
  %v3988 = vsel %vm1839, %v3956, %v3776
  %v3989 = vsel %vm1839, %v3957, %v3778
  %v3990 = vsel %vm1839, %v3958, %v3780
  %v3991 = vsel %vm1839, %v3959, %v3782
  %v3992 = vsel %vm1839, %v3960, %v3784
  %4025 = vrot.lane.b32.xlu0 %v2234, 64
  %v4026 = vpop.permute.xlu0 %4025
  %4027 = vrot.lane.b32.xlu0 %v2239, 64
  %v4028 = vpop.permute.xlu0 %4027
  %4029 = vrot.lane.b32.xlu0 %v2244, 64
  %v4030 = vpop.permute.xlu0 %4029
  %4031 = vrot.lane.b32.xlu0 %v2249, 64
  %v4032 = vpop.permute.xlu0 %4031
  %4033 = vrot.lane.b32.xlu0 %v2254, 64
  %v4034 = vpop.permute.xlu0 %4033
  %4035 = vrot.lane.b32.xlu0 %v2259, 64
  %v4036 = vpop.permute.xlu0 %4035
  %4037 = vrot.lane.b32.xlu0 %v2264, 64
  %v4038 = vpop.permute.xlu0 %4037
  %4039 = vrot.lane.b32.xlu0 %v2269, 64
  %v4040 = vpop.permute.xlu0 %4039
  %4041 = vrot.lane.b32.xlu0 %v2274, 64
  %v4042 = vpop.permute.xlu0 %4041
  %4043 = vrot.lane.b32.xlu0 %v2279, 64
  %v4044 = vpop.permute.xlu0 %4043
  %4045 = vrot.lane.b32.xlu0 %v2284, 64
  %v4046 = vpop.permute.xlu0 %4045
  %4047 = vrot.lane.b32.xlu0 %v2289, 64
  %v4048 = vpop.permute.xlu0 %4047
  %4049 = vrot.lane.b32.xlu0 %v2294, 64
  %v4050 = vpop.permute.xlu0 %4049
  %4051 = vrot.lane.b32.xlu0 %v2299, 64
  %v4052 = vpop.permute.xlu0 %4051
  %4053 = vrot.lane.b32.xlu0 %v2304, 64
  %v4054 = vpop.permute.xlu0 %4053
  %4055 = vrot.lane.b32.xlu0 %v2309, 64
  %v4056 = vpop.permute.xlu0 %4055
  %4057 = vrot.lane.b32.xlu0 %v2314, 64
  %v4058 = vpop.permute.xlu0 %4057
  %4059 = vrot.lane.b32.xlu0 %v2319, 64
  %v4060 = vpop.permute.xlu0 %4059
  %4061 = vrot.lane.b32.xlu0 %v2324, 64
  %v4062 = vpop.permute.xlu0 %4061
  %4063 = vrot.lane.b32.xlu0 %v2329, 64
  %v4064 = vpop.permute.xlu0 %4063
  %4065 = vrot.lane.b32.xlu0 %v2334, 64
  %v4066 = vpop.permute.xlu0 %4065
  %4067 = vrot.lane.b32.xlu0 %v2339, 64
  %v4068 = vpop.permute.xlu0 %4067
  %4069 = vrot.lane.b32.xlu0 %v2344, 64
  %v4070 = vpop.permute.xlu0 %4069
  %4071 = vrot.lane.b32.xlu0 %v2349, 64
  %v4072 = vpop.permute.xlu0 %4071
  %4073 = vrot.lane.b32.xlu0 %v2354, 64
  %v4074 = vpop.permute.xlu0 %4073
  %4075 = vrot.lane.b32.xlu0 %v2359, 64
  %v4076 = vpop.permute.xlu0 %4075
  %4077 = vrot.lane.b32.xlu0 %v2364, 64
  %v4078 = vpop.permute.xlu0 %4077
  %4079 = vrot.lane.b32.xlu0 %v2369, 64
  %v4080 = vpop.permute.xlu0 %4079
  %4081 = vrot.lane.b32.xlu0 %v2374, 64
  %v4082 = vpop.permute.xlu0 %4081
  %4083 = vrot.lane.b32.xlu0 %v2379, 64
  %v4084 = vpop.permute.xlu0 %4083
  %4085 = vrot.lane.b32.xlu0 %v2384, 64
  %v4086 = vpop.permute.xlu0 %4085
  %4087 = vrot.lane.b32.xlu0 %v2389, 64
  %v4088 = vpop.permute.xlu0 %4087
  %v4121 = vsel %vm1774, %v3819, 0
  %v4123 = vsel %vm1774, %v3821, 0
  %v4125 = vsel %vm1774, %v3824, 0
  %v4127 = vsel %vm1774, %v3826, 0
  %v4129 = vsel %vm1774, %v3829, 0
  %v4131 = vsel %vm1774, %v3831, 0
  %v4133 = vsel %vm1774, %v3834, 0
  %v4135 = vsel %vm1774, %v3836, 0
  %v4137 = vsel %vm1774, %v3839, 0
  %v4139 = vsel %vm1774, %v3841, 0
  %v4141 = vsel %vm1774, %v3844, 0
  %v4143 = vsel %vm1774, %v3846, 0
  %v4145 = vsel %vm1774, %v3849, 0
  %v4147 = vsel %vm1774, %v3851, 0
  %v4149 = vsel %vm1774, %v3854, 0
  %v4151 = vsel %vm1774, %v3856, 0
  %v4153 = vsel %vm1774, %v3859, 0
  %v4155 = vsel %vm1774, %v3861, 0
  %v4157 = vsel %vm1774, %v3864, 0
  %v4159 = vsel %vm1774, %v3866, 0
  %v4161 = vsel %vm1774, %v3869, 0
  %v4163 = vsel %vm1774, %v3871, 0
  %v4165 = vsel %vm1774, %v3874, 0
  %v4167 = vsel %vm1774, %v3876, 0
  %v4169 = vsel %vm1774, %v3879, 0
  %v4171 = vsel %vm1774, %v3881, 0
  %v4173 = vsel %vm1774, %v3884, 0
  %v4175 = vsel %vm1774, %v3886, 0
  %v4177 = vsel %vm1774, %v3889, 0
  %v4179 = vsel %vm1774, %v3891, 0
  %v4181 = vsel %vm1774, %v3894, 0
  %v4183 = vsel %vm1774, %v3896, 0
  %4185 = vmatprep.subr.mxu0 0.0
  %4186 = vmatpush1.msra.mxu0 %v147
  %4187 = vmatprep.subr.mxu0 0.0
  %4188 = vmatpush1.msra.mxu0 %v148
  %4189 = vmatprep.subr.mxu0 0.0
  %4190 = vmatpush1.msra.mxu0 %v149
  %4191 = vmatprep.subr.mxu0 0.0
  %4192 = vmatpush1.msra.mxu0 %v150
  %4193 = vmatprep.subr.mxu0 0.0
  %4194 = vmatpush1.msra.mxu0 %v151
  %4195 = vmatprep.subr.mxu0 0.0
  %4196 = vmatpush1.msra.mxu0 %v152
  %4197 = vmatprep.subr.mxu0 0.0
  %4198 = vmatpush1.msra.mxu0 %v153
  %4199 = vmatprep.subr.mxu0 0.0
  %4200 = vmatpush1.msra.mxu0 %v154
  %4201 = vmatprep.subr.mxu0 0.0
  %4202 = vmatpush1.msra.mxu0 %v155
  %4203 = vmatprep.subr.mxu0 0.0
  %4204 = vmatpush1.msra.mxu0 %v156
  %4205 = vmatprep.subr.mxu0 0.0
  %4206 = vmatpush1.msra.mxu0 %v157
  %4207 = vmatprep.subr.mxu0 0.0
  %4208 = vmatpush1.msra.mxu0 %v158
  %4209 = vmatprep.subr.mxu0 0.0
  %4210 = vmatpush1.msra.mxu0 %v159
  %4211 = vmatprep.subr.mxu0 0.0
  %4212 = vmatpush1.msra.mxu0 %v160
  %4213 = vmatprep.subr.mxu0 0.0
  %4214 = vmatpush1.msra.mxu0 %v161
  %4215 = vmatprep.subr.mxu0 0.0
  %4216 = vmatpush1.msra.mxu0 %v162
  %4217 = vmatprep.subr.mxu0 0.0
  %4218 = vmatpush1.msra.mxu0 %v163
  %4219 = vmatprep.subr.mxu0 0.0
  %4220 = vmatpush1.msra.mxu0 %v164
  %4221 = vmatprep.subr.mxu0 0.0
  %4222 = vmatpush1.msra.mxu0 %v165
  %4223 = vmatprep.subr.mxu0 0.0
  %4224 = vmatpush1.msra.mxu0 %v166
  %4225 = vmatprep.subr.mxu0 0.0
  %4226 = vmatpush1.msra.mxu0 0.0
  %4227 = vmatprep.subr.mxu0 0.0
  %4228 = vmatpush1.msra.mxu0 0.0
  %4229 = vmatprep.subr.mxu0 0.0
  %4230 = vmatpush1.msra.mxu0 0.0
  %4231 = vmatprep.subr.mxu0 0.0
  %4232 = vmatpush1.msra.mxu0 0.0
  %4233 = vmatprep.subr.mxu0 0.0
  %4234 = vmatpush1.msra.mxu0 0.0
  %4235 = vmatprep.subr.mxu0 0.0
  %4236 = vmatpush1.msra.mxu0 0.0
  %4237 = vmatprep.subr.mxu0 0.0
  %4238 = vmatpush1.msra.mxu0 0.0
  %4239 = vmatprep.subr.mxu0 0.0
  %4240 = vmatpush1.msra.mxu0 0.0
  %4241 = vmatprep.subr.mxu0 0.0
  %4242 = vmatpush1.msra.mxu0 0.0
  %4243 = vmatprep.subr.mxu0 0.0
  %4244 = vmatpush1.msra.mxu0 0.0
  %4245 = vmatprep.subr.mxu0 0.0
  %4246 = vmatpush1.msra.mxu0 0.0
  %4247 = vmatprep.subr.mxu0 0.0
  %4248 = vmatpush1.msra.mxu0 0.0
  %4249 = vmatprep.mubr.f32.mxu0 %v4121
  %4250 = vmatmul.mubr.f32.gmra.mrb[0].mxu0 %v3961
  %v4251 = vpop.f32.mrb[0].mxu0
  %v4252 = vadd.f32 %v4026, %v4251
  %v4253 = vpop.f32.mrb[0].mxu0
  %4254 = vmatprep.mubr.f32.mxu0 %v4123
  %4255 = vmatmul.mubr.f32.gmra.mrb[0].mxu0 %v3962
  %v4256 = vpop.f32.mrb[0].mxu0
  %v4257 = vadd.f32 %v4028, %v4256
  %v4258 = vpop.f32.mrb[0].mxu0
  %4259 = vmatprep.mubr.f32.mxu0 %v4125
  %4260 = vmatmul.mubr.f32.gmra.mrb[0].mxu0 %v3963
  %v4261 = vpop.f32.mrb[0].mxu0
  %v4262 = vadd.f32 %v4030, %v4261
  %v4263 = vpop.f32.mrb[0].mxu0
  %4264 = vmatprep.mubr.f32.mxu0 %v4127
  %4265 = vmatmul.mubr.f32.gmra.mrb[0].mxu0 %v3964
  %v4266 = vpop.f32.mrb[0].mxu0
  %v4267 = vadd.f32 %v4032, %v4266
  %v4268 = vpop.f32.mrb[0].mxu0
  %4269 = vmatprep.mubr.f32.mxu0 %v4129
  %4270 = vmatmul.mubr.f32.gmra.mrb[0].mxu0 %v3965
  %v4271 = vpop.f32.mrb[0].mxu0
  %v4272 = vadd.f32 %v4034, %v4271
  %v4273 = vpop.f32.mrb[0].mxu0
  %4274 = vmatprep.mubr.f32.mxu0 %v4131
  %4275 = vmatmul.mubr.f32.gmra.mrb[0].mxu0 %v3966
  %v4276 = vpop.f32.mrb[0].mxu0
  %v4277 = vadd.f32 %v4036, %v4276
  %v4278 = vpop.f32.mrb[0].mxu0
  %4279 = vmatprep.mubr.f32.mxu0 %v4133
  %4280 = vmatmul.mubr.f32.gmra.mrb[0].mxu0 %v3967
  %v4281 = vpop.f32.mrb[0].mxu0
  %v4282 = vadd.f32 %v4038, %v4281
  %v4283 = vpop.f32.mrb[0].mxu0
  %4284 = vmatprep.mubr.f32.mxu0 %v4135
  %4285 = vmatmul.mubr.f32.gmra.mrb[0].mxu0 %v3968
  %v4286 = vpop.f32.mrb[0].mxu0
  %v4287 = vadd.f32 %v4040, %v4286
  %v4288 = vpop.f32.mrb[0].mxu0
  %4289 = vmatprep.mubr.f32.mxu0 %v4137
  %4290 = vmatmul.mubr.f32.gmra.mrb[0].mxu0 %v3969
  %v4291 = vpop.f32.mrb[0].mxu0
  %v4292 = vadd.f32 %v4042, %v4291
  %v4293 = vpop.f32.mrb[0].mxu0
  %4294 = vmatprep.mubr.f32.mxu0 %v4139
  %4295 = vmatmul.mubr.f32.gmra.mrb[0].mxu0 %v3970
  %v4296 = vpop.f32.mrb[0].mxu0
  %v4297 = vadd.f32 %v4044, %v4296
  %v4298 = vpop.f32.mrb[0].mxu0
  %4299 = vmatprep.mubr.f32.mxu0 %v4141
  %4300 = vmatmul.mubr.f32.gmra.mrb[0].mxu0 %v3971
  %v4301 = vpop.f32.mrb[0].mxu0
  %v4302 = vadd.f32 %v4046, %v4301
  %v4303 = vpop.f32.mrb[0].mxu0
  %4304 = vmatprep.mubr.f32.mxu0 %v4143
  %4305 = vmatmul.mubr.f32.gmra.mrb[0].mxu0 %v3972
  %v4306 = vpop.f32.mrb[0].mxu0
  %v4307 = vadd.f32 %v4048, %v4306
  %v4308 = vpop.f32.mrb[0].mxu0
  %4309 = vmatprep.mubr.f32.mxu0 %v4145
  %4310 = vmatmul.mubr.f32.gmra.mrb[0].mxu0 %v3973
  %v4311 = vpop.f32.mrb[0].mxu0
  %v4312 = vadd.f32 %v4050, %v4311
  %v4313 = vpop.f32.mrb[0].mxu0
  %4314 = vmatprep.mubr.f32.mxu0 %v4147
  %4315 = vmatmul.mubr.f32.gmra.mrb[0].mxu0 %v3974
  %v4316 = vpop.f32.mrb[0].mxu0
  %v4317 = vadd.f32 %v4052, %v4316
  %v4318 = vpop.f32.mrb[0].mxu0
  %4319 = vmatprep.mubr.f32.mxu0 %v4149
  %4320 = vmatmul.mubr.f32.gmra.mrb[0].mxu0 %v3975
  %v4321 = vpop.f32.mrb[0].mxu0
  %v4322 = vadd.f32 %v4054, %v4321
  %v4323 = vpop.f32.mrb[0].mxu0
  %4324 = vmatprep.mubr.f32.mxu0 %v4151
  %4325 = vmatmul.mubr.f32.gmra.mrb[0].mxu0 %v3976
  %v4326 = vpop.f32.mrb[0].mxu0
  %v4327 = vadd.f32 %v4056, %v4326
  %v4328 = vpop.f32.mrb[0].mxu0
  %4329 = vmatprep.mubr.f32.mxu0 %v4153
  %4330 = vmatmul.mubr.f32.gmra.mrb[0].mxu0 %v3977
  %v4331 = vpop.f32.mrb[0].mxu0
  %v4332 = vadd.f32 %v4058, %v4331
  %v4333 = vpop.f32.mrb[0].mxu0
  %4334 = vmatprep.mubr.f32.mxu0 %v4155
  %4335 = vmatmul.mubr.f32.gmra.mrb[0].mxu0 %v3978
  %v4336 = vpop.f32.mrb[0].mxu0
  %v4337 = vadd.f32 %v4060, %v4336
  %v4338 = vpop.f32.mrb[0].mxu0
  %4339 = vmatprep.mubr.f32.mxu0 %v4157
  %4340 = vmatmul.mubr.f32.gmra.mrb[0].mxu0 %v3979
  %v4341 = vpop.f32.mrb[0].mxu0
  %v4342 = vadd.f32 %v4062, %v4341
  %v4343 = vpop.f32.mrb[0].mxu0
  %4344 = vmatprep.mubr.f32.mxu0 %v4159
  %4345 = vmatmul.mubr.f32.gmra.mrb[0].mxu0 %v3980
  %v4346 = vpop.f32.mrb[0].mxu0
  %v4347 = vadd.f32 %v4064, %v4346
  %v4348 = vpop.f32.mrb[0].mxu0
  %4349 = vmatprep.mubr.f32.mxu0 %v4161
  %4350 = vmatmul.mubr.f32.gmra.mrb[0].mxu0 %v3981
  %v4351 = vpop.f32.mrb[0].mxu0
  %v4352 = vadd.f32 %v4066, %v4351
  %v4353 = vpop.f32.mrb[0].mxu0
  %4354 = vmatprep.mubr.f32.mxu0 %v4163
  %4355 = vmatmul.mubr.f32.gmra.mrb[0].mxu0 %v3982
  %v4356 = vpop.f32.mrb[0].mxu0
  %v4357 = vadd.f32 %v4068, %v4356
  %v4358 = vpop.f32.mrb[0].mxu0
  %4359 = vmatprep.mubr.f32.mxu0 %v4165
  %4360 = vmatmul.mubr.f32.gmra.mrb[0].mxu0 %v3983
  %v4361 = vpop.f32.mrb[0].mxu0
  %v4362 = vadd.f32 %v4070, %v4361
  %v4363 = vpop.f32.mrb[0].mxu0
  %4364 = vmatprep.mubr.f32.mxu0 %v4167
  %4365 = vmatmul.mubr.f32.gmra.mrb[0].mxu0 %v3984
  %v4366 = vpop.f32.mrb[0].mxu0
  %v4367 = vadd.f32 %v4072, %v4366
  %v4368 = vpop.f32.mrb[0].mxu0
  %4369 = vmatprep.mubr.f32.mxu0 %v4169
  %4370 = vmatmul.mubr.f32.gmra.mrb[0].mxu0 %v3985
  %v4371 = vpop.f32.mrb[0].mxu0
  %v4372 = vadd.f32 %v4074, %v4371
  %v4373 = vpop.f32.mrb[0].mxu0
  %4374 = vmatprep.mubr.f32.mxu0 %v4171
  %4375 = vmatmul.mubr.f32.gmra.mrb[0].mxu0 %v3986
  %v4376 = vpop.f32.mrb[0].mxu0
  %v4377 = vadd.f32 %v4076, %v4376
  %v4378 = vpop.f32.mrb[0].mxu0
  %4379 = vmatprep.mubr.f32.mxu0 %v4173
  %4380 = vmatmul.mubr.f32.gmra.mrb[0].mxu0 %v3987
  %v4381 = vpop.f32.mrb[0].mxu0
  %v4382 = vadd.f32 %v4078, %v4381
  %v4383 = vpop.f32.mrb[0].mxu0
  %4384 = vmatprep.mubr.f32.mxu0 %v4175
  %4385 = vmatmul.mubr.f32.gmra.mrb[0].mxu0 %v3988
  %v4386 = vpop.f32.mrb[0].mxu0
  %v4387 = vadd.f32 %v4080, %v4386
  %v4388 = vpop.f32.mrb[0].mxu0
  %4389 = vmatprep.mubr.f32.mxu0 %v4177
  %4390 = vmatmul.mubr.f32.gmra.mrb[0].mxu0 %v3989
  %v4391 = vpop.f32.mrb[0].mxu0
  %v4392 = vadd.f32 %v4082, %v4391
  %v4393 = vpop.f32.mrb[0].mxu0
  %4394 = vmatprep.mubr.f32.mxu0 %v4179
  %4395 = vmatmul.mubr.f32.gmra.mrb[0].mxu0 %v3990
  %v4396 = vpop.f32.mrb[0].mxu0
  %v4397 = vadd.f32 %v4084, %v4396
  %v4398 = vpop.f32.mrb[0].mxu0
  %4399 = vmatprep.mubr.f32.mxu0 %v4181
  %4400 = vmatmul.mubr.f32.gmra.mrb[0].mxu0 %v3991
  %v4401 = vpop.f32.mrb[0].mxu0
  %v4402 = vadd.f32 %v4086, %v4401
  %v4403 = vpop.f32.mrb[0].mxu0
  %4404 = vmatprep.mubr.f32.mxu0 %v4183
  %4405 = vmatmul.mubr.f32.gmra.mrb[0].mxu0 %v3992
  %v4406 = vpop.f32.mrb[0].mxu0
  %v4407 = vadd.f32 %v4088, %v4406
  %v4408 = vpop.f32.mrb[0].mxu0
  %4409 = vdwg.mxu0
  %v4410 = vtanh.pop %v4252
  %v4411 = vtanh.pop %v4257
  %v4412 = vtanh.pop %v4262
  %v4413 = vtanh.pop %v4267
  %v4414 = vtanh.pop %v4272
  %v4415 = vtanh.pop %v4277
  %v4416 = vtanh.pop %v4282
  %v4417 = vtanh.pop %v4287
  %v4418 = vtanh.pop %v4292
  %v4419 = vtanh.pop %v4297
  %v4420 = vtanh.pop %v4302
  %v4421 = vtanh.pop %v4307
  %v4422 = vtanh.pop %v4312
  %v4423 = vtanh.pop %v4317
  %v4424 = vtanh.pop %v4322
  %v4425 = vtanh.pop %v4327
  %v4426 = vtanh.pop %v4332
  %v4427 = vtanh.pop %v4337
  %v4428 = vtanh.pop %v4342
  %v4429 = vtanh.pop %v4347
  %v4430 = vtanh.pop %v4352
  %v4431 = vtanh.pop %v4357
  %v4432 = vtanh.pop %v4362
  %v4433 = vtanh.pop %v4367
  %v4434 = vtanh.pop %v4372
  %v4435 = vtanh.pop %v4377
  %v4436 = vtanh.pop %v4382
  %v4437 = vtanh.pop %v4387
  %v4438 = vtanh.pop %v4392
  %v4439 = vtanh.pop %v4397
  %v4440 = vtanh.pop %v4402
  %v4441 = vtanh.pop %v4407
  %v4442 = vsub.f32 1.0, %v2810
  %v4443 = vsub.f32 1.0, %v2812
  %v4444 = vsub.f32 1.0, %v2814
  %v4445 = vsub.f32 1.0, %v2816
  %v4446 = vsub.f32 1.0, %v2818
  %v4447 = vsub.f32 1.0, %v2820
  %v4448 = vsub.f32 1.0, %v2822
  %v4449 = vsub.f32 1.0, %v2824
  %v4450 = vsub.f32 1.0, %v2826
  %v4451 = vsub.f32 1.0, %v2828
  %v4452 = vsub.f32 1.0, %v2830
  %v4453 = vsub.f32 1.0, %v2832
  %v4454 = vsub.f32 1.0, %v2834
  %v4455 = vsub.f32 1.0, %v2836
  %v4456 = vsub.f32 1.0, %v2838
  %v4457 = vsub.f32 1.0, %v2840
  %v4458 = vsub.f32 1.0, %v2842
  %v4459 = vsub.f32 1.0, %v2844
  %v4460 = vsub.f32 1.0, %v2846
  %v4461 = vsub.f32 1.0, %v2848
  %v4462 = vsub.f32 1.0, %v2850
  %v4463 = vsub.f32 1.0, %v2852
  %v4464 = vsub.f32 1.0, %v2854
  %v4465 = vsub.f32 1.0, %v2856
  %v4466 = vsub.f32 1.0, %v2858
  %v4467 = vsub.f32 1.0, %v2860
  %v4468 = vsub.f32 1.0, %v2862
  %v4469 = vsub.f32 1.0, %v2864
  %v4470 = vsub.f32 1.0, %v2866
  %v4471 = vsub.f32 1.0, %v2868
  %v4472 = vsub.f32 1.0, %v2870
  %v4473 = vsub.f32 1.0, %v2872
  %v4474 = vmul.f32 %v4442, %v23
  %v4475 = vmul.f32 %v4443, %v24
  %v4476 = vmul.f32 %v4444, %v25
  %v4477 = vmul.f32 %v4445, %v26
  %v4478 = vmul.f32 %v4446, %v27
  %v4479 = vmul.f32 %v4447, %v28
  %v4480 = vmul.f32 %v4448, %v29
  %v4481 = vmul.f32 %v4449, %v30
  %v4482 = vmul.f32 %v4450, %v31
  %v4483 = vmul.f32 %v4451, %v32
  %v4484 = vmul.f32 %v4452, %v33
  %v4485 = vmul.f32 %v4453, %v34
  %v4486 = vmul.f32 %v4454, %v35
  %v4487 = vmul.f32 %v4455, %v36
  %v4488 = vmul.f32 %v4456, %v37
  %v4489 = vmul.f32 %v4457, %v38
  %v4490 = vmul.f32 %v4458, %v39
  %v4491 = vmul.f32 %v4459, %v40
  %v4492 = vmul.f32 %v4460, %v41
  %v4493 = vmul.f32 %v4461, %v42
  %v4494 = vmul.f32 %v4462, %v43
  %v4495 = vmul.f32 %v4463, %v44
  %v4496 = vmul.f32 %v4464, %v45
  %v4497 = vmul.f32 %v4465, %v46
  %v4498 = vmul.f32 %v4466, %v47
  %v4499 = vmul.f32 %v4467, %v48
  %v4500 = vmul.f32 %v4468, %v49
  %v4501 = vmul.f32 %v4469, %v50
  %v4502 = vmul.f32 %v4470, %v51
  %v4503 = vmul.f32 %v4471, %v52
  %v4504 = vmul.f32 %v4472, %v53
  %v4505 = vmul.f32 %v4473, %v54
  %v4506 = vmul.f32 %v2810, %v4410
  %v4507 = vmul.f32 %v2812, %v4411
  %v4508 = vmul.f32 %v2814, %v4412
  %v4509 = vmul.f32 %v2816, %v4413
  %v4510 = vmul.f32 %v2818, %v4414
  %v4511 = vmul.f32 %v2820, %v4415
  %v4512 = vmul.f32 %v2822, %v4416
  %v4513 = vmul.f32 %v2824, %v4417
  %v4514 = vmul.f32 %v2826, %v4418
  %v4515 = vmul.f32 %v2828, %v4419
  %v4516 = vmul.f32 %v2830, %v4420
  %v4517 = vmul.f32 %v2832, %v4421
  %v4518 = vmul.f32 %v2834, %v4422
  %v4519 = vmul.f32 %v2836, %v4423
  %v4520 = vmul.f32 %v2838, %v4424
  %v4521 = vmul.f32 %v2840, %v4425
  %v4522 = vmul.f32 %v2842, %v4426
  %v4523 = vmul.f32 %v2844, %v4427
  %v4524 = vmul.f32 %v2846, %v4428
  %v4525 = vmul.f32 %v2848, %v4429
  %v4526 = vmul.f32 %v2850, %v4430
  %v4527 = vmul.f32 %v2852, %v4431
  %v4528 = vmul.f32 %v2854, %v4432
  %v4529 = vmul.f32 %v2856, %v4433
  %v4530 = vmul.f32 %v2858, %v4434
  %v4531 = vmul.f32 %v2860, %v4435
  %v4532 = vmul.f32 %v2862, %v4436
  %v4533 = vmul.f32 %v2864, %v4437
  %v4534 = vmul.f32 %v2866, %v4438
  %v4535 = vmul.f32 %v2868, %v4439
  %v4536 = vmul.f32 %v2870, %v4440
  %v4537 = vmul.f32 %v2872, %v4441
  %v4538 = vadd.f32 %v4474, %v4506
  %v4539 = vadd.f32 %v4475, %v4507
  %v4540 = vadd.f32 %v4476, %v4508
  %v4541 = vadd.f32 %v4477, %v4509
  %v4542 = vadd.f32 %v4478, %v4510
  %v4543 = vadd.f32 %v4479, %v4511
  %v4544 = vadd.f32 %v4480, %v4512
  %v4545 = vadd.f32 %v4481, %v4513
  %v4546 = vadd.f32 %v4482, %v4514
  %v4547 = vadd.f32 %v4483, %v4515
  %v4548 = vadd.f32 %v4484, %v4516
  %v4549 = vadd.f32 %v4485, %v4517
  %v4550 = vadd.f32 %v4486, %v4518
  %v4551 = vadd.f32 %v4487, %v4519
  %v4552 = vadd.f32 %v4488, %v4520
  %v4553 = vadd.f32 %v4489, %v4521
  %v4554 = vadd.f32 %v4490, %v4522
  %v4555 = vadd.f32 %v4491, %v4523
  %v4556 = vadd.f32 %v4492, %v4524
  %v4557 = vadd.f32 %v4493, %v4525
  %v4558 = vadd.f32 %v4494, %v4526
  %v4559 = vadd.f32 %v4495, %v4527
  %v4560 = vadd.f32 %v4496, %v4528
  %v4561 = vadd.f32 %v4497, %v4529
  %v4562 = vadd.f32 %v4498, %v4530
  %v4563 = vadd.f32 %v4499, %v4531
  %v4564 = vadd.f32 %v4500, %v4532
  %v4565 = vadd.f32 %v4501, %v4533
  %v4566 = vadd.f32 %v4502, %v4534
  %v4567 = vadd.f32 %v4503, %v4535
  %v4568 = vadd.f32 %v4504, %v4536
  %v4569 = vadd.f32 %v4505, %v4537
  %4570 = vst.msk [vmem:[%s6] sm:$0xff] %vm1774, %v4538
  %4571 = vst.msk [vmem:[%s6 + $0x8] sm:$0xff] %vm1774, %v4539
  %4572 = vst.msk [vmem:[%s6 + $0x10] sm:$0xff] %vm1774, %v4540
  %4573 = vst.msk [vmem:[%s6 + $0x18] sm:$0xff] %vm1774, %v4541
  %4574 = vst.msk [vmem:[%s6 + $0x20] sm:$0xff] %vm1774, %v4542
  %4575 = vst.msk [vmem:[%s6 + $0x28] sm:$0xff] %vm1774, %v4543
  %4576 = vst.msk [vmem:[%s6 + $0x30] sm:$0xff] %vm1774, %v4544
  %4577 = vst.msk [vmem:[%s6 + $0x38] sm:$0xff] %vm1774, %v4545
  %4578 = vst.msk [vmem:[%s6 + $0x40] sm:$0xff] %vm1774, %v4546
  %4579 = vst.msk [vmem:[%s6 + $0x48] sm:$0xff] %vm1774, %v4547
  %4580 = vst.msk [vmem:[%s6 + $0x50] sm:$0xff] %vm1774, %v4548
  %4581 = vst.msk [vmem:[%s6 + $0x58] sm:$0xff] %vm1774, %v4549
  %4582 = vst.msk [vmem:[%s6 + $0x60] sm:$0xff] %vm1774, %v4550
  %4583 = vst.msk [vmem:[%s6 + $0x68] sm:$0xff] %vm1774, %v4551
  %4584 = vst.msk [vmem:[%s6 + $0x70] sm:$0xff] %vm1774, %v4552
  %4585 = vst.msk [vmem:[%s6 + $0x78] sm:$0xff] %vm1774, %v4553
  %4586 = vst.msk [vmem:[%s6 + $0x80] sm:$0xff] %vm1774, %v4554
  %4587 = vst.msk [vmem:[%s6 + $0x88] sm:$0xff] %vm1774, %v4555
  %4588 = vst.msk [vmem:[%s6 + $0x90] sm:$0xff] %vm1774, %v4556
  %4589 = vst.msk [vmem:[%s6 + $0x98] sm:$0xff] %vm1774, %v4557
  %4590 = vst.msk [vmem:[%s6 + $0xa0] sm:$0xff] %vm1774, %v4558
  %4591 = vst.msk [vmem:[%s6 + $0xa8] sm:$0xff] %vm1774, %v4559
  %4592 = vst.msk [vmem:[%s6 + $0xb0] sm:$0xff] %vm1774, %v4560
  %4593 = vst.msk [vmem:[%s6 + $0xb8] sm:$0xff] %vm1774, %v4561
  %4594 = vst.msk [vmem:[%s6 + $0xc0] sm:$0xff] %vm1774, %v4562
  %4595 = vst.msk [vmem:[%s6 + $0xc8] sm:$0xff] %vm1774, %v4563
  %4596 = vst.msk [vmem:[%s6 + $0xd0] sm:$0xff] %vm1774, %v4564
  %4597 = vst.msk [vmem:[%s6 + $0xd8] sm:$0xff] %vm1774, %v4565
  %4598 = vst.msk [vmem:[%s6 + $0xe0] sm:$0xff] %vm1774, %v4566
  %4599 = vst.msk [vmem:[%s6 + $0xe8] sm:$0xff] %vm1774, %v4567
  %4600 = vst.msk [vmem:[%s6 + $0xf0] sm:$0xff] %vm1774, %v4568
  %4601 = vst.msk [vmem:[%s6 + $0xf8] sm:$0xff] %vm1774, %v4569
  // Predicated region
  $region26: #{sep_conv_gru_pallas.2} parent=0 // pred_check
    _
  $region27: #{sep_conv_gru_pallas.2} parent=0 // pred_check_branch
    %4603 = sbr.rel (0) target = $region29
  $region28: #{sep_conv_gru_pallas.2} parent=0 // pred_region
    _
  $region29: #{sep_conv_gru_pallas.2} parent=0 // pred_fallthru
    _
  // Predicated region
  $region30: #{sep_conv_gru_pallas.2} parent=0 // pred_check
    _
  $region31: #{sep_conv_gru_pallas.2} parent=0 // pred_check_branch
    %4605 = sbr.rel (0) target = $region33
  $region32: #{sep_conv_gru_pallas.2} parent=0 // pred_region
    _
  $region33: #{sep_conv_gru_pallas.2} parent=0 // pred_fallthru
    _

</llo_original>
